<compile_context>
chip_gen: v7x
topology: tpu7x:2x2x1
jax: 0.10.0
libtpu: 0.0.40
codegen_flags: <defaults>
</compile_context>

<pallas_src>
import jax
import jax.numpy as jnp
from jax import lax
from jax.experimental import pallas as pl
from jax.experimental.pallas import tpu as pltpu

# ---------------------------------------------------------------------------
# Model hyper-parameters (small, self-consistent "mini-BERT")
# ---------------------------------------------------------------------------
B, S, H = 2, 16, 32            # batch, sequence, hidden_size
NUM_HEADS, HEAD_DIM = 2, 16    # H = NUM_HEADS * HEAD_DIM
INTERMEDIATE = 64
NUM_LAYERS = 2
VOCAB, TYPE_VOCAB, MAX_POS = 100, 2, 64
NUM_LABELS = 2                 # start / end logits
LN_EPS = 1e-12
ATTN_SCALE = 1.0 / (HEAD_DIM ** 0.5)
QA_PAD = 128                   # lane-dense padded label dimension
BS = B * S
H3, H4 = 3 * H, 4 * H


# ---------------------------------------------------------------------------
# Fused kernel
# ---------------------------------------------------------------------------
def _layer_norm(x, gamma, beta):
    mu = jnp.mean(x, axis=-1, keepdims=True)
    var = jnp.mean((x - mu) ** 2, axis=-1, keepdims=True)
    return (x - mu) * lax.rsqrt(var + LN_EPS) * gamma + beta


def fused_bert_qa_kernel(x_ref, mask_ref, wqkvo_ref, battn_ref, wffn_ref,
                         vecs_ref, qa_w_ref, misc_ref, out_ref):
    """Entire BERT-QA forward for the whole (tiny) batch in one grid step.

    Packed inputs:
      x_ref     (B*S, H)          embedded tokens (pre-LayerNorm)
      mask_ref  (B*S, B*S)        block-diagonal additive attention mask
      wqkvo_ref (L, H, 4H)        [wq*scale | wk | wv | wo] per layer
      battn_ref (L, 1, 4H)        [bq*scale | bk | bv | bo] per layer
      wffn_ref  (L, H+I, I)       rows 0:H = w1 (H,I); rows H:H+I = w2 lane-padded (I,I)
      vecs_ref  (L, 2, 128)       row0 = [g1|be1|g2|be2], row1 = [b1(I)|b2(H)|0]
      qa_w_ref  (H, QA_PAD)       qa_outputs weight, lane-padded
      misc_ref  (2, QA_PAD)       row0 = [emb_ln_g | emb_ln_b | 0], row1 = qa bias padded
    """
    emb_g = misc_ref[0:1, 0:H]
    emb_b = misc_ref[0:1, H:2 * H]
    qa_b = misc_ref[1:2, :]

    mask = mask_ref[...]                                  # (B*S, B*S)
    x = _layer_norm(x_ref[...], emb_g, emb_b)             # (B*S, H)

    for l in range(NUM_LAYERS):                           # static layer loop
        wqkvo = wqkvo_ref[l]                              # (H, 4H) lane-dense
        battn = battn_ref[l]                              # (1, 4H)
        vecs = vecs_ref[l]                                # (2, 128)

        # One fused projection matmul per layer (scale already folded into q columns).
        # Columns 3H:4H of the result (x @ wo) are never read: one extra MXU lane
        # fragment is cheaper than slicing the weight before the push.
        qkv = jnp.dot(x, wqkvo, preferred_element_type=jnp.float32) + battn

        attn = jnp.zeros((BS, H), jnp.float32)
        for h in range(NUM_HEADS):                        # static head loop (NH=2)
            qh = qkv[:, h * HEAD_DIM:(h + 1) * HEAD_DIM]
            kh = qkv[:, H + h * HEAD_DIM:H + (h + 1) * HEAD_DIM]
            vh = qkv[:, 2 * H + h * HEAD_DIM:2 * H + (h + 1) * HEAD_DIM]
            # q @ k^T over ALL B*S rows at once; cross-batch pairs killed by the mask.
            s = lax.dot_general(qh, kh, (((1,), (1,)), ((), ())),
                                preferred_element_type=jnp.float32) + mask
            m = jnp.max(s, axis=-1, keepdims=True)        # stable softmax
            e = jnp.exp(s - m)
            p = e / jnp.sum(e, axis=-1, keepdims=True)    # exact recip (negligible cost)
            ctx = jnp.dot(p, vh, preferred_element_type=jnp.float32)
            # Fold the head-concatenate into the output projection (weight-side slice).
            wo_h = wqkvo[h * HEAD_DIM:(h + 1) * HEAD_DIM, 3 * H:4 * H]
            attn = attn + jnp.dot(ctx, wo_h, preferred_element_type=jnp.float32)
        attn = attn + battn[:, 3 * H:4 * H]               # bo

        x = _layer_norm(attn + x, vecs[0:1, 0:H], vecs[0:1, H:2 * H])

        w1 = wffn_ref[l, 0:H, :]                          # (H, I)
        w2 = wffn_ref[l, H:H + INTERMEDIATE, 0:H]         # (I, H)
        ff = (jnp.dot(x, w1, preferred_element_type=jnp.float32)
              + vecs[1:2, 0:INTERMEDIATE])
        # TODO(synk): HF BERT default hidden_act is exact (erf) GELU; tanh-approx used.
        ff = jax.nn.gelu(ff, approximate=True)
        ff = (jnp.dot(ff, w2, preferred_element_type=jnp.float32)
              + vecs[1:2, INTERMEDIATE:INTERMEDIATE + H])
        x = _layer_norm(ff + x, vecs[0:1, 2 * H:3 * H], vecs[0:1, 3 * H:4 * H])

    # QA head into a lane-dense padded slab; real labels are columns 0..NUM_LABELS-1.
    out_ref[...] = (jnp.dot(x, qa_w_ref[...], preferred_element_type=jnp.float32)
                    + qa_b)                               # (B*S, QA_PAD)


# ---------------------------------------------------------------------------
# pallas_call wrapper (single launch, single grid step, everything in VMEM)
# ---------------------------------------------------------------------------
def _full_spec(shape):
    n = len(shape)
    return pl.BlockSpec(shape, lambda i, _n=n: (0,) * _n)


@jax.jit
def fused_forward(x_flat, add_mask, wqkvo, battn, wffn, vecs, qa_w_pad, misc):
    ins = [x_flat, add_mask, wqkvo, battn, wffn, vecs, qa_w_pad, misc]
    return pl.pallas_call(
        fused_bert_qa_kernel,
        out_shape=jax.ShapeDtypeStruct((BS, QA_PAD), jnp.float32),
        grid=(1,),
        in_specs=[_full_spec(a.shape) for a in ins],
        out_specs=_full_spec((BS, QA_PAD)),
        compiler_params=pltpu.CompilerParams(
            dimension_semantics=("arbitrary",)),   # µs-scale work: keep on one TC
    )(*ins)


# ---------------------------------------------------------------------------
# Deterministic synthetic parameters, packed for the kernel
# ---------------------------------------------------------------------------
def init_params(key):
    keys = iter(jax.random.split(key, 128))

    def dense(shape):
        return jax.random.normal(next(keys), shape, jnp.float32) * 0.02

    params = {
        "word_emb": dense((VOCAB, H)),
        "pos_emb": dense((MAX_POS, H)),
        "type_emb": dense((TYPE_VOCAB, H)),
    }

    # misc: row0 = [emb_ln_gamma | emb_ln_beta | 0], row1 = padded qa_outputs bias.
    emb_g = jnp.ones((H,), jnp.float32)
    emb_b = jnp.zeros((H,), jnp.float32)
    qa_w = dense((H, NUM_LABELS))
    qa_b = dense((NUM_LABELS,))
    misc = jnp.zeros((2, QA_PAD), jnp.float32)
    misc = misc.at[0, 0:H].set(emb_g).at[0, H:2 * H].set(emb_b)
    misc = misc.at[1, 0:NUM_LABELS].set(qa_b)          # QA bias actually wired in
    params["misc"] = misc
    params["qa_w_pad"] = (jnp.zeros((H, QA_PAD), jnp.float32)
                          .at[:, :NUM_LABELS].set(qa_w))

    wqkvo_l, battn_l, wffn_l, vecs_l = [], [], [], []
    for _ in range(NUM_LAYERS):
        wq, wk, wv, wo = dense((H, H)), dense((H, H)), dense((H, H)), dense((H, H))
        bq, bk, bv, bo = dense((H,)), dense((H,)), dense((H,)), dense((H,))
        # Fold 1/sqrt(HEAD_DIM) into wq / bq once at init (free at runtime).
        wqkvo_l.append(jnp.concatenate([wq * ATTN_SCALE, wk, wv, wo], axis=1))   # (H, 4H)
        battn_l.append(jnp.concatenate([bq * ATTN_SCALE, bk, bv, bo])[None, :])  # (1, 4H)

        w1, w2 = dense((H, INTERMEDIATE)), dense((INTERMEDIATE, H))
        b1, b2 = dense((INTERMEDIATE,)), dense((H,))
        w2_pad = (jnp.zeros((INTERMEDIATE, INTERMEDIATE), jnp.float32)
                  .at[:, :H].set(w2))
        wffn_l.append(jnp.concatenate([w1, w2_pad], axis=0))                     # (H+I, I)

        g1 = jnp.ones((H,), jnp.float32)
        be1 = jnp.zeros((H,), jnp.float32)
        g2 = jnp.ones((H,), jnp.float32)
        be2 = jnp.zeros((H,), jnp.float32)
        v0 = jnp.concatenate([g1, be1, g2, be2])                                 # (128,)
        v1 = jnp.concatenate(
            [b1, b2, jnp.zeros((QA_PAD - INTERMEDIATE - H,), jnp.float32)])      # (128,)
        vecs_l.append(jnp.stack([v0, v1]))                                       # (2, 128)

    params["wqkvo"] = jnp.stack(wqkvo_l)   # (L, H, 4H)
    params["battn"] = jnp.stack(battn_l)   # (L, 1, 4H)
    params["wffn"] = jnp.stack(wffn_l)     # (L, H+I, I)
    params["vecs"] = jnp.stack(vecs_l)     # (L, 2, 128)
    return params


# ---------------------------------------------------------------------------
# Forward pass (mirrors ParametricBertModelQA.forward, eval mode)
# ---------------------------------------------------------------------------
def parametric_bert_qa_forward(params, input_ids, token_type_ids, attention_mask):
    # prepare_input_fn glue: inputs are already the BERT input dict fields.
    # Embedding gathers are plain-JAX glue (no matmul hot path).
    pos_ids = jnp.arange(S, dtype=jnp.int32)[None, :]
    emb = (jnp.take(params["word_emb"], input_ids, axis=0)
           + jnp.take(params["pos_emb"], pos_ids, axis=0)
           + jnp.take(params["type_emb"], token_type_ids, axis=0)).astype(jnp.float32)
    x_flat = emb.reshape(BS, H)

    # Block-diagonal additive mask over the flattened (B*S, B*S) token grid:
    # same-batch valid keys -> 0, cross-batch pairs and padded keys -> -10000
    # (HF-style extended attention mask, extended to the flattened batch).
    key_mask = attention_mask.astype(jnp.float32)                        # (B, S)
    allowed = jnp.einsum('pq,qj->pqj',
                         jnp.eye(B, dtype=jnp.float32), key_mask)        # (B, B, S)
    allowed = jnp.broadcast_to(allowed[:, None, :, :], (B, S, B, S)).reshape(BS, BS)
    add_mask = (1.0 - allowed) * -10000.0

    # self.bert_drop(sequence_output): nn.Dropout is identity in eval mode.
    # TODO(synk): training-mode dropout (rate 0.3) not implemented.
    logits = fused_forward(x_flat, add_mask,
                           params["wqkvo"], params["battn"], params["wffn"],
                           params["vecs"], params["qa_w_pad"], params["misc"])

    start_logits = logits[:, 0].reshape(B, S)   # == logits.split(1, dim=-1)[0].squeeze(-1)
    end_logits = logits[:, 1].reshape(B, S)     # == logits.split(1, dim=-1)[1].squeeze(-1)
    return start_logits, end_logits


# ---------------------------------------------------------------------------
if __name__ == "__main__":
    key = jax.random.PRNGKey(0)
    pkey, ikey = jax.random.split(key)
    params = init_params(pkey)

    input_ids = jax.random.randint(ikey, (B, S), 0, VOCAB, dtype=jnp.int32)
    token_type_ids = jnp.zeros((B, S), jnp.int32)
    attention_mask = jnp.ones((B, S), jnp.int32)

    start_logits, end_logits = parametric_bert_qa_forward(
        params, input_ids, token_type_ids, attention_mask)
    jax.block_until_ready((start_logits, end_logits))

    assert start_logits.shape == (B, S) and end_logits.shape == (B, S)
    assert start_logits.dtype == jnp.float32 and end_logits.dtype == jnp.float32
    assert bool(jnp.all(jnp.isfinite(start_logits))) and bool(jnp.all(jnp.isfinite(end_logits)))
    print("KERNEL_OK")
</pallas_src>

<mosaic_0001>
module attributes {stable_mosaic.version = 11 : i64} {
  func.func @fused_bert_qa_kernel(%arg0: i32, %arg1: memref<32x32xf32, #tpu.memory_space<vmem>>, %arg2: memref<32x32xf32, #tpu.memory_space<vmem>>, %arg3: memref<2x32x128xf32, #tpu.memory_space<vmem>>, %arg4: memref<2x1x128xf32, #tpu.memory_space<vmem>>, %arg5: memref<2x96x64xf32, #tpu.memory_space<vmem>>, %arg6: memref<2x2x128xf32, #tpu.memory_space<vmem>>, %arg7: memref<32x128xf32, #tpu.memory_space<vmem>>, %arg8: memref<2x128xf32, #tpu.memory_space<vmem>>, %arg9: memref<32x128xf32, #tpu.memory_space<vmem>>) attributes {dimension_semantics = [#tpu.dimension_semantics<arbitrary>], iteration_bounds = array<i64: 1>, scalar_prefetch = 0 : i64, scratch_operands = 0 : i64, tpu.core_type = #tpu.core_type<tc>, window_params = [{pipeline_mode = #tpu.pipeline_mode<synchronous>, transform_indices = @transform_0, window_bounds = array<i64: 32, 32>}, {pipeline_mode = #tpu.pipeline_mode<synchronous>, transform_indices = @transform_1, window_bounds = array<i64: 32, 32>}, {pipeline_mode = #tpu.pipeline_mode<synchronous>, transform_indices = @transform_2, window_bounds = array<i64: 2, 32, 128>}, {pipeline_mode = #tpu.pipeline_mode<synchronous>, transform_indices = @transform_3, window_bounds = array<i64: 2, 1, 128>}, {pipeline_mode = #tpu.pipeline_mode<synchronous>, transform_indices = @transform_4, window_bounds = array<i64: 2, 96, 64>}, {pipeline_mode = #tpu.pipeline_mode<synchronous>, transform_indices = @transform_5, window_bounds = array<i64: 2, 2, 128>}, {pipeline_mode = #tpu.pipeline_mode<synchronous>, transform_indices = @transform_6, window_bounds = array<i64: 32, 128>}, {pipeline_mode = #tpu.pipeline_mode<synchronous>, transform_indices = @transform_7, window_bounds = array<i64: 2, 128>}, {pipeline_mode = #tpu.pipeline_mode<synchronous>, transform_indices = @transform_8, window_bounds = array<i64: 32, 128>}]} {
    %c0 = arith.constant 0 : index
    %c0_0 = arith.constant 0 : index
    %0 = vector.load %arg8[%c0, %c0_0] : memref<2x128xf32, #tpu.memory_space<vmem>>, vector<1x32xf32>
    %c0_1 = arith.constant 0 : index
    %c32 = arith.constant 32 : index
    %1 = vector.load %arg8[%c0_1, %c32] : memref<2x128xf32, #tpu.memory_space<vmem>>, vector<1x32xf32>
    %c1 = arith.constant 1 : index
    %c0_2 = arith.constant 0 : index
    %2 = vector.load %arg8[%c1, %c0_2] : memref<2x128xf32, #tpu.memory_space<vmem>>, vector<1x128xf32>
    %c0_3 = arith.constant 0 : index
    %c0_4 = arith.constant 0 : index
    %3 = vector.load %arg2[%c0_3, %c0_4] : memref<32x32xf32, #tpu.memory_space<vmem>>, vector<32x32xf32>
    %c0_5 = arith.constant 0 : index
    %c0_6 = arith.constant 0 : index
    %4 = vector.load %arg1[%c0_5, %c0_6] : memref<32x32xf32, #tpu.memory_space<vmem>>, vector<32x32xf32>
    %cst = arith.constant dense<0.000000e+00> : vector<32xf32>
    %5 = vector.multi_reduction <add>, %4, %cst [1] : vector<32x32xf32> to vector<32xf32>
    %6 = vector.shape_cast %5 : vector<32xf32> to vector<32x1xf32>
    %cst_7 = arith.constant 3.200000e+01 : f32
    %7 = vector.broadcast %cst_7 : f32 to vector<32x1xf32>
    %8 = arith.divf %6, %7 : vector<32x1xf32>
    %9 = vector.broadcast %8 : vector<32x1xf32> to vector<32x32xf32>
    %10 = arith.subf %4, %9 : vector<32x32xf32>
    %11 = arith.mulf %10, %10 : vector<32x32xf32>
    %cst_8 = arith.constant dense<0.000000e+00> : vector<32xf32>
    %12 = vector.multi_reduction <add>, %11, %cst_8 [1] : vector<32x32xf32> to vector<32xf32>
    %13 = vector.shape_cast %12 : vector<32xf32> to vector<32x1xf32>
    %cst_9 = arith.constant 3.200000e+01 : f32
    %14 = vector.broadcast %cst_9 : f32 to vector<32x1xf32>
    %15 = arith.divf %13, %14 : vector<32x1xf32>
    %16 = vector.broadcast %8 : vector<32x1xf32> to vector<32x32xf32>
    %17 = arith.subf %4, %16 : vector<32x32xf32>
    %cst_10 = arith.constant 9.99999996E-13 : f32
    %18 = vector.broadcast %cst_10 : f32 to vector<32x1xf32>
    %19 = arith.addf %15, %18 : vector<32x1xf32>
    %20 = math.rsqrt %19 : vector<32x1xf32>
    %21 = vector.broadcast %20 : vector<32x1xf32> to vector<32x32xf32>
    %22 = arith.mulf %17, %21 : vector<32x32xf32>
    %23 = vector.broadcast %0 : vector<1x32xf32> to vector<32x32xf32>
    %24 = arith.mulf %22, %23 : vector<32x32xf32>
    %25 = vector.broadcast %1 : vector<1x32xf32> to vector<32x32xf32>
    %26 = arith.addf %24, %25 : vector<32x32xf32>
    %c0_11 = arith.constant 0 : index
    %c0_12 = arith.constant 0 : index
    %c0_13 = arith.constant 0 : index
    %27 = vector.load %arg3[%c0_11, %c0_12, %c0_13] : memref<2x32x128xf32, #tpu.memory_space<vmem>>, vector<1x32x128xf32>
    %28 = vector.shape_cast %27 : vector<1x32x128xf32> to vector<32x128xf32>
    %c0_14 = arith.constant 0 : index
    %c0_15 = arith.constant 0 : index
    %c0_16 = arith.constant 0 : index
    %29 = vector.load %arg4[%c0_14, %c0_15, %c0_16] : memref<2x1x128xf32, #tpu.memory_space<vmem>>, vector<1x1x128xf32>
    %30 = vector.shape_cast %29 : vector<1x1x128xf32> to vector<1x128xf32>
    %c0_17 = arith.constant 0 : index
    %c0_18 = arith.constant 0 : index
    %c0_19 = arith.constant 0 : index
    %31 = vector.load %arg6[%c0_17, %c0_18, %c0_19] : memref<2x2x128xf32, #tpu.memory_space<vmem>>, vector<1x2x128xf32>
    %32 = vector.shape_cast %31 : vector<1x2x128xf32> to vector<2x128xf32>
    %cst_20 = arith.constant dense<0.000000e+00> : vector<32x128xf32>
    %33 = tpu.matmul %26, %28, %cst_20 {dimension_numbers = #tpu.dot_dimension_numbers<[1], [0], [0], [1], [0, 0, 1, 1], [], []>} : vector<32x32xf32>, vector<32x128xf32>, vector<32x128xf32> -> vector<32x128xf32>
    %34 = vector.broadcast %30 : vector<1x128xf32> to vector<32x128xf32>
    %35 = arith.addf %33, %34 : vector<32x128xf32>
    %cst_21 = arith.constant 0.000000e+00 : f32
    %36 = vector.broadcast %cst_21 : f32 to vector<32x32xf32>
    %37 = vector.extract_strided_slice %35 {offsets = [0, 0], sizes = [32, 16], strides = [1, 1]} : vector<32x128xf32> to vector<32x16xf32>
    %38 = vector.extract_strided_slice %35 {offsets = [0, 32], sizes = [32, 16], strides = [1, 1]} : vector<32x128xf32> to vector<32x16xf32>
    %39 = vector.extract_strided_slice %35 {offsets = [0, 64], sizes = [32, 16], strides = [1, 1]} : vector<32x128xf32> to vector<32x16xf32>
    %cst_22 = arith.constant dense<0.000000e+00> : vector<32x32xf32>
    %40 = tpu.matmul %37, %38, %cst_22 {dimension_numbers = #tpu.dot_dimension_numbers<[1], [1], [0], [0], [0, 0, 1, 0], [], []>} : vector<32x16xf32>, vector<32x16xf32>, vector<32x32xf32> -> vector<32x32xf32>
    %41 = arith.addf %40, %3 : vector<32x32xf32>
    %cst_23 = arith.constant dense<0xFF800000> : vector<32xf32>
    %42 = vector.multi_reduction <maximumf>, %41, %cst_23 [1] : vector<32x32xf32> to vector<32xf32>
    %43 = vector.shape_cast %42 : vector<32xf32> to vector<32x1xf32>
    %44 = vector.broadcast %43 : vector<32x1xf32> to vector<32x32xf32>
    %45 = arith.subf %41, %44 : vector<32x32xf32>
    %46 = math.exp %45 : vector<32x32xf32>
    %cst_24 = arith.constant dense<0.000000e+00> : vector<32xf32>
    %47 = vector.multi_reduction <add>, %46, %cst_24 [1] : vector<32x32xf32> to vector<32xf32>
    %48 = vector.shape_cast %47 : vector<32xf32> to vector<32x1xf32>
    %49 = vector.broadcast %48 : vector<32x1xf32> to vector<32x32xf32>
    %50 = arith.divf %46, %49 : vector<32x32xf32>
    %cst_25 = arith.constant dense<0.000000e+00> : vector<32x16xf32>
    %51 = tpu.matmul %50, %39, %cst_25 {dimension_numbers = #tpu.dot_dimension_numbers<[1], [0], [0], [1], [0, 0, 1, 1], [], []>} : vector<32x32xf32>, vector<32x16xf32>, vector<32x16xf32> -> vector<32x16xf32>
    %52 = vector.extract_strided_slice %28 {offsets = [0, 96], sizes = [16, 32], strides = [1, 1]} : vector<32x128xf32> to vector<16x32xf32>
    %cst_26 = arith.constant dense<0.000000e+00> : vector<32x32xf32>
    %53 = tpu.matmul %51, %52, %cst_26 {dimension_numbers = #tpu.dot_dimension_numbers<[1], [0], [0], [1], [0, 0, 1, 1], [], []>} : vector<32x16xf32>, vector<16x32xf32>, vector<32x32xf32> -> vector<32x32xf32>
    %54 = arith.addf %36, %53 : vector<32x32xf32>
    %55 = vector.extract_strided_slice %35 {offsets = [0, 16], sizes = [32, 16], strides = [1, 1]} : vector<32x128xf32> to vector<32x16xf32>
    %56 = vector.extract_strided_slice %35 {offsets = [0, 48], sizes = [32, 16], strides = [1, 1]} : vector<32x128xf32> to vector<32x16xf32>
    %57 = vector.extract_strided_slice %35 {offsets = [0, 80], sizes = [32, 16], strides = [1, 1]} : vector<32x128xf32> to vector<32x16xf32>
    %cst_27 = arith.constant dense<0.000000e+00> : vector<32x32xf32>
    %58 = tpu.matmul %55, %56, %cst_27 {dimension_numbers = #tpu.dot_dimension_numbers<[1], [1], [0], [0], [0, 0, 1, 0], [], []>} : vector<32x16xf32>, vector<32x16xf32>, vector<32x32xf32> -> vector<32x32xf32>
    %59 = arith.addf %58, %3 : vector<32x32xf32>
    %cst_28 = arith.constant dense<0xFF800000> : vector<32xf32>
    %60 = vector.multi_reduction <maximumf>, %59, %cst_28 [1] : vector<32x32xf32> to vector<32xf32>
    %61 = vector.shape_cast %60 : vector<32xf32> to vector<32x1xf32>
    %62 = vector.broadcast %61 : vector<32x1xf32> to vector<32x32xf32>
    %63 = arith.subf %59, %62 : vector<32x32xf32>
    %64 = math.exp %63 : vector<32x32xf32>
    %cst_29 = arith.constant dense<0.000000e+00> : vector<32xf32>
    %65 = vector.multi_reduction <add>, %64, %cst_29 [1] : vector<32x32xf32> to vector<32xf32>
    %66 = vector.shape_cast %65 : vector<32xf32> to vector<32x1xf32>
    %67 = vector.broadcast %66 : vector<32x1xf32> to vector<32x32xf32>
    %68 = arith.divf %64, %67 : vector<32x32xf32>
    %cst_30 = arith.constant dense<0.000000e+00> : vector<32x16xf32>
    %69 = tpu.matmul %68, %57, %cst_30 {dimension_numbers = #tpu.dot_dimension_numbers<[1], [0], [0], [1], [0, 0, 1, 1], [], []>} : vector<32x32xf32>, vector<32x16xf32>, vector<32x16xf32> -> vector<32x16xf32>
    %70 = vector.extract_strided_slice %28 {offsets = [16, 96], sizes = [16, 32], strides = [1, 1]} : vector<32x128xf32> to vector<16x32xf32>
    %cst_31 = arith.constant dense<0.000000e+00> : vector<32x32xf32>
    %71 = tpu.matmul %69, %70, %cst_31 {dimension_numbers = #tpu.dot_dimension_numbers<[1], [0], [0], [1], [0, 0, 1, 1], [], []>} : vector<32x16xf32>, vector<16x32xf32>, vector<32x32xf32> -> vector<32x32xf32>
    %72 = arith.addf %54, %71 : vector<32x32xf32>
    %73 = vector.extract_strided_slice %30 {offsets = [0, 96], sizes = [1, 32], strides = [1, 1]} : vector<1x128xf32> to vector<1x32xf32>
    %74 = vector.broadcast %73 : vector<1x32xf32> to vector<32x32xf32>
    %75 = arith.addf %72, %74 : vector<32x32xf32>
    %76 = arith.addf %75, %26 : vector<32x32xf32>
    %77 = vector.extract_strided_slice %32 {offsets = [0, 0], sizes = [1, 32], strides = [1, 1]} : vector<2x128xf32> to vector<1x32xf32>
    %78 = vector.extract_strided_slice %32 {offsets = [0, 32], sizes = [1, 32], strides = [1, 1]} : vector<2x128xf32> to vector<1x32xf32>
    %cst_32 = arith.constant dense<0.000000e+00> : vector<32xf32>
    %79 = vector.multi_reduction <add>, %76, %cst_32 [1] : vector<32x32xf32> to vector<32xf32>
    %80 = vector.shape_cast %79 : vector<32xf32> to vector<32x1xf32>
    %cst_33 = arith.constant 3.200000e+01 : f32
    %81 = vector.broadcast %cst_33 : f32 to vector<32x1xf32>
    %82 = arith.divf %80, %81 : vector<32x1xf32>
    %83 = vector.broadcast %82 : vector<32x1xf32> to vector<32x32xf32>
    %84 = arith.subf %76, %83 : vector<32x32xf32>
    %85 = arith.mulf %84, %84 : vector<32x32xf32>
    %cst_34 = arith.constant dense<0.000000e+00> : vector<32xf32>
    %86 = vector.multi_reduction <add>, %85, %cst_34 [1] : vector<32x32xf32> to vector<32xf32>
    %87 = vector.shape_cast %86 : vector<32xf32> to vector<32x1xf32>
    %cst_35 = arith.constant 3.200000e+01 : f32
    %88 = vector.broadcast %cst_35 : f32 to vector<32x1xf32>
    %89 = arith.divf %87, %88 : vector<32x1xf32>
    %90 = vector.broadcast %82 : vector<32x1xf32> to vector<32x32xf32>
    %91 = arith.subf %76, %90 : vector<32x32xf32>
    %cst_36 = arith.constant 9.99999996E-13 : f32
    %92 = vector.broadcast %cst_36 : f32 to vector<32x1xf32>
    %93 = arith.addf %89, %92 : vector<32x1xf32>
    %94 = math.rsqrt %93 : vector<32x1xf32>
    %95 = vector.broadcast %94 : vector<32x1xf32> to vector<32x32xf32>
    %96 = arith.mulf %91, %95 : vector<32x32xf32>
    %97 = vector.broadcast %77 : vector<1x32xf32> to vector<32x32xf32>
    %98 = arith.mulf %96, %97 : vector<32x32xf32>
    %99 = vector.broadcast %78 : vector<1x32xf32> to vector<32x32xf32>
    %100 = arith.addf %98, %99 : vector<32x32xf32>
    %c0_37 = arith.constant 0 : index
    %c0_38 = arith.constant 0 : index
    %c0_39 = arith.constant 0 : index
    %101 = vector.load %arg5[%c0_37, %c0_38, %c0_39] : memref<2x96x64xf32, #tpu.memory_space<vmem>>, vector<1x32x64xf32>
    %102 = vector.shape_cast %101 : vector<1x32x64xf32> to vector<32x64xf32>
    %c0_40 = arith.constant 0 : index
    %c32_41 = arith.constant 32 : index
    %c0_42 = arith.constant 0 : index
    %103 = vector.load %arg5[%c0_40, %c32_41, %c0_42] : memref<2x96x64xf32, #tpu.memory_space<vmem>>, vector<1x64x32xf32>
    %104 = vector.shape_cast %103 : vector<1x64x32xf32> to vector<64x32xf32>
    %cst_43 = arith.constant dense<0.000000e+00> : vector<32x64xf32>
    %105 = tpu.matmul %100, %102, %cst_43 {dimension_numbers = #tpu.dot_dimension_numbers<[1], [0], [0], [1], [0, 0, 1, 1], [], []>} : vector<32x32xf32>, vector<32x64xf32>, vector<32x64xf32> -> vector<32x64xf32>
    %106 = vector.extract_strided_slice %32 {offsets = [1, 0], sizes = [1, 64], strides = [1, 1]} : vector<2x128xf32> to vector<1x64xf32>
    %107 = vector.broadcast %106 : vector<1x64xf32> to vector<32x64xf32>
    %108 = arith.addf %105, %107 : vector<32x64xf32>
    %109 = arith.mulf %108, %108 : vector<32x64xf32>
    %110 = arith.mulf %108, %109 : vector<32x64xf32>
    %cst_44 = arith.constant 4.471500e-02 : f32
    %111 = vector.broadcast %cst_44 : f32 to vector<32x64xf32>
    %112 = arith.mulf %111, %110 : vector<32x64xf32>
    %113 = arith.addf %108, %112 : vector<32x64xf32>
    %cst_45 = arith.constant 0.797884583 : f32
    %114 = vector.broadcast %cst_45 : f32 to vector<32x64xf32>
    %115 = arith.mulf %114, %113 : vector<32x64xf32>
    %116 = math.tanh %115 : vector<32x64xf32>
    %cst_46 = arith.constant 1.000000e+00 : f32
    %117 = vector.broadcast %cst_46 : f32 to vector<32x64xf32>
    %118 = arith.addf %117, %116 : vector<32x64xf32>
    %cst_47 = arith.constant 5.000000e-01 : f32
    %119 = vector.broadcast %cst_47 : f32 to vector<32x64xf32>
    %120 = arith.mulf %119, %118 : vector<32x64xf32>
    %121 = arith.mulf %108, %120 : vector<32x64xf32>
    %cst_48 = arith.constant dense<0.000000e+00> : vector<32x32xf32>
    %122 = tpu.matmul %121, %104, %cst_48 {dimension_numbers = #tpu.dot_dimension_numbers<[1], [0], [0], [1], [0, 0, 1, 1], [], []>} : vector<32x64xf32>, vector<64x32xf32>, vector<32x32xf32> -> vector<32x32xf32>
    %123 = vector.extract_strided_slice %32 {offsets = [1, 64], sizes = [1, 32], strides = [1, 1]} : vector<2x128xf32> to vector<1x32xf32>
    %124 = vector.broadcast %123 : vector<1x32xf32> to vector<32x32xf32>
    %125 = arith.addf %122, %124 : vector<32x32xf32>
    %126 = arith.addf %125, %100 : vector<32x32xf32>
    %127 = vector.extract_strided_slice %32 {offsets = [0, 64], sizes = [1, 32], strides = [1, 1]} : vector<2x128xf32> to vector<1x32xf32>
    %128 = vector.extract_strided_slice %32 {offsets = [0, 96], sizes = [1, 32], strides = [1, 1]} : vector<2x128xf32> to vector<1x32xf32>
    %cst_49 = arith.constant dense<0.000000e+00> : vector<32xf32>
    %129 = vector.multi_reduction <add>, %126, %cst_49 [1] : vector<32x32xf32> to vector<32xf32>
    %130 = vector.shape_cast %129 : vector<32xf32> to vector<32x1xf32>
    %cst_50 = arith.constant 3.200000e+01 : f32
    %131 = vector.broadcast %cst_50 : f32 to vector<32x1xf32>
    %132 = arith.divf %130, %131 : vector<32x1xf32>
    %133 = vector.broadcast %132 : vector<32x1xf32> to vector<32x32xf32>
    %134 = arith.subf %126, %133 : vector<32x32xf32>
    %135 = arith.mulf %134, %134 : vector<32x32xf32>
    %cst_51 = arith.constant dense<0.000000e+00> : vector<32xf32>
    %136 = vector.multi_reduction <add>, %135, %cst_51 [1] : vector<32x32xf32> to vector<32xf32>
    %137 = vector.shape_cast %136 : vector<32xf32> to vector<32x1xf32>
    %cst_52 = arith.constant 3.200000e+01 : f32
    %138 = vector.broadcast %cst_52 : f32 to vector<32x1xf32>
    %139 = arith.divf %137, %138 : vector<32x1xf32>
    %140 = vector.broadcast %132 : vector<32x1xf32> to vector<32x32xf32>
    %141 = arith.subf %126, %140 : vector<32x32xf32>
    %cst_53 = arith.constant 9.99999996E-13 : f32
    %142 = vector.broadcast %cst_53 : f32 to vector<32x1xf32>
    %143 = arith.addf %139, %142 : vector<32x1xf32>
    %144 = math.rsqrt %143 : vector<32x1xf32>
    %145 = vector.broadcast %144 : vector<32x1xf32> to vector<32x32xf32>
    %146 = arith.mulf %141, %145 : vector<32x32xf32>
    %147 = vector.broadcast %127 : vector<1x32xf32> to vector<32x32xf32>
    %148 = arith.mulf %146, %147 : vector<32x32xf32>
    %149 = vector.broadcast %128 : vector<1x32xf32> to vector<32x32xf32>
    %150 = arith.addf %148, %149 : vector<32x32xf32>
    %c1_54 = arith.constant 1 : index
    %c0_55 = arith.constant 0 : index
    %c0_56 = arith.constant 0 : index
    %151 = vector.load %arg3[%c1_54, %c0_55, %c0_56] : memref<2x32x128xf32, #tpu.memory_space<vmem>>, vector<1x32x128xf32>
    %152 = vector.shape_cast %151 : vector<1x32x128xf32> to vector<32x128xf32>
    %c1_57 = arith.constant 1 : index
    %c0_58 = arith.constant 0 : index
    %c0_59 = arith.constant 0 : index
    %153 = vector.load %arg4[%c1_57, %c0_58, %c0_59] : memref<2x1x128xf32, #tpu.memory_space<vmem>>, vector<1x1x128xf32>
    %154 = vector.shape_cast %153 : vector<1x1x128xf32> to vector<1x128xf32>
    %c1_60 = arith.constant 1 : index
    %c0_61 = arith.constant 0 : index
    %c0_62 = arith.constant 0 : index
    %155 = vector.load %arg6[%c1_60, %c0_61, %c0_62] : memref<2x2x128xf32, #tpu.memory_space<vmem>>, vector<1x2x128xf32>
    %156 = vector.shape_cast %155 : vector<1x2x128xf32> to vector<2x128xf32>
    %cst_63 = arith.constant dense<0.000000e+00> : vector<32x128xf32>
    %157 = tpu.matmul %150, %152, %cst_63 {dimension_numbers = #tpu.dot_dimension_numbers<[1], [0], [0], [1], [0, 0, 1, 1], [], []>} : vector<32x32xf32>, vector<32x128xf32>, vector<32x128xf32> -> vector<32x128xf32>
    %158 = vector.broadcast %154 : vector<1x128xf32> to vector<32x128xf32>
    %159 = arith.addf %157, %158 : vector<32x128xf32>
    %cst_64 = arith.constant 0.000000e+00 : f32
    %160 = vector.broadcast %cst_64 : f32 to vector<32x32xf32>
    %161 = vector.extract_strided_slice %159 {offsets = [0, 0], sizes = [32, 16], strides = [1, 1]} : vector<32x128xf32> to vector<32x16xf32>
    %162 = vector.extract_strided_slice %159 {offsets = [0, 32], sizes = [32, 16], strides = [1, 1]} : vector<32x128xf32> to vector<32x16xf32>
    %163 = vector.extract_strided_slice %159 {offsets = [0, 64], sizes = [32, 16], strides = [1, 1]} : vector<32x128xf32> to vector<32x16xf32>
    %cst_65 = arith.constant dense<0.000000e+00> : vector<32x32xf32>
    %164 = tpu.matmul %161, %162, %cst_65 {dimension_numbers = #tpu.dot_dimension_numbers<[1], [1], [0], [0], [0, 0, 1, 0], [], []>} : vector<32x16xf32>, vector<32x16xf32>, vector<32x32xf32> -> vector<32x32xf32>
    %165 = arith.addf %164, %3 : vector<32x32xf32>
    %cst_66 = arith.constant dense<0xFF800000> : vector<32xf32>
    %166 = vector.multi_reduction <maximumf>, %165, %cst_66 [1] : vector<32x32xf32> to vector<32xf32>
    %167 = vector.shape_cast %166 : vector<32xf32> to vector<32x1xf32>
    %168 = vector.broadcast %167 : vector<32x1xf32> to vector<32x32xf32>
    %169 = arith.subf %165, %168 : vector<32x32xf32>
    %170 = math.exp %169 : vector<32x32xf32>
    %cst_67 = arith.constant dense<0.000000e+00> : vector<32xf32>
    %171 = vector.multi_reduction <add>, %170, %cst_67 [1] : vector<32x32xf32> to vector<32xf32>
    %172 = vector.shape_cast %171 : vector<32xf32> to vector<32x1xf32>
    %173 = vector.broadcast %172 : vector<32x1xf32> to vector<32x32xf32>
    %174 = arith.divf %170, %173 : vector<32x32xf32>
    %cst_68 = arith.constant dense<0.000000e+00> : vector<32x16xf32>
    %175 = tpu.matmul %174, %163, %cst_68 {dimension_numbers = #tpu.dot_dimension_numbers<[1], [0], [0], [1], [0, 0, 1, 1], [], []>} : vector<32x32xf32>, vector<32x16xf32>, vector<32x16xf32> -> vector<32x16xf32>
    %176 = vector.extract_strided_slice %152 {offsets = [0, 96], sizes = [16, 32], strides = [1, 1]} : vector<32x128xf32> to vector<16x32xf32>
    %cst_69 = arith.constant dense<0.000000e+00> : vector<32x32xf32>
    %177 = tpu.matmul %175, %176, %cst_69 {dimension_numbers = #tpu.dot_dimension_numbers<[1], [0], [0], [1], [0, 0, 1, 1], [], []>} : vector<32x16xf32>, vector<16x32xf32>, vector<32x32xf32> -> vector<32x32xf32>
    %178 = arith.addf %160, %177 : vector<32x32xf32>
    %179 = vector.extract_strided_slice %159 {offsets = [0, 16], sizes = [32, 16], strides = [1, 1]} : vector<32x128xf32> to vector<32x16xf32>
    %180 = vector.extract_strided_slice %159 {offsets = [0, 48], sizes = [32, 16], strides = [1, 1]} : vector<32x128xf32> to vector<32x16xf32>
    %181 = vector.extract_strided_slice %159 {offsets = [0, 80], sizes = [32, 16], strides = [1, 1]} : vector<32x128xf32> to vector<32x16xf32>
    %cst_70 = arith.constant dense<0.000000e+00> : vector<32x32xf32>
    %182 = tpu.matmul %179, %180, %cst_70 {dimension_numbers = #tpu.dot_dimension_numbers<[1], [1], [0], [0], [0, 0, 1, 0], [], []>} : vector<32x16xf32>, vector<32x16xf32>, vector<32x32xf32> -> vector<32x32xf32>
    %183 = arith.addf %182, %3 : vector<32x32xf32>
    %cst_71 = arith.constant dense<0xFF800000> : vector<32xf32>
    %184 = vector.multi_reduction <maximumf>, %183, %cst_71 [1] : vector<32x32xf32> to vector<32xf32>
    %185 = vector.shape_cast %184 : vector<32xf32> to vector<32x1xf32>
    %186 = vector.broadcast %185 : vector<32x1xf32> to vector<32x32xf32>
    %187 = arith.subf %183, %186 : vector<32x32xf32>
    %188 = math.exp %187 : vector<32x32xf32>
    %cst_72 = arith.constant dense<0.000000e+00> : vector<32xf32>
    %189 = vector.multi_reduction <add>, %188, %cst_72 [1] : vector<32x32xf32> to vector<32xf32>
    %190 = vector.shape_cast %189 : vector<32xf32> to vector<32x1xf32>
    %191 = vector.broadcast %190 : vector<32x1xf32> to vector<32x32xf32>
    %192 = arith.divf %188, %191 : vector<32x32xf32>
    %cst_73 = arith.constant dense<0.000000e+00> : vector<32x16xf32>
    %193 = tpu.matmul %192, %181, %cst_73 {dimension_numbers = #tpu.dot_dimension_numbers<[1], [0], [0], [1], [0, 0, 1, 1], [], []>} : vector<32x32xf32>, vector<32x16xf32>, vector<32x16xf32> -> vector<32x16xf32>
    %194 = vector.extract_strided_slice %152 {offsets = [16, 96], sizes = [16, 32], strides = [1, 1]} : vector<32x128xf32> to vector<16x32xf32>
    %cst_74 = arith.constant dense<0.000000e+00> : vector<32x32xf32>
    %195 = tpu.matmul %193, %194, %cst_74 {dimension_numbers = #tpu.dot_dimension_numbers<[1], [0], [0], [1], [0, 0, 1, 1], [], []>} : vector<32x16xf32>, vector<16x32xf32>, vector<32x32xf32> -> vector<32x32xf32>
    %196 = arith.addf %178, %195 : vector<32x32xf32>
    %197 = vector.extract_strided_slice %154 {offsets = [0, 96], sizes = [1, 32], strides = [1, 1]} : vector<1x128xf32> to vector<1x32xf32>
    %198 = vector.broadcast %197 : vector<1x32xf32> to vector<32x32xf32>
    %199 = arith.addf %196, %198 : vector<32x32xf32>
    %200 = arith.addf %199, %150 : vector<32x32xf32>
    %201 = vector.extract_strided_slice %156 {offsets = [0, 0], sizes = [1, 32], strides = [1, 1]} : vector<2x128xf32> to vector<1x32xf32>
    %202 = vector.extract_strided_slice %156 {offsets = [0, 32], sizes = [1, 32], strides = [1, 1]} : vector<2x128xf32> to vector<1x32xf32>
    %cst_75 = arith.constant dense<0.000000e+00> : vector<32xf32>
    %203 = vector.multi_reduction <add>, %200, %cst_75 [1] : vector<32x32xf32> to vector<32xf32>
    %204 = vector.shape_cast %203 : vector<32xf32> to vector<32x1xf32>
    %cst_76 = arith.constant 3.200000e+01 : f32
    %205 = vector.broadcast %cst_76 : f32 to vector<32x1xf32>
    %206 = arith.divf %204, %205 : vector<32x1xf32>
    %207 = vector.broadcast %206 : vector<32x1xf32> to vector<32x32xf32>
    %208 = arith.subf %200, %207 : vector<32x32xf32>
    %209 = arith.mulf %208, %208 : vector<32x32xf32>
    %cst_77 = arith.constant dense<0.000000e+00> : vector<32xf32>
    %210 = vector.multi_reduction <add>, %209, %cst_77 [1] : vector<32x32xf32> to vector<32xf32>
    %211 = vector.shape_cast %210 : vector<32xf32> to vector<32x1xf32>
    %cst_78 = arith.constant 3.200000e+01 : f32
    %212 = vector.broadcast %cst_78 : f32 to vector<32x1xf32>
    %213 = arith.divf %211, %212 : vector<32x1xf32>
    %214 = vector.broadcast %206 : vector<32x1xf32> to vector<32x32xf32>
    %215 = arith.subf %200, %214 : vector<32x32xf32>
    %cst_79 = arith.constant 9.99999996E-13 : f32
    %216 = vector.broadcast %cst_79 : f32 to vector<32x1xf32>
    %217 = arith.addf %213, %216 : vector<32x1xf32>
    %218 = math.rsqrt %217 : vector<32x1xf32>
    %219 = vector.broadcast %218 : vector<32x1xf32> to vector<32x32xf32>
    %220 = arith.mulf %215, %219 : vector<32x32xf32>
    %221 = vector.broadcast %201 : vector<1x32xf32> to vector<32x32xf32>
    %222 = arith.mulf %220, %221 : vector<32x32xf32>
    %223 = vector.broadcast %202 : vector<1x32xf32> to vector<32x32xf32>
    %224 = arith.addf %222, %223 : vector<32x32xf32>
    %c1_80 = arith.constant 1 : index
    %c0_81 = arith.constant 0 : index
    %c0_82 = arith.constant 0 : index
    %225 = vector.load %arg5[%c1_80, %c0_81, %c0_82] : memref<2x96x64xf32, #tpu.memory_space<vmem>>, vector<1x32x64xf32>
    %226 = vector.shape_cast %225 : vector<1x32x64xf32> to vector<32x64xf32>
    %c1_83 = arith.constant 1 : index
    %c32_84 = arith.constant 32 : index
    %c0_85 = arith.constant 0 : index
    %227 = vector.load %arg5[%c1_83, %c32_84, %c0_85] : memref<2x96x64xf32, #tpu.memory_space<vmem>>, vector<1x64x32xf32>
    %228 = vector.shape_cast %227 : vector<1x64x32xf32> to vector<64x32xf32>
    %cst_86 = arith.constant dense<0.000000e+00> : vector<32x64xf32>
    %229 = tpu.matmul %224, %226, %cst_86 {dimension_numbers = #tpu.dot_dimension_numbers<[1], [0], [0], [1], [0, 0, 1, 1], [], []>} : vector<32x32xf32>, vector<32x64xf32>, vector<32x64xf32> -> vector<32x64xf32>
    %230 = vector.extract_strided_slice %156 {offsets = [1, 0], sizes = [1, 64], strides = [1, 1]} : vector<2x128xf32> to vector<1x64xf32>
    %231 = vector.broadcast %230 : vector<1x64xf32> to vector<32x64xf32>
    %232 = arith.addf %229, %231 : vector<32x64xf32>
    %233 = arith.mulf %232, %232 : vector<32x64xf32>
    %234 = arith.mulf %232, %233 : vector<32x64xf32>
    %cst_87 = arith.constant 4.471500e-02 : f32
    %235 = vector.broadcast %cst_87 : f32 to vector<32x64xf32>
    %236 = arith.mulf %235, %234 : vector<32x64xf32>
    %237 = arith.addf %232, %236 : vector<32x64xf32>
    %cst_88 = arith.constant 0.797884583 : f32
    %238 = vector.broadcast %cst_88 : f32 to vector<32x64xf32>
    %239 = arith.mulf %238, %237 : vector<32x64xf32>
    %240 = math.tanh %239 : vector<32x64xf32>
    %cst_89 = arith.constant 1.000000e+00 : f32
    %241 = vector.broadcast %cst_89 : f32 to vector<32x64xf32>
    %242 = arith.addf %241, %240 : vector<32x64xf32>
    %cst_90 = arith.constant 5.000000e-01 : f32
    %243 = vector.broadcast %cst_90 : f32 to vector<32x64xf32>
    %244 = arith.mulf %243, %242 : vector<32x64xf32>
    %245 = arith.mulf %232, %244 : vector<32x64xf32>
    %cst_91 = arith.constant dense<0.000000e+00> : vector<32x32xf32>
    %246 = tpu.matmul %245, %228, %cst_91 {dimension_numbers = #tpu.dot_dimension_numbers<[1], [0], [0], [1], [0, 0, 1, 1], [], []>} : vector<32x64xf32>, vector<64x32xf32>, vector<32x32xf32> -> vector<32x32xf32>
    %247 = vector.extract_strided_slice %156 {offsets = [1, 64], sizes = [1, 32], strides = [1, 1]} : vector<2x128xf32> to vector<1x32xf32>
    %248 = vector.broadcast %247 : vector<1x32xf32> to vector<32x32xf32>
    %249 = arith.addf %246, %248 : vector<32x32xf32>
    %250 = arith.addf %249, %224 : vector<32x32xf32>
    %251 = vector.extract_strided_slice %156 {offsets = [0, 64], sizes = [1, 32], strides = [1, 1]} : vector<2x128xf32> to vector<1x32xf32>
    %252 = vector.extract_strided_slice %156 {offsets = [0, 96], sizes = [1, 32], strides = [1, 1]} : vector<2x128xf32> to vector<1x32xf32>
    %cst_92 = arith.constant dense<0.000000e+00> : vector<32xf32>
    %253 = vector.multi_reduction <add>, %250, %cst_92 [1] : vector<32x32xf32> to vector<32xf32>
    %254 = vector.shape_cast %253 : vector<32xf32> to vector<32x1xf32>
    %cst_93 = arith.constant 3.200000e+01 : f32
    %255 = vector.broadcast %cst_93 : f32 to vector<32x1xf32>
    %256 = arith.divf %254, %255 : vector<32x1xf32>
    %257 = vector.broadcast %256 : vector<32x1xf32> to vector<32x32xf32>
    %258 = arith.subf %250, %257 : vector<32x32xf32>
    %259 = arith.mulf %258, %258 : vector<32x32xf32>
    %cst_94 = arith.constant dense<0.000000e+00> : vector<32xf32>
    %260 = vector.multi_reduction <add>, %259, %cst_94 [1] : vector<32x32xf32> to vector<32xf32>
    %261 = vector.shape_cast %260 : vector<32xf32> to vector<32x1xf32>
    %cst_95 = arith.constant 3.200000e+01 : f32
    %262 = vector.broadcast %cst_95 : f32 to vector<32x1xf32>
    %263 = arith.divf %261, %262 : vector<32x1xf32>
    %264 = vector.broadcast %256 : vector<32x1xf32> to vector<32x32xf32>
    %265 = arith.subf %250, %264 : vector<32x32xf32>
    %cst_96 = arith.constant 9.99999996E-13 : f32
    %266 = vector.broadcast %cst_96 : f32 to vector<32x1xf32>
    %267 = arith.addf %263, %266 : vector<32x1xf32>
    %268 = math.rsqrt %267 : vector<32x1xf32>
    %269 = vector.broadcast %268 : vector<32x1xf32> to vector<32x32xf32>
    %270 = arith.mulf %265, %269 : vector<32x32xf32>
    %271 = vector.broadcast %251 : vector<1x32xf32> to vector<32x32xf32>
    %272 = arith.mulf %270, %271 : vector<32x32xf32>
    %273 = vector.broadcast %252 : vector<1x32xf32> to vector<32x32xf32>
    %274 = arith.addf %272, %273 : vector<32x32xf32>
    %c0_97 = arith.constant 0 : index
    %c0_98 = arith.constant 0 : index
    %275 = vector.load %arg7[%c0_97, %c0_98] : memref<32x128xf32, #tpu.memory_space<vmem>>, vector<32x128xf32>
    %cst_99 = arith.constant dense<0.000000e+00> : vector<32x128xf32>
    %276 = tpu.matmul %274, %275, %cst_99 {dimension_numbers = #tpu.dot_dimension_numbers<[1], [0], [0], [1], [0, 0, 1, 1], [], []>} : vector<32x32xf32>, vector<32x128xf32>, vector<32x128xf32> -> vector<32x128xf32>
    %277 = vector.broadcast %2 : vector<1x128xf32> to vector<32x128xf32>
    %278 = arith.addf %276, %277 : vector<32x128xf32>
    %c0_100 = arith.constant 0 : index
    %c0_101 = arith.constant 0 : index
    %279 = vector.load %arg9[%c0_100, %c0_101] : memref<32x128xf32, #tpu.memory_space<vmem>>, vector<32x128xf32>
    tpu.vector_store %arg9[%c0_100, %c0_101], %278 {strides = array<i32>} : memref<32x128xf32, #tpu.memory_space<vmem>>, vector<32x128xf32>,
    return
  }
  func.func @transform_0(%arg0: i32) -> (i32, i32) {
    %c0_i32 = arith.constant 0 : i32
    %c0_i32_0 = arith.constant 0 : i32
    %c0_i32_1 = arith.constant 0 : i32
    return %c0_i32, %c0_i32_0 : i32, i32
  }
  func.func @transform_1(%arg0: i32) -> (i32, i32) {
    %c0_i32 = arith.constant 0 : i32
    %c0_i32_0 = arith.constant 0 : i32
    %c0_i32_1 = arith.constant 0 : i32
    return %c0_i32, %c0_i32_0 : i32, i32
  }
  func.func @transform_2(%arg0: i32) -> (i32, i32, i32) {
    %c0_i32 = arith.constant 0 : i32
    %c0_i32_0 = arith.constant 0 : i32
    %c0_i32_1 = arith.constant 0 : i32
    %c0_i32_2 = arith.constant 0 : i32
    return %c0_i32, %c0_i32_0, %c0_i32_1 : i32, i32, i32
  }
  func.func @transform_3(%arg0: i32) -> (i32, i32, i32) {
    %c0_i32 = arith.constant 0 : i32
    %c0_i32_0 = arith.constant 0 : i32
    %c0_i32_1 = arith.constant 0 : i32
    %c0_i32_2 = arith.constant 0 : i32
    return %c0_i32, %c0_i32_0, %c0_i32_1 : i32, i32, i32
  }
  func.func @transform_4(%arg0: i32) -> (i32, i32, i32) {
    %c0_i32 = arith.constant 0 : i32
    %c0_i32_0 = arith.constant 0 : i32
    %c0_i32_1 = arith.constant 0 : i32
    %c0_i32_2 = arith.constant 0 : i32
    return %c0_i32, %c0_i32_0, %c0_i32_1 : i32, i32, i32
  }
  func.func @transform_5(%arg0: i32) -> (i32, i32, i32) {
    %c0_i32 = arith.constant 0 : i32
    %c0_i32_0 = arith.constant 0 : i32
    %c0_i32_1 = arith.constant 0 : i32
    %c0_i32_2 = arith.constant 0 : i32
    return %c0_i32, %c0_i32_0, %c0_i32_1 : i32, i32, i32
  }
  func.func @transform_6(%arg0: i32) -> (i32, i32) {
    %c0_i32 = arith.constant 0 : i32
    %c0_i32_0 = arith.constant 0 : i32
    %c0_i32_1 = arith.constant 0 : i32
    return %c0_i32, %c0_i32_0 : i32, i32
  }
  func.func @transform_7(%arg0: i32) -> (i32, i32) {
    %c0_i32 = arith.constant 0 : i32
    %c0_i32_0 = arith.constant 0 : i32
    %c0_i32_1 = arith.constant 0 : i32
    return %c0_i32, %c0_i32_0 : i32, i32
  }
  func.func @transform_8(%arg0: i32) -> (i32, i32) {
    %c0_i32 = arith.constant 0 : i32
    %c0_i32_0 = arith.constant 0 : i32
    %c0_i32_1 = arith.constant 0 : i32
    return %c0_i32, %c0_i32_0 : i32, i32
  }
}

</mosaic_0001>

<llo_original>
// kernel: fused_forward.1
$region0: #{fused_forward.1}
  #allocation0 [shape = 'u32[]', space=smem, size = 0x4, offset = 0x4, fixed_abs, tag = 'smem constant byte address 0x4 - core index']
  #allocation1 [shape = 'u32[144,128]{1,0:T(1,128)}', space=vmem, size = 0x12000, scoped, tag = 'internal scratch']
  %s0 = inlined_call_operand.vmem [shape: f32[32,32], index: 0, kind: input, shape index: {}]
  %s1 = inlined_call_operand.vmem [shape: f32[32,32], index: 1, kind: input, shape index: {}]
  %s2 = inlined_call_operand.vmem [shape: f32[2,32,128], index: 2, kind: input, shape index: {}]
  %s3 = inlined_call_operand.vmem [shape: f32[2,1,128], index: 3, kind: input, shape index: {}]
  %s4 = inlined_call_operand.vmem [shape: f32[2,96,64], index: 4, kind: input, shape index: {}]
  %s5 = inlined_call_operand.vmem [shape: f32[2,2,128], index: 5, kind: input, shape index: {}]
  %s6 = inlined_call_operand.vmem [shape: f32[32,128], index: 6, kind: input, shape index: {}]
  %s7 = inlined_call_operand.vmem [shape: f32[2,128], index: 7, kind: input, shape index: {}]
  %s8 = inlined_call_operand.hbm [shape: f32[32,128], index: 8, kind: output, shape index: {}]
  %s9 = sld [smem:[#allocation0]]
  $region42: #{fused_forward.1} parent=0
    _
  %s11 = ssub.s32 1, %s9
  %s12 = scalar_select 0, %s11, %s9
  $region1: #{fused_forward.1} parent=0
    #allocation2 [shape = 'u8[16384]{0}', space=vmem, size = 0x4000, scoped, tag = 'output window, operand 0, single buffered']
    #allocation3 [shape = 's32[1]{0}', space=sflag, size = 0x4, scoped, tag = 'scoped memory for fused_forward.1']
    %13 = vsyncpa [#allocation3], 0
    // Predicated region
    $region2: #{fused_forward.1} parent=1 // pred_check
      _
    $region3: #{fused_forward.1} parent=1 // pred_check_branch
      %15 = sbr.rel (0) target = $region5
    $region4: #{fused_forward.1} parent=1 // pred_region
      _
    $region5: #{fused_forward.1} parent=1 // pred_fallthru
      _
    // Predicated region
    $region6: #{fused_forward.1} parent=1 // pred_check
      _
    $region7: #{fused_forward.1} parent=1 // pred_check_branch
      %17 = sbr.rel (0) target = $region9
    $region8: #{fused_forward.1} parent=1 // pred_region
      _
    $region9: #{fused_forward.1} parent=1 // pred_fallthru
      _
    // Predicated region
    $region10: #{fused_forward.1} parent=1 // pred_check
      _
    $region11: #{fused_forward.1} parent=1 // pred_check_branch
      %19 = sbr.rel (0) target = $region13
    $region12: #{fused_forward.1} parent=1 // pred_region
      _
    $region13: #{fused_forward.1} parent=1 // pred_fallthru
      _
    // Predicated region
    $region14: #{fused_forward.1} parent=1 // pred_check
      _
    $region15: #{fused_forward.1} parent=1 // pred_check_branch
      %21 = sbr.rel (0) target = $region17
    $region16: #{fused_forward.1} parent=1 // pred_region
      _
    $region17: #{fused_forward.1} parent=1 // pred_fallthru
      _
    // Predicated region
    $region18: #{fused_forward.1} parent=1 // pred_check
      _
    $region19: #{fused_forward.1} parent=1 // pred_check_branch
      %23 = sbr.rel (0) target = $region21
    $region20: #{fused_forward.1} parent=1 // pred_region
      _
    $region21: #{fused_forward.1} parent=1 // pred_fallthru
      _
    // Predicated region
    $region22: #{fused_forward.1} parent=1 // pred_check
      _
    $region23: #{fused_forward.1} parent=1 // pred_check_branch
      %25 = sbr.rel (0) target = $region25
    $region24: #{fused_forward.1} parent=1 // pred_region
      _
    $region25: #{fused_forward.1} parent=1 // pred_fallthru
      _
    // Predicated region
    $region26: #{fused_forward.1} parent=1 // pred_check
      _
    $region27: #{fused_forward.1} parent=1 // pred_check_branch
      %27 = sbr.rel (0) target = $region29
    $region28: #{fused_forward.1} parent=1 // pred_region
      _
    $region29: #{fused_forward.1} parent=1 // pred_fallthru
      _
    // Predicated region
    $region30: #{fused_forward.1} parent=1 // pred_check
      _
    $region31: #{fused_forward.1} parent=1 // pred_check_branch
      %29 = sbr.rel (0) target = $region33
    $region32: #{fused_forward.1} parent=1 // pred_region
      _
    $region33: #{fused_forward.1} parent=1 // pred_fallthru
      _
    %v30 = vld [vmem:[%s7] sm:$0x1]
    %v31 = vld [vmem:[%s7 + $0x1] sm:$0x1]
    %v32 = vld [vmem:[%s1] sm:$0xff]
    %v33 = vld [vmem:[%s1 + $0x8] sm:$0xff]
    %v34 = vld [vmem:[%s1 + $0x10] sm:$0xff]
    %v35 = vld [vmem:[%s1 + $0x18] sm:$0xff]
    %v36 = vld [vmem:[%s0] sm:$0xff]
    %v37 = vld [vmem:[%s0 + $0x8] sm:$0xff]
    %v38 = vld [vmem:[%s0 + $0x10] sm:$0xff]
    %v39 = vld [vmem:[%s0 + $0x18] sm:$0xff]
    %vm40 = vcmask 261120
    %v41 = vsel %vm40, %v36, 0.0
    %42 = vadd.xlane.f32.xlu0 %v41
    %v43 = vpop.xlane.xlu0 %42
    %v44 = vsel %vm40, %v37, 0.0
    %45 = vadd.xlane.f32.xlu0 %v44
    %v46 = vpop.xlane.xlu0 %45
    %v47 = vsel %vm40, %v38, 0.0
    %48 = vadd.xlane.f32.xlu0 %v47
    %v49 = vpop.xlane.xlu0 %48
    %v50 = vsel %vm40, %v39, 0.0
    %51 = vadd.xlane.f32.xlu0 %v50
    %v52 = vpop.xlane.xlu0 %51
    %v53 = vrcp.pop 32.0
    %v54 = vmul.f32 %v43, %v53
    %v55 = vmul.f32 %v46, %v53
    %v56 = vmul.f32 %v49, %v53
    %v57 = vmul.f32 %v52, %v53
    %v58 = vsub.f32 %v36, %v54
    %v59 = vsub.f32 %v37, %v55
    %v60 = vsub.f32 %v38, %v56
    %v61 = vsub.f32 %v39, %v57
    %v62 = vmul.f32 %v58, %v58
    %v63 = vmul.f32 %v59, %v59
    %v64 = vmul.f32 %v60, %v60
    %v65 = vmul.f32 %v61, %v61
    %v66 = vsel %vm40, %v62, 0.0
    %67 = vadd.xlane.f32.xlu0 %v66
    %v68 = vpop.xlane.xlu0 %67
    %v69 = vsel %vm40, %v63, 0.0
    %70 = vadd.xlane.f32.xlu0 %v69
    %v71 = vpop.xlane.xlu0 %70
    %v72 = vsel %vm40, %v64, 0.0
    %73 = vadd.xlane.f32.xlu0 %v72
    %v74 = vpop.xlane.xlu0 %73
    %v75 = vsel %vm40, %v65, 0.0
    %76 = vadd.xlane.f32.xlu0 %v75
    %v77 = vpop.xlane.xlu0 %76
    %v78 = vmul.f32 %v68, %v53
    %v79 = vmul.f32 %v71, %v53
    %v80 = vmul.f32 %v74, %v53
    %v81 = vmul.f32 %v77, %v53
    %v82 = vadd.f32 %v78, 1e-12
    %v83 = vadd.f32 %v79, 1e-12
    %v84 = vadd.f32 %v80, 1e-12
    %v85 = vadd.f32 %v81, 1e-12
    %v86 = vrsqrt.pop %v82
    %v87 = vrsqrt.pop %v83
    %v88 = vrsqrt.pop %v84
    %v89 = vrsqrt.pop %v85
    %v90 = vmul.f32 %v58, %v86
    %v91 = vmul.f32 %v59, %v87
    %v92 = vmul.f32 %v60, %v88
    %v93 = vmul.f32 %v61, %v89
    %v94 = vlaneseq
    %v95 = vshrl.u32 %v94, 7
    %v96 = vsub.s32 0, %v95
    %v97 = vrot.slane %v30, %v96
    %v98 = vmul.f32 %v90, %v97
    %v99 = vmul.f32 %v91, %v97
    %v100 = vmul.f32 %v92, %v97
    %v101 = vmul.f32 %v93, %v97
    %103 = vrot.lane.b32.xlu0 %v97, 96
    %v104 = vpop.permute.xlu0 %103
    %v106 = vadd.f32 %v98, %v104
    %v107 = vadd.f32 %v99, %v104
    %v108 = vadd.f32 %v100, %v104
    %v109 = vadd.f32 %v101, %v104
    %v110 = vld [vmem:[%s2] sm:$0xff]
    %v111 = vld [vmem:[%s2 + $0x8] sm:$0xff]
    %v112 = vld [vmem:[%s2 + $0x10] sm:$0xff]
    %v113 = vld [vmem:[%s2 + $0x18] sm:$0xff]
    %v114 = vld [vmem:[%s3] sm:$0x1]
    %v115 = vld [vmem:[%s5] sm:$0x3]
    %v117 = vlaneseq
    %v118 = vshrl.u32 %v117, 7
    %v119 = vsub.s32 0, %v118
    %v120 = vrot.slane %v114, %v119
    %v123 = vsel %vm40, %v106, 0
    %v126 = vsel %vm40, %v107, 0
    %v129 = vsel %vm40, %v108, 0
    %v132 = vsel %vm40, %v109, 0
    %134 = vmatprep.subr.mxu0 0.0
    %135 = vmatpush1.msra.mxu0 %v110
    %136 = vmatprep.subr.mxu0 0.0
    %137 = vmatpush1.msra.mxu0 %v111
    %138 = vmatprep.subr.mxu0 0.0
    %139 = vmatpush1.msra.mxu0 %v112
    %140 = vmatprep.subr.mxu0 0.0
    %141 = vmatpush1.msra.mxu0 %v113
    %142 = vmatprep.subr.mxu0 0.0
    %143 = vmatpush1.msra.mxu0 0.0
    %144 = vmatprep.subr.mxu0 0.0
    %145 = vmatpush1.msra.mxu0 0.0
    %146 = vmatprep.subr.mxu0 0.0
    %147 = vmatpush1.msra.mxu0 0.0
    %148 = vmatprep.subr.mxu0 0.0
    %149 = vmatpush1.msra.mxu0 0.0
    %150 = vmatprep.subr.mxu0 0.0
    %151 = vmatpush1.msra.mxu0 0.0
    %152 = vmatprep.subr.mxu0 0.0
    %153 = vmatpush1.msra.mxu0 0.0
    %154 = vmatprep.subr.mxu0 0.0
    %155 = vmatpush1.msra.mxu0 0.0
    %156 = vmatprep.subr.mxu0 0.0
    %157 = vmatpush1.msra.mxu0 0.0
    %158 = vmatprep.subr.mxu0 0.0
    %159 = vmatpush1.msra.mxu0 0.0
    %160 = vmatprep.subr.mxu0 0.0
    %161 = vmatpush1.msra.mxu0 0.0
    %162 = vmatprep.subr.mxu0 0.0
    %163 = vmatpush1.msra.mxu0 0.0
    %164 = vmatprep.subr.mxu0 0.0
    %165 = vmatpush1.msra.mxu0 0.0
    %166 = vmatprep.subr.mxu0 0.0
    %167 = vmatpush1.msra.mxu0 0.0
    %168 = vmatprep.subr.mxu0 0.0
    %169 = vmatpush1.msra.mxu0 0.0
    %170 = vmatprep.subr.mxu0 0.0
    %171 = vmatpush1.msra.mxu0 0.0
    %172 = vmatprep.subr.mxu0 0.0
    %173 = vmatpush1.msra.mxu0 0.0
    %174 = vmatprep.subr.mxu0 0.0
    %175 = vmatpush1.msra.mxu0 0.0
    %176 = vmatprep.subr.mxu0 0.0
    %177 = vmatpush1.msra.mxu0 0.0
    %178 = vmatprep.subr.mxu0 0.0
    %179 = vmatpush1.msra.mxu0 0.0
    %180 = vmatprep.subr.mxu0 0.0
    %181 = vmatpush1.msra.mxu0 0.0
    %182 = vmatprep.subr.mxu0 0.0
    %183 = vmatpush1.msra.mxu0 0.0
    %184 = vmatprep.subr.mxu0 0.0
    %185 = vmatpush1.msra.mxu0 0.0
    %186 = vmatprep.subr.mxu0 0.0
    %187 = vmatpush1.msra.mxu0 0.0
    %188 = vmatprep.subr.mxu0 0.0
    %189 = vmatpush1.msra.mxu0 0.0
    %190 = vmatprep.subr.mxu0 0.0
    %191 = vmatpush1.msra.mxu0 0.0
    %192 = vmatprep.subr.mxu0 0.0
    %193 = vmatpush1.msra.mxu0 0.0
    %194 = vmatprep.subr.mxu0 0.0
    %195 = vmatpush1.msra.mxu0 0.0
    %196 = vmatprep.subr.mxu0 0.0
    %197 = vmatpush1.msra.mxu0 0.0
    %198 = vmatprep.mubr.f32.mxu0 0.0
    %199 = vmatmul.mubr.f32.gmra.mrb[0].mxu0 %v123
    %v200 = vpop.f32.mrb[0].mxu0
    %v201 = vadd.f32 %v120, %v200
    %v202 = vpop.f32.mrb[0].mxu0
    %203 = vmatprep.mubr.f32.mxu0 0.0
    %204 = vmatmul.mubr.f32.gmra.mrb[0].mxu0 %v126
    %v205 = vpop.f32.mrb[0].mxu0
    %v206 = vadd.f32 %v120, %v205
    %v207 = vpop.f32.mrb[0].mxu0
    %208 = vmatprep.mubr.f32.mxu0 0.0
    %209 = vmatmul.mubr.f32.gmra.mrb[0].mxu0 %v129
    %v210 = vpop.f32.mrb[0].mxu0
    %v211 = vadd.f32 %v120, %v210
    %v212 = vpop.f32.mrb[0].mxu0
    %213 = vmatprep.mubr.f32.mxu0 0.0
    %214 = vmatmul.mubr.f32.gmra.mrb[0].mxu0 %v132
    %v215 = vpop.f32.mrb[0].mxu0
    %v216 = vadd.f32 %v120, %v215
    %v217 = vpop.f32.mrb[0].mxu0
    %218 = vdwg.mxu0
    %223 = vrot.lane.b32.xlu0 %v201, 96
    %v224 = vpop.permute.xlu0 %223
    %225 = vrot.lane.b32.xlu0 %v206, 96
    %v226 = vpop.permute.xlu0 %225
    %227 = vrot.lane.b32.xlu0 %v211, 96
    %v228 = vpop.permute.xlu0 %227
    %229 = vrot.lane.b32.xlu0 %v216, 96
    %v230 = vpop.permute.xlu0 %229
    %vm231 = vcmask 130048
    %v232 = vsel %vm231, %v201, 0
    %v234 = vsel %vm231, %v206, 0
    %v236 = vsel %vm231, %v211, 0
    %v238 = vsel %vm231, %v216, 0
    %v240 = vsel %vm231, %v224, 0
    %v242 = vsel %vm231, %v226, 0
    %v244 = vsel %vm231, %v228, 0
    %v246 = vsel %vm231, %v230, 0
    %248 = vmatprep.subr.mxu0 0.0
    %249 = vmatpush1.xpose.msra.mxu0 %v240
    %250 = vmatprep.subr.mxu0 0.0
    %251 = vmatpush1.xpose.msra.mxu0 %v242
    %252 = vmatprep.subr.mxu0 0.0
    %253 = vmatpush1.xpose.msra.mxu0 %v244
    %254 = vmatprep.subr.mxu0 0.0
    %255 = vmatpush1.xpose.msra.mxu0 %v246
    %256 = vmatprep.subr.mxu0 0.0
    %257 = vmatpush1.xpose.msra.mxu0 0.0
    %258 = vmatprep.subr.mxu0 0.0
    %259 = vmatpush1.xpose.msra.mxu0 0.0
    %260 = vmatprep.subr.mxu0 0.0
    %261 = vmatpush1.xpose.msra.mxu0 0.0
    %262 = vmatprep.subr.mxu0 0.0
    %263 = vmatpush1.xpose.msra.mxu0 0.0
    %264 = vmatprep.subr.mxu0 0.0
    %265 = vmatpush1.xpose.msra.mxu0 0.0
    %266 = vmatprep.subr.mxu0 0.0
    %267 = vmatpush1.xpose.msra.mxu0 0.0
    %268 = vmatprep.subr.mxu0 0.0
    %269 = vmatpush1.xpose.msra.mxu0 0.0
    %270 = vmatprep.subr.mxu0 0.0
    %271 = vmatpush1.xpose.msra.mxu0 0.0
    %272 = vmatprep.subr.mxu0 0.0
    %273 = vmatpush1.xpose.msra.mxu0 0.0
    %274 = vmatprep.subr.mxu0 0.0
    %275 = vmatpush1.xpose.msra.mxu0 0.0
    %276 = vmatprep.subr.mxu0 0.0
    %277 = vmatpush1.xpose.msra.mxu0 0.0
    %278 = vmatprep.subr.mxu0 0.0
    %279 = vmatpush1.xpose.msra.mxu0 0.0
    %280 = vmatprep.subr.mxu0 0.0
    %281 = vmatpush1.xpose.msra.mxu0 0.0
    %282 = vmatprep.subr.mxu0 0.0
    %283 = vmatpush1.xpose.msra.mxu0 0.0
    %284 = vmatprep.subr.mxu0 0.0
    %285 = vmatpush1.xpose.msra.mxu0 0.0
    %286 = vmatprep.subr.mxu0 0.0
    %287 = vmatpush1.xpose.msra.mxu0 0.0
    %288 = vmatprep.subr.mxu0 0.0
    %289 = vmatpush1.xpose.msra.mxu0 0.0
    %290 = vmatprep.subr.mxu0 0.0
    %291 = vmatpush1.xpose.msra.mxu0 0.0
    %292 = vmatprep.subr.mxu0 0.0
    %293 = vmatpush1.xpose.msra.mxu0 0.0
    %294 = vmatprep.subr.mxu0 0.0
    %295 = vmatpush1.xpose.msra.mxu0 0.0
    %296 = vmatprep.subr.mxu0 0.0
    %297 = vmatpush1.xpose.msra.mxu0 0.0
    %298 = vmatprep.subr.mxu0 0.0
    %299 = vmatpush1.xpose.msra.mxu0 0.0
    %300 = vmatprep.subr.mxu0 0.0
    %301 = vmatpush1.xpose.msra.mxu0 0.0
    %302 = vmatprep.subr.mxu0 0.0
    %303 = vmatpush1.xpose.msra.mxu0 0.0
    %304 = vmatprep.subr.mxu0 0.0
    %305 = vmatpush1.xpose.msra.mxu0 0.0
    %306 = vmatprep.subr.mxu0 0.0
    %307 = vmatpush1.xpose.msra.mxu0 0.0
    %308 = vmatprep.subr.mxu0 0.0
    %309 = vmatpush1.xpose.msra.mxu0 0.0
    %310 = vmatprep.subr.mxu0 0.0
    %311 = vmatpush1.xpose.msra.mxu0 0.0
    %312 = vmatprep.mubr.f32.mxu0 0.0
    %313 = vmatmul.mubr.f32.gmra.mrb[0].mxu0 %v232
    %v314 = vpop.f32.mrb[0].mxu0
    %v315 = vadd.f32 %v32, %v314
    %v316 = vpop.f32.mrb[0].mxu0
    %317 = vmatprep.mubr.f32.mxu0 0.0
    %318 = vmatmul.mubr.f32.gmra.mrb[0].mxu0 %v234
    %v319 = vpop.f32.mrb[0].mxu0
    %v320 = vadd.f32 %v33, %v319
    %v321 = vpop.f32.mrb[0].mxu0
    %322 = vmatprep.mubr.f32.mxu0 0.0
    %323 = vmatmul.mubr.f32.gmra.mrb[0].mxu0 %v236
    %v324 = vpop.f32.mrb[0].mxu0
    %v325 = vadd.f32 %v34, %v324
    %v326 = vpop.f32.mrb[0].mxu0
    %327 = vmatprep.mubr.f32.mxu0 0.0
    %328 = vmatmul.mubr.f32.gmra.mrb[0].mxu0 %v238
    %v329 = vpop.f32.mrb[0].mxu0
    %v330 = vadd.f32 %v35, %v329
    %v331 = vpop.f32.mrb[0].mxu0
    %332 = vdwg.mxu0
    %v333 = vsel %vm40, %v315, -inf
    %334 = vmax.xlane.f32.xlu0 %v333
    %v335 = vpop.xlane.xlu0 %334
    %v336 = vsel %vm40, %v320, -inf
    %337 = vmax.xlane.f32.xlu0 %v336
    %v338 = vpop.xlane.xlu0 %337
    %v339 = vsel %vm40, %v325, -inf
    %340 = vmax.xlane.f32.xlu0 %v339
    %v341 = vpop.xlane.xlu0 %340
    %v342 = vsel %vm40, %v330, -inf
    %343 = vmax.xlane.f32.xlu0 %v342
    %v344 = vpop.xlane.xlu0 %343
    %v345 = vsub.f32 %v315, %v335
    %v346 = vsub.f32 %v320, %v338
    %v347 = vsub.f32 %v325, %v341
    %v348 = vsub.f32 %v330, %v344
    %v349 = vmul.f32 %v345, 1.442695
    %v350 = vpow.pop %v349
    %v351 = vmul.f32 %v346, 1.442695
    %v352 = vpow.pop %v351
    %v353 = vmul.f32 %v347, 1.442695
    %v354 = vpow.pop %v353
    %v355 = vmul.f32 %v348, 1.442695
    %v356 = vpow.pop %v355
    %v357 = vsel %vm40, %v350, 0.0
    %358 = vadd.xlane.f32.xlu0 %v357
    %v359 = vpop.xlane.xlu0 %358
    %v360 = vsel %vm40, %v352, 0.0
    %361 = vadd.xlane.f32.xlu0 %v360
    %v362 = vpop.xlane.xlu0 %361
    %v363 = vsel %vm40, %v354, 0.0
    %364 = vadd.xlane.f32.xlu0 %v363
    %v365 = vpop.xlane.xlu0 %364
    %v366 = vsel %vm40, %v356, 0.0
    %367 = vadd.xlane.f32.xlu0 %v366
    %v368 = vpop.xlane.xlu0 %367
    %v369 = vrcp.pop %v359
    %v370 = vmul.f32 %v350, %v369
    %v371 = vrcp.pop %v362
    %v372 = vmul.f32 %v352, %v371
    %v373 = vrcp.pop %v365
    %v374 = vmul.f32 %v354, %v373
    %v375 = vrcp.pop %v368
    %v376 = vmul.f32 %v356, %v375
    %377 = vrot.lane.b32.xlu0 %v201, 64
    %v378 = vpop.permute.xlu0 %377
    %379 = vrot.lane.b32.xlu0 %v206, 64
    %v380 = vpop.permute.xlu0 %379
    %381 = vrot.lane.b32.xlu0 %v211, 64
    %v382 = vpop.permute.xlu0 %381
    %383 = vrot.lane.b32.xlu0 %v216, 64
    %v384 = vpop.permute.xlu0 %383
    %v390 = vsel %vm40, %v370, 0
    %v393 = vsel %vm40, %v372, 0
    %v396 = vsel %vm40, %v374, 0
    %v399 = vsel %vm40, %v376, 0
    %401 = vmatprep.subr.mxu0 0.0
    %402 = vmatpush1.msra.mxu0 %v378
    %403 = vmatprep.subr.mxu0 0.0
    %404 = vmatpush1.msra.mxu0 %v380
    %405 = vmatprep.subr.mxu0 0.0
    %406 = vmatpush1.msra.mxu0 %v382
    %407 = vmatprep.subr.mxu0 0.0
    %408 = vmatpush1.msra.mxu0 %v384
    %409 = vmatprep.subr.mxu0 0.0
    %410 = vmatpush1.msra.mxu0 0.0
    %411 = vmatprep.subr.mxu0 0.0
    %412 = vmatpush1.msra.mxu0 0.0
    %413 = vmatprep.subr.mxu0 0.0
    %414 = vmatpush1.msra.mxu0 0.0
    %415 = vmatprep.subr.mxu0 0.0
    %416 = vmatpush1.msra.mxu0 0.0
    %417 = vmatprep.subr.mxu0 0.0
    %418 = vmatpush1.msra.mxu0 0.0
    %419 = vmatprep.subr.mxu0 0.0
    %420 = vmatpush1.msra.mxu0 0.0
    %421 = vmatprep.subr.mxu0 0.0
    %422 = vmatpush1.msra.mxu0 0.0
    %423 = vmatprep.subr.mxu0 0.0
    %424 = vmatpush1.msra.mxu0 0.0
    %425 = vmatprep.subr.mxu0 0.0
    %426 = vmatpush1.msra.mxu0 0.0
    %427 = vmatprep.subr.mxu0 0.0
    %428 = vmatpush1.msra.mxu0 0.0
    %429 = vmatprep.subr.mxu0 0.0
    %430 = vmatpush1.msra.mxu0 0.0
    %431 = vmatprep.subr.mxu0 0.0
    %432 = vmatpush1.msra.mxu0 0.0
    %433 = vmatprep.subr.mxu0 0.0
    %434 = vmatpush1.msra.mxu0 0.0
    %435 = vmatprep.subr.mxu0 0.0
    %436 = vmatpush1.msra.mxu0 0.0
    %437 = vmatprep.subr.mxu0 0.0
    %438 = vmatpush1.msra.mxu0 0.0
    %439 = vmatprep.subr.mxu0 0.0
    %440 = vmatpush1.msra.mxu0 0.0
    %441 = vmatprep.subr.mxu0 0.0
    %442 = vmatpush1.msra.mxu0 0.0
    %443 = vmatprep.subr.mxu0 0.0
    %444 = vmatpush1.msra.mxu0 0.0
    %445 = vmatprep.subr.mxu0 0.0
    %446 = vmatpush1.msra.mxu0 0.0
    %447 = vmatprep.subr.mxu0 0.0
    %448 = vmatpush1.msra.mxu0 0.0
    %449 = vmatprep.subr.mxu0 0.0
    %450 = vmatpush1.msra.mxu0 0.0
    %451 = vmatprep.subr.mxu0 0.0
    %452 = vmatpush1.msra.mxu0 0.0
    %453 = vmatprep.subr.mxu0 0.0
    %454 = vmatpush1.msra.mxu0 0.0
    %455 = vmatprep.subr.mxu0 0.0
    %456 = vmatpush1.msra.mxu0 0.0
    %457 = vmatprep.subr.mxu0 0.0
    %458 = vmatpush1.msra.mxu0 0.0
    %459 = vmatprep.subr.mxu0 0.0
    %460 = vmatpush1.msra.mxu0 0.0
    %461 = vmatprep.subr.mxu0 0.0
    %462 = vmatpush1.msra.mxu0 0.0
    %463 = vmatprep.subr.mxu0 0.0
    %464 = vmatpush1.msra.mxu0 0.0
    %465 = vmatprep.mubr.f32.mxu0 0.0
    %466 = vmatmul.mubr.f32.gmra.mrb[0].mxu0 %v390
    %v467 = vpop.f32.mrb[0].mxu0
    %v468 = vadd.f32 0.0, %v467
    %v469 = vpop.f32.mrb[0].mxu0
    %470 = vmatprep.mubr.f32.mxu0 0.0
    %471 = vmatmul.mubr.f32.gmra.mrb[0].mxu0 %v393
    %v472 = vpop.f32.mrb[0].mxu0
    %v473 = vadd.f32 0.0, %v472
    %v474 = vpop.f32.mrb[0].mxu0
    %475 = vmatprep.mubr.f32.mxu0 0.0
    %476 = vmatmul.mubr.f32.gmra.mrb[0].mxu0 %v396
    %v477 = vpop.f32.mrb[0].mxu0
    %v478 = vadd.f32 0.0, %v477
    %v479 = vpop.f32.mrb[0].mxu0
    %480 = vmatprep.mubr.f32.mxu0 0.0
    %481 = vmatmul.mubr.f32.gmra.mrb[0].mxu0 %v399
    %v482 = vpop.f32.mrb[0].mxu0
    %v483 = vadd.f32 0.0, %v482
    %v484 = vpop.f32.mrb[0].mxu0
    %485 = vdwg.mxu0
    %486 = vrot.lane.b32.xlu0 %v201, 112
    %v487 = vpop.permute.xlu0 %486
    %488 = vrot.lane.b32.xlu0 %v206, 112
    %v489 = vpop.permute.xlu0 %488
    %490 = vrot.lane.b32.xlu0 %v211, 112
    %v491 = vpop.permute.xlu0 %490
    %492 = vrot.lane.b32.xlu0 %v216, 112
    %v493 = vpop.permute.xlu0 %492
    %494 = vrot.lane.b32.xlu0 %v201, 80
    %v495 = vpop.permute.xlu0 %494
    %496 = vrot.lane.b32.xlu0 %v206, 80
    %v497 = vpop.permute.xlu0 %496
    %498 = vrot.lane.b32.xlu0 %v211, 80
    %v499 = vpop.permute.xlu0 %498
    %500 = vrot.lane.b32.xlu0 %v216, 80
    %v501 = vpop.permute.xlu0 %500
    %v502 = vsel %vm231, %v487, 0
    %v504 = vsel %vm231, %v489, 0
    %v506 = vsel %vm231, %v491, 0
    %v508 = vsel %vm231, %v493, 0
    %v510 = vsel %vm231, %v495, 0
    %v512 = vsel %vm231, %v497, 0
    %v514 = vsel %vm231, %v499, 0
    %v516 = vsel %vm231, %v501, 0
    %518 = vmatprep.subr.mxu0 0.0
    %519 = vmatpush1.xpose.msra.mxu0 %v510
    %520 = vmatprep.subr.mxu0 0.0
    %521 = vmatpush1.xpose.msra.mxu0 %v512
    %522 = vmatprep.subr.mxu0 0.0
    %523 = vmatpush1.xpose.msra.mxu0 %v514
    %524 = vmatprep.subr.mxu0 0.0
    %525 = vmatpush1.xpose.msra.mxu0 %v516
    %526 = vmatprep.subr.mxu0 0.0
    %527 = vmatpush1.xpose.msra.mxu0 0.0
    %528 = vmatprep.subr.mxu0 0.0
    %529 = vmatpush1.xpose.msra.mxu0 0.0
    %530 = vmatprep.subr.mxu0 0.0
    %531 = vmatpush1.xpose.msra.mxu0 0.0
    %532 = vmatprep.subr.mxu0 0.0
    %533 = vmatpush1.xpose.msra.mxu0 0.0
    %534 = vmatprep.subr.mxu0 0.0
    %535 = vmatpush1.xpose.msra.mxu0 0.0
    %536 = vmatprep.subr.mxu0 0.0
    %537 = vmatpush1.xpose.msra.mxu0 0.0
    %538 = vmatprep.subr.mxu0 0.0
    %539 = vmatpush1.xpose.msra.mxu0 0.0
    %540 = vmatprep.subr.mxu0 0.0
    %541 = vmatpush1.xpose.msra.mxu0 0.0
    %542 = vmatprep.subr.mxu0 0.0
    %543 = vmatpush1.xpose.msra.mxu0 0.0
    %544 = vmatprep.subr.mxu0 0.0
    %545 = vmatpush1.xpose.msra.mxu0 0.0
    %546 = vmatprep.subr.mxu0 0.0
    %547 = vmatpush1.xpose.msra.mxu0 0.0
    %548 = vmatprep.subr.mxu0 0.0
    %549 = vmatpush1.xpose.msra.mxu0 0.0
    %550 = vmatprep.subr.mxu0 0.0
    %551 = vmatpush1.xpose.msra.mxu0 0.0
    %552 = vmatprep.subr.mxu0 0.0
    %553 = vmatpush1.xpose.msra.mxu0 0.0
    %554 = vmatprep.subr.mxu0 0.0
    %555 = vmatpush1.xpose.msra.mxu0 0.0
    %556 = vmatprep.subr.mxu0 0.0
    %557 = vmatpush1.xpose.msra.mxu0 0.0
    %558 = vmatprep.subr.mxu0 0.0
    %559 = vmatpush1.xpose.msra.mxu0 0.0
    %560 = vmatprep.subr.mxu0 0.0
    %561 = vmatpush1.xpose.msra.mxu0 0.0
    %562 = vmatprep.subr.mxu0 0.0
    %563 = vmatpush1.xpose.msra.mxu0 0.0
    %564 = vmatprep.subr.mxu0 0.0
    %565 = vmatpush1.xpose.msra.mxu0 0.0
    %566 = vmatprep.subr.mxu0 0.0
    %567 = vmatpush1.xpose.msra.mxu0 0.0
    %568 = vmatprep.subr.mxu0 0.0
    %569 = vmatpush1.xpose.msra.mxu0 0.0
    %570 = vmatprep.subr.mxu0 0.0
    %571 = vmatpush1.xpose.msra.mxu0 0.0
    %572 = vmatprep.subr.mxu0 0.0
    %573 = vmatpush1.xpose.msra.mxu0 0.0
    %574 = vmatprep.subr.mxu0 0.0
    %575 = vmatpush1.xpose.msra.mxu0 0.0
    %576 = vmatprep.subr.mxu0 0.0
    %577 = vmatpush1.xpose.msra.mxu0 0.0
    %578 = vmatprep.subr.mxu0 0.0
    %579 = vmatpush1.xpose.msra.mxu0 0.0
    %580 = vmatprep.subr.mxu0 0.0
    %581 = vmatpush1.xpose.msra.mxu0 0.0
    %582 = vmatprep.mubr.f32.mxu0 0.0
    %583 = vmatmul.mubr.f32.gmra.mrb[0].mxu0 %v502
    %v584 = vpop.f32.mrb[0].mxu0
    %v585 = vadd.f32 %v32, %v584
    %v586 = vpop.f32.mrb[0].mxu0
    %587 = vmatprep.mubr.f32.mxu0 0.0
    %588 = vmatmul.mubr.f32.gmra.mrb[0].mxu0 %v504
    %v589 = vpop.f32.mrb[0].mxu0
    %v590 = vadd.f32 %v33, %v589
    %v591 = vpop.f32.mrb[0].mxu0
    %592 = vmatprep.mubr.f32.mxu0 0.0
    %593 = vmatmul.mubr.f32.gmra.mrb[0].mxu0 %v506
    %v594 = vpop.f32.mrb[0].mxu0
    %v595 = vadd.f32 %v34, %v594
    %v596 = vpop.f32.mrb[0].mxu0
    %597 = vmatprep.mubr.f32.mxu0 0.0
    %598 = vmatmul.mubr.f32.gmra.mrb[0].mxu0 %v508
    %v599 = vpop.f32.mrb[0].mxu0
    %v600 = vadd.f32 %v35, %v599
    %v601 = vpop.f32.mrb[0].mxu0
    %602 = vdwg.mxu0
    %v603 = vsel %vm40, %v585, -inf
    %604 = vmax.xlane.f32.xlu0 %v603
    %v605 = vpop.xlane.xlu0 %604
    %v606 = vsel %vm40, %v590, -inf
    %607 = vmax.xlane.f32.xlu0 %v606
    %v608 = vpop.xlane.xlu0 %607
    %v609 = vsel %vm40, %v595, -inf
    %610 = vmax.xlane.f32.xlu0 %v609
    %v611 = vpop.xlane.xlu0 %610
    %v612 = vsel %vm40, %v600, -inf
    %613 = vmax.xlane.f32.xlu0 %v612
    %v614 = vpop.xlane.xlu0 %613
    %v615 = vsub.f32 %v585, %v605
    %v616 = vsub.f32 %v590, %v608
    %v617 = vsub.f32 %v595, %v611
    %v618 = vsub.f32 %v600, %v614
    %v619 = vmul.f32 %v615, 1.442695
    %v620 = vpow.pop %v619
    %v621 = vmul.f32 %v616, 1.442695
    %v622 = vpow.pop %v621
    %v623 = vmul.f32 %v617, 1.442695
    %v624 = vpow.pop %v623
    %v625 = vmul.f32 %v618, 1.442695
    %v626 = vpow.pop %v625
    %v627 = vsel %vm40, %v620, 0.0
    %628 = vadd.xlane.f32.xlu0 %v627
    %v629 = vpop.xlane.xlu0 %628
    %v630 = vsel %vm40, %v622, 0.0
    %631 = vadd.xlane.f32.xlu0 %v630
    %v632 = vpop.xlane.xlu0 %631
    %v633 = vsel %vm40, %v624, 0.0
    %634 = vadd.xlane.f32.xlu0 %v633
    %v635 = vpop.xlane.xlu0 %634
    %v636 = vsel %vm40, %v626, 0.0
    %637 = vadd.xlane.f32.xlu0 %v636
    %v638 = vpop.xlane.xlu0 %637
    %v639 = vrcp.pop %v629
    %v640 = vmul.f32 %v620, %v639
    %v641 = vrcp.pop %v632
    %v642 = vmul.f32 %v622, %v641
    %v643 = vrcp.pop %v635
    %v644 = vmul.f32 %v624, %v643
    %v645 = vrcp.pop %v638
    %v646 = vmul.f32 %v626, %v645
    %647 = vrot.lane.b32.xlu0 %v201, 48
    %v648 = vpop.permute.xlu0 %647
    %649 = vrot.lane.b32.xlu0 %v206, 48
    %v650 = vpop.permute.xlu0 %649
    %651 = vrot.lane.b32.xlu0 %v211, 48
    %v652 = vpop.permute.xlu0 %651
    %653 = vrot.lane.b32.xlu0 %v216, 48
    %v654 = vpop.permute.xlu0 %653
    %v660 = vsel %vm40, %v640, 0
    %v663 = vsel %vm40, %v642, 0
    %v666 = vsel %vm40, %v644, 0
    %v669 = vsel %vm40, %v646, 0
    %671 = vmatprep.subr.mxu0 0.0
    %672 = vmatpush1.msra.mxu0 %v648
    %673 = vmatprep.subr.mxu0 0.0
    %674 = vmatpush1.msra.mxu0 %v650
    %675 = vmatprep.subr.mxu0 0.0
    %676 = vmatpush1.msra.mxu0 %v652
    %677 = vmatprep.subr.mxu0 0.0
    %678 = vmatpush1.msra.mxu0 %v654
    %679 = vmatprep.subr.mxu0 0.0
    %680 = vmatpush1.msra.mxu0 0.0
    %681 = vmatprep.subr.mxu0 0.0
    %682 = vmatpush1.msra.mxu0 0.0
    %683 = vmatprep.subr.mxu0 0.0
    %684 = vmatpush1.msra.mxu0 0.0
    %685 = vmatprep.subr.mxu0 0.0
    %686 = vmatpush1.msra.mxu0 0.0
    %687 = vmatprep.subr.mxu0 0.0
    %688 = vmatpush1.msra.mxu0 0.0
    %689 = vmatprep.subr.mxu0 0.0
    %690 = vmatpush1.msra.mxu0 0.0
    %691 = vmatprep.subr.mxu0 0.0
    %692 = vmatpush1.msra.mxu0 0.0
    %693 = vmatprep.subr.mxu0 0.0
    %694 = vmatpush1.msra.mxu0 0.0
    %695 = vmatprep.subr.mxu0 0.0
    %696 = vmatpush1.msra.mxu0 0.0
    %697 = vmatprep.subr.mxu0 0.0
    %698 = vmatpush1.msra.mxu0 0.0
    %699 = vmatprep.subr.mxu0 0.0
    %700 = vmatpush1.msra.mxu0 0.0
    %701 = vmatprep.subr.mxu0 0.0
    %702 = vmatpush1.msra.mxu0 0.0
    %703 = vmatprep.subr.mxu0 0.0
    %704 = vmatpush1.msra.mxu0 0.0
    %705 = vmatprep.subr.mxu0 0.0
    %706 = vmatpush1.msra.mxu0 0.0
    %707 = vmatprep.subr.mxu0 0.0
    %708 = vmatpush1.msra.mxu0 0.0
    %709 = vmatprep.subr.mxu0 0.0
    %710 = vmatpush1.msra.mxu0 0.0
    %711 = vmatprep.subr.mxu0 0.0
    %712 = vmatpush1.msra.mxu0 0.0
    %713 = vmatprep.subr.mxu0 0.0
    %714 = vmatpush1.msra.mxu0 0.0
    %715 = vmatprep.subr.mxu0 0.0
    %716 = vmatpush1.msra.mxu0 0.0
    %717 = vmatprep.subr.mxu0 0.0
    %718 = vmatpush1.msra.mxu0 0.0
    %719 = vmatprep.subr.mxu0 0.0
    %720 = vmatpush1.msra.mxu0 0.0
    %721 = vmatprep.subr.mxu0 0.0
    %722 = vmatpush1.msra.mxu0 0.0
    %723 = vmatprep.subr.mxu0 0.0
    %724 = vmatpush1.msra.mxu0 0.0
    %725 = vmatprep.subr.mxu0 0.0
    %726 = vmatpush1.msra.mxu0 0.0
    %727 = vmatprep.subr.mxu0 0.0
    %728 = vmatpush1.msra.mxu0 0.0
    %729 = vmatprep.subr.mxu0 0.0
    %730 = vmatpush1.msra.mxu0 0.0
    %731 = vmatprep.subr.mxu0 0.0
    %732 = vmatpush1.msra.mxu0 0.0
    %733 = vmatprep.subr.mxu0 0.0
    %734 = vmatpush1.msra.mxu0 0.0
    %735 = vmatprep.mubr.f32.mxu0 0.0
    %736 = vmatmul.mubr.f32.gmra.mrb[0].mxu0 %v660
    %v737 = vpop.f32.mrb[0].mxu0
    %v738 = vadd.f32 0.0, %v737
    %v739 = vpop.f32.mrb[0].mxu0
    %740 = vmatprep.mubr.f32.mxu0 0.0
    %741 = vmatmul.mubr.f32.gmra.mrb[0].mxu0 %v663
    %v742 = vpop.f32.mrb[0].mxu0
    %v743 = vadd.f32 0.0, %v742
    %v744 = vpop.f32.mrb[0].mxu0
    %745 = vmatprep.mubr.f32.mxu0 0.0
    %746 = vmatmul.mubr.f32.gmra.mrb[0].mxu0 %v666
    %v747 = vpop.f32.mrb[0].mxu0
    %v748 = vadd.f32 0.0, %v747
    %v749 = vpop.f32.mrb[0].mxu0
    %750 = vmatprep.mubr.f32.mxu0 0.0
    %751 = vmatmul.mubr.f32.gmra.mrb[0].mxu0 %v669
    %v752 = vpop.f32.mrb[0].mxu0
    %v753 = vadd.f32 0.0, %v752
    %v754 = vpop.f32.mrb[0].mxu0
    %755 = vdwg.mxu0
    %758 = vrot.lane.b32.xlu0 %v112, 32
    %v759 = vpop.permute.xlu0 %758
    %760 = vrot.lane.b32.xlu0 %v113, 32
    %v761 = vpop.permute.xlu0 %760
    %v765 = vsel %vm231, %v738, 0
    %v768 = vsel %vm231, %v743, 0
    %v771 = vsel %vm231, %v748, 0
    %v774 = vsel %vm231, %v753, 0
    %776 = vmatprep.subr.mxu0 0.0
    %777 = vmatpush1.msra.mxu0 %v759
    %778 = vmatprep.subr.mxu0 0.0
    %779 = vmatpush1.msra.mxu0 %v761
    %780 = vmatprep.subr.mxu0 0.0
    %781 = vmatpush1.msra.mxu0 0.0
    %782 = vmatprep.subr.mxu0 0.0
    %783 = vmatpush1.msra.mxu0 0.0
    %784 = vmatprep.subr.mxu0 0.0
    %785 = vmatpush1.msra.mxu0 0.0
    %786 = vmatprep.subr.mxu0 0.0
    %787 = vmatpush1.msra.mxu0 0.0
    %788 = vmatprep.subr.mxu0 0.0
    %789 = vmatpush1.msra.mxu0 0.0
    %790 = vmatprep.subr.mxu0 0.0
    %791 = vmatpush1.msra.mxu0 0.0
    %792 = vmatprep.subr.mxu0 0.0
    %793 = vmatpush1.msra.mxu0 0.0
    %794 = vmatprep.subr.mxu0 0.0
    %795 = vmatpush1.msra.mxu0 0.0
    %796 = vmatprep.subr.mxu0 0.0
    %797 = vmatpush1.msra.mxu0 0.0
    %798 = vmatprep.subr.mxu0 0.0
    %799 = vmatpush1.msra.mxu0 0.0
    %800 = vmatprep.subr.mxu0 0.0
    %801 = vmatpush1.msra.mxu0 0.0
    %802 = vmatprep.subr.mxu0 0.0
    %803 = vmatpush1.msra.mxu0 0.0
    %804 = vmatprep.subr.mxu0 0.0
    %805 = vmatpush1.msra.mxu0 0.0
    %806 = vmatprep.subr.mxu0 0.0
    %807 = vmatpush1.msra.mxu0 0.0
    %808 = vmatprep.subr.mxu0 0.0
    %809 = vmatpush1.msra.mxu0 0.0
    %810 = vmatprep.subr.mxu0 0.0
    %811 = vmatpush1.msra.mxu0 0.0
    %812 = vmatprep.subr.mxu0 0.0
    %813 = vmatpush1.msra.mxu0 0.0
    %814 = vmatprep.subr.mxu0 0.0
    %815 = vmatpush1.msra.mxu0 0.0
    %816 = vmatprep.subr.mxu0 0.0
    %817 = vmatpush1.msra.mxu0 0.0
    %818 = vmatprep.subr.mxu0 0.0
    %819 = vmatpush1.msra.mxu0 0.0
    %820 = vmatprep.subr.mxu0 0.0
    %821 = vmatpush1.msra.mxu0 0.0
    %822 = vmatprep.subr.mxu0 0.0
    %823 = vmatpush1.msra.mxu0 0.0
    %824 = vmatprep.subr.mxu0 0.0
    %825 = vmatpush1.msra.mxu0 0.0
    %826 = vmatprep.subr.mxu0 0.0
    %827 = vmatpush1.msra.mxu0 0.0
    %828 = vmatprep.subr.mxu0 0.0
    %829 = vmatpush1.msra.mxu0 0.0
    %830 = vmatprep.subr.mxu0 0.0
    %831 = vmatpush1.msra.mxu0 0.0
    %832 = vmatprep.subr.mxu0 0.0
    %833 = vmatpush1.msra.mxu0 0.0
    %834 = vmatprep.subr.mxu0 0.0
    %835 = vmatpush1.msra.mxu0 0.0
    %836 = vmatprep.subr.mxu0 0.0
    %837 = vmatpush1.msra.mxu0 0.0
    %838 = vmatprep.subr.mxu0 0.0
    %839 = vmatpush1.msra.mxu0 0.0
    %840 = vmatprep.mubr.f32.mxu0 0.0
    %841 = vmatmul.mubr.f32.gmra.mrb[0].mxu0 %v765
    %v842 = vpop.f32.mrb[0].mxu0
    %v843 = vadd.f32 0.0, %v842
    %v844 = vpop.f32.mrb[0].mxu0
    %845 = vmatprep.mubr.f32.mxu0 0.0
    %846 = vmatmul.mubr.f32.gmra.mrb[0].mxu0 %v768
    %v847 = vpop.f32.mrb[0].mxu0
    %v848 = vadd.f32 0.0, %v847
    %v849 = vpop.f32.mrb[0].mxu0
    %850 = vmatprep.mubr.f32.mxu0 0.0
    %851 = vmatmul.mubr.f32.gmra.mrb[0].mxu0 %v771
    %v852 = vpop.f32.mrb[0].mxu0
    %v853 = vadd.f32 0.0, %v852
    %v854 = vpop.f32.mrb[0].mxu0
    %855 = vmatprep.mubr.f32.mxu0 0.0
    %856 = vmatmul.mubr.f32.gmra.mrb[0].mxu0 %v774
    %v857 = vpop.f32.mrb[0].mxu0
    %v858 = vadd.f32 0.0, %v857
    %v859 = vpop.f32.mrb[0].mxu0
    %860 = vdwg.mxu0
    %863 = vrot.lane.b32.xlu0 %v110, 32
    %v864 = vpop.permute.xlu0 %863
    %865 = vrot.lane.b32.xlu0 %v111, 32
    %v866 = vpop.permute.xlu0 %865
    %v870 = vsel %vm231, %v468, 0
    %v873 = vsel %vm231, %v473, 0
    %v876 = vsel %vm231, %v478, 0
    %v879 = vsel %vm231, %v483, 0
    %881 = vmatprep.subr.mxu0 0.0
    %882 = vmatpush1.msra.mxu0 %v864
    %883 = vmatprep.subr.mxu0 0.0
    %884 = vmatpush1.msra.mxu0 %v866
    %885 = vmatprep.subr.mxu0 0.0
    %886 = vmatpush1.msra.mxu0 0.0
    %887 = vmatprep.subr.mxu0 0.0
    %888 = vmatpush1.msra.mxu0 0.0
    %889 = vmatprep.subr.mxu0 0.0
    %890 = vmatpush1.msra.mxu0 0.0
    %891 = vmatprep.subr.mxu0 0.0
    %892 = vmatpush1.msra.mxu0 0.0
    %893 = vmatprep.subr.mxu0 0.0
    %894 = vmatpush1.msra.mxu0 0.0
    %895 = vmatprep.subr.mxu0 0.0
    %896 = vmatpush1.msra.mxu0 0.0
    %897 = vmatprep.subr.mxu0 0.0
    %898 = vmatpush1.msra.mxu0 0.0
    %899 = vmatprep.subr.mxu0 0.0
    %900 = vmatpush1.msra.mxu0 0.0
    %901 = vmatprep.subr.mxu0 0.0
    %902 = vmatpush1.msra.mxu0 0.0
    %903 = vmatprep.subr.mxu0 0.0
    %904 = vmatpush1.msra.mxu0 0.0
    %905 = vmatprep.subr.mxu0 0.0
    %906 = vmatpush1.msra.mxu0 0.0
    %907 = vmatprep.subr.mxu0 0.0
    %908 = vmatpush1.msra.mxu0 0.0
    %909 = vmatprep.subr.mxu0 0.0
    %910 = vmatpush1.msra.mxu0 0.0
    %911 = vmatprep.subr.mxu0 0.0
    %912 = vmatpush1.msra.mxu0 0.0
    %913 = vmatprep.subr.mxu0 0.0
    %914 = vmatpush1.msra.mxu0 0.0
    %915 = vmatprep.subr.mxu0 0.0
    %916 = vmatpush1.msra.mxu0 0.0
    %917 = vmatprep.subr.mxu0 0.0
    %918 = vmatpush1.msra.mxu0 0.0
    %919 = vmatprep.subr.mxu0 0.0
    %920 = vmatpush1.msra.mxu0 0.0
    %921 = vmatprep.subr.mxu0 0.0
    %922 = vmatpush1.msra.mxu0 0.0
    %923 = vmatprep.subr.mxu0 0.0
    %924 = vmatpush1.msra.mxu0 0.0
    %925 = vmatprep.subr.mxu0 0.0
    %926 = vmatpush1.msra.mxu0 0.0
    %927 = vmatprep.subr.mxu0 0.0
    %928 = vmatpush1.msra.mxu0 0.0
    %929 = vmatprep.subr.mxu0 0.0
    %930 = vmatpush1.msra.mxu0 0.0
    %931 = vmatprep.subr.mxu0 0.0
    %932 = vmatpush1.msra.mxu0 0.0
    %933 = vmatprep.subr.mxu0 0.0
    %934 = vmatpush1.msra.mxu0 0.0
    %935 = vmatprep.subr.mxu0 0.0
    %936 = vmatpush1.msra.mxu0 0.0
    %937 = vmatprep.subr.mxu0 0.0
    %938 = vmatpush1.msra.mxu0 0.0
    %939 = vmatprep.subr.mxu0 0.0
    %940 = vmatpush1.msra.mxu0 0.0
    %941 = vmatprep.subr.mxu0 0.0
    %942 = vmatpush1.msra.mxu0 0.0
    %943 = vmatprep.subr.mxu0 0.0
    %944 = vmatpush1.msra.mxu0 0.0
    %945 = vmatprep.mubr.f32.mxu0 0.0
    %946 = vmatmul.mubr.f32.gmra.mrb[0].mxu0 %v870
    %v947 = vpop.f32.mrb[0].mxu0
    %v948 = vadd.f32 %v843, %v947
    %v949 = vpop.f32.mrb[0].mxu0
    %950 = vmatprep.mubr.f32.mxu0 0.0
    %951 = vmatmul.mubr.f32.gmra.mrb[0].mxu0 %v873
    %v952 = vpop.f32.mrb[0].mxu0
    %v953 = vadd.f32 %v848, %v952
    %v954 = vpop.f32.mrb[0].mxu0
    %955 = vmatprep.mubr.f32.mxu0 0.0
    %956 = vmatmul.mubr.f32.gmra.mrb[0].mxu0 %v876
    %v957 = vpop.f32.mrb[0].mxu0
    %v958 = vadd.f32 %v853, %v957
    %v959 = vpop.f32.mrb[0].mxu0
    %960 = vmatprep.mubr.f32.mxu0 0.0
    %961 = vmatmul.mubr.f32.gmra.mrb[0].mxu0 %v879
    %v962 = vpop.f32.mrb[0].mxu0
    %v963 = vadd.f32 %v858, %v962
    %v964 = vpop.f32.mrb[0].mxu0
    %965 = vdwg.mxu0
    %966 = vrot.lane.b32.xlu0 %v120, 32
    %v967 = vpop.permute.xlu0 %966
    %v969 = vadd.f32 %v948, %v967
    %v970 = vadd.f32 %v953, %v967
    %v971 = vadd.f32 %v958, %v967
    %v972 = vadd.f32 %v963, %v967
    %v973 = vadd.f32 %v969, %v106
    %v974 = vadd.f32 %v970, %v107
    %v975 = vadd.f32 %v971, %v108
    %v976 = vadd.f32 %v972, %v109
    %v977 = vsel %vm40, %v973, 0.0
    %978 = vadd.xlane.f32.xlu0 %v977
    %v979 = vpop.xlane.xlu0 %978
    %v980 = vsel %vm40, %v974, 0.0
    %981 = vadd.xlane.f32.xlu0 %v980
    %v982 = vpop.xlane.xlu0 %981
    %v983 = vsel %vm40, %v975, 0.0
    %984 = vadd.xlane.f32.xlu0 %v983
    %v985 = vpop.xlane.xlu0 %984
    %v986 = vsel %vm40, %v976, 0.0
    %987 = vadd.xlane.f32.xlu0 %v986
    %v988 = vpop.xlane.xlu0 %987
    %v989 = vmul.f32 %v979, %v53
    %v990 = vmul.f32 %v982, %v53
    %v991 = vmul.f32 %v985, %v53
    %v992 = vmul.f32 %v988, %v53
    %v993 = vsub.f32 %v973, %v989
    %v994 = vsub.f32 %v974, %v990
    %v995 = vsub.f32 %v975, %v991
    %v996 = vsub.f32 %v976, %v992
    %v997 = vmul.f32 %v993, %v993
    %v998 = vmul.f32 %v994, %v994
    %v999 = vmul.f32 %v995, %v995
    %v1000 = vmul.f32 %v996, %v996
    %v1001 = vsel %vm40, %v997, 0.0
    %1002 = vadd.xlane.f32.xlu0 %v1001
    %v1003 = vpop.xlane.xlu0 %1002
    %v1004 = vsel %vm40, %v998, 0.0
    %1005 = vadd.xlane.f32.xlu0 %v1004
    %v1006 = vpop.xlane.xlu0 %1005
    %v1007 = vsel %vm40, %v999, 0.0
    %1008 = vadd.xlane.f32.xlu0 %v1007
    %v1009 = vpop.xlane.xlu0 %1008
    %v1010 = vsel %vm40, %v1000, 0.0
    %1011 = vadd.xlane.f32.xlu0 %v1010
    %v1012 = vpop.xlane.xlu0 %1011
    %v1013 = vmul.f32 %v1003, %v53
    %v1014 = vmul.f32 %v1006, %v53
    %v1015 = vmul.f32 %v1009, %v53
    %v1016 = vmul.f32 %v1012, %v53
    %v1017 = vadd.f32 %v1013, 1e-12
    %v1018 = vadd.f32 %v1014, 1e-12
    %v1019 = vadd.f32 %v1015, 1e-12
    %v1020 = vadd.f32 %v1016, 1e-12
    %v1021 = vrsqrt.pop %v1017
    %v1022 = vrsqrt.pop %v1018
    %v1023 = vrsqrt.pop %v1019
    %v1024 = vrsqrt.pop %v1020
    %v1025 = vmul.f32 %v993, %v1021
    %v1026 = vmul.f32 %v994, %v1022
    %v1027 = vmul.f32 %v995, %v1023
    %v1028 = vmul.f32 %v996, %v1024
    %v1029 = vlaneseq
    %v1030 = vshrl.u32 %v1029, 7
    %v1031 = vsub.s32 0, %v1030
    %v1032 = vrot.slane %v115, %v1031
    %v1033 = vmul.f32 %v1025, %v1032
    %v1034 = vmul.f32 %v1026, %v1032
    %v1035 = vmul.f32 %v1027, %v1032
    %v1036 = vmul.f32 %v1028, %v1032
    %1038 = vrot.lane.b32.xlu0 %v1032, 96
    %v1039 = vpop.permute.xlu0 %1038
    %v1041 = vadd.f32 %v1033, %v1039
    %v1042 = vadd.f32 %v1034, %v1039
    %v1043 = vadd.f32 %v1035, %v1039
    %v1044 = vadd.f32 %v1036, %v1039
    %v1045 = vld [vmem:[%s4] sm:$0xff]
    %v1046 = vld [vmem:[%s4 + $0x8] sm:$0xff]
    %v1047 = vld [vmem:[%s4 + $0x10] sm:$0xff]
    %v1048 = vld [vmem:[%s4 + $0x18] sm:$0xff]
    %v1049 = vld [vmem:[%s4 + $0x20] sm:$0xff]
    %v1050 = vld [vmem:[%s4 + $0x28] sm:$0xff]
    %v1051 = vld [vmem:[%s4 + $0x30] sm:$0xff]
    %v1052 = vld [vmem:[%s4 + $0x38] sm:$0xff]
    %v1053 = vld [vmem:[%s4 + $0x40] sm:$0xff]
    %v1054 = vld [vmem:[%s4 + $0x48] sm:$0xff]
    %v1055 = vld [vmem:[%s4 + $0x50] sm:$0xff]
    %v1056 = vld [vmem:[%s4 + $0x58] sm:$0xff]
    %v1057 = vlaneseq
    %v1058 = vshrl.u32 %v1057, 7
    %v1059 = vsub.s32 1, %v1058
    %v1060 = vrot.slane %v115, %v1059
    %v1062 = vsel %vm40, %v1041, 0
    %v1065 = vsel %vm40, %v1042, 0
    %v1068 = vsel %vm40, %v1043, 0
    %v1071 = vsel %vm40, %v1044, 0
    %1073 = vmatprep.subr.mxu0 0.0
    %1074 = vmatpush1.msra.mxu0 %v1045
    %1075 = vmatprep.subr.mxu0 0.0
    %1076 = vmatpush1.msra.mxu0 %v1046
    %1077 = vmatprep.subr.mxu0 0.0
    %1078 = vmatpush1.msra.mxu0 %v1047
    %1079 = vmatprep.subr.mxu0 0.0
    %1080 = vmatpush1.msra.mxu0 %v1048
    %1081 = vmatprep.subr.mxu0 0.0
    %1082 = vmatpush1.msra.mxu0 0.0
    %1083 = vmatprep.subr.mxu0 0.0
    %1084 = vmatpush1.msra.mxu0 0.0
    %1085 = vmatprep.subr.mxu0 0.0
    %1086 = vmatpush1.msra.mxu0 0.0
    %1087 = vmatprep.subr.mxu0 0.0
    %1088 = vmatpush1.msra.mxu0 0.0
    %1089 = vmatprep.subr.mxu0 0.0
    %1090 = vmatpush1.msra.mxu0 0.0
    %1091 = vmatprep.subr.mxu0 0.0
    %1092 = vmatpush1.msra.mxu0 0.0
    %1093 = vmatprep.subr.mxu0 0.0
    %1094 = vmatpush1.msra.mxu0 0.0
    %1095 = vmatprep.subr.mxu0 0.0
    %1096 = vmatpush1.msra.mxu0 0.0
    %1097 = vmatprep.subr.mxu0 0.0
    %1098 = vmatpush1.msra.mxu0 0.0
    %1099 = vmatprep.subr.mxu0 0.0
    %1100 = vmatpush1.msra.mxu0 0.0
    %1101 = vmatprep.subr.mxu0 0.0
    %1102 = vmatpush1.msra.mxu0 0.0
    %1103 = vmatprep.subr.mxu0 0.0
    %1104 = vmatpush1.msra.mxu0 0.0
    %1105 = vmatprep.subr.mxu0 0.0
    %1106 = vmatpush1.msra.mxu0 0.0
    %1107 = vmatprep.subr.mxu0 0.0
    %1108 = vmatpush1.msra.mxu0 0.0
    %1109 = vmatprep.subr.mxu0 0.0
    %1110 = vmatpush1.msra.mxu0 0.0
    %1111 = vmatprep.subr.mxu0 0.0
    %1112 = vmatpush1.msra.mxu0 0.0
    %1113 = vmatprep.subr.mxu0 0.0
    %1114 = vmatpush1.msra.mxu0 0.0
    %1115 = vmatprep.subr.mxu0 0.0
    %1116 = vmatpush1.msra.mxu0 0.0
    %1117 = vmatprep.subr.mxu0 0.0
    %1118 = vmatpush1.msra.mxu0 0.0
    %1119 = vmatprep.subr.mxu0 0.0
    %1120 = vmatpush1.msra.mxu0 0.0
    %1121 = vmatprep.subr.mxu0 0.0
    %1122 = vmatpush1.msra.mxu0 0.0
    %1123 = vmatprep.subr.mxu0 0.0
    %1124 = vmatpush1.msra.mxu0 0.0
    %1125 = vmatprep.subr.mxu0 0.0
    %1126 = vmatpush1.msra.mxu0 0.0
    %1127 = vmatprep.subr.mxu0 0.0
    %1128 = vmatpush1.msra.mxu0 0.0
    %1129 = vmatprep.subr.mxu0 0.0
    %1130 = vmatpush1.msra.mxu0 0.0
    %1131 = vmatprep.subr.mxu0 0.0
    %1132 = vmatpush1.msra.mxu0 0.0
    %1133 = vmatprep.subr.mxu0 0.0
    %1134 = vmatpush1.msra.mxu0 0.0
    %1135 = vmatprep.subr.mxu0 0.0
    %1136 = vmatpush1.msra.mxu0 0.0
    %1137 = vmatprep.mubr.f32.mxu0 0.0
    %1138 = vmatmul.mubr.f32.gmra.mrb[0].mxu0 %v1062
    %v1139 = vpop.f32.mrb[0].mxu0
    %v1140 = vadd.f32 %v1060, %v1139
    %v1141 = vpop.f32.mrb[0].mxu0
    %1142 = vmatprep.mubr.f32.mxu0 0.0
    %1143 = vmatmul.mubr.f32.gmra.mrb[0].mxu0 %v1065
    %v1144 = vpop.f32.mrb[0].mxu0
    %v1145 = vadd.f32 %v1060, %v1144
    %v1146 = vpop.f32.mrb[0].mxu0
    %1147 = vmatprep.mubr.f32.mxu0 0.0
    %1148 = vmatmul.mubr.f32.gmra.mrb[0].mxu0 %v1068
    %v1149 = vpop.f32.mrb[0].mxu0
    %v1150 = vadd.f32 %v1060, %v1149
    %v1151 = vpop.f32.mrb[0].mxu0
    %1152 = vmatprep.mubr.f32.mxu0 0.0
    %1153 = vmatmul.mubr.f32.gmra.mrb[0].mxu0 %v1071
    %v1154 = vpop.f32.mrb[0].mxu0
    %v1155 = vadd.f32 %v1060, %v1154
    %v1156 = vpop.f32.mrb[0].mxu0
    %1157 = vdwg.mxu0
    %v1158 = vmul.f32 %v1140, %v1140
    %v1159 = vmul.f32 %v1145, %v1145
    %v1160 = vmul.f32 %v1150, %v1150
    %v1161 = vmul.f32 %v1155, %v1155
    %v1162 = vmul.f32 %v1140, %v1158
    %v1163 = vmul.f32 %v1145, %v1159
    %v1164 = vmul.f32 %v1150, %v1160
    %v1165 = vmul.f32 %v1155, %v1161
    %v1166 = vmul.f32 %v1162, 0.044715
    %v1167 = vmul.f32 %v1163, 0.044715
    %v1168 = vmul.f32 %v1164, 0.044715
    %v1169 = vmul.f32 %v1165, 0.044715
    %v1170 = vadd.f32 %v1140, %v1166
    %v1171 = vadd.f32 %v1145, %v1167
    %v1172 = vadd.f32 %v1150, %v1168
    %v1173 = vadd.f32 %v1155, %v1169
    %v1174 = vmul.f32 %v1170, 0.7978846
    %v1175 = vmul.f32 %v1171, 0.7978846
    %v1176 = vmul.f32 %v1172, 0.7978846
    %v1177 = vmul.f32 %v1173, 0.7978846
    %v1178 = vtanh.pop %v1174
    %v1179 = vtanh.pop %v1175
    %v1180 = vtanh.pop %v1176
    %v1181 = vtanh.pop %v1177
    %v1182 = vadd.f32 %v1178, 1.0
    %v1183 = vadd.f32 %v1179, 1.0
    %v1184 = vadd.f32 %v1180, 1.0
    %v1185 = vadd.f32 %v1181, 1.0
    %v1186 = vmul.f32 %v1182, 0.5
    %v1187 = vmul.f32 %v1183, 0.5
    %v1188 = vmul.f32 %v1184, 0.5
    %v1189 = vmul.f32 %v1185, 0.5
    %v1190 = vmul.f32 %v1140, %v1186
    %v1191 = vmul.f32 %v1145, %v1187
    %v1192 = vmul.f32 %v1150, %v1188
    %v1193 = vmul.f32 %v1155, %v1189
    %1195 = vrot.lane.b32.xlu0 %v1060, 64
    %v1196 = vpop.permute.xlu0 %1195
    %vm1198 = vcmask 523264
    %v1200 = vsel %vm1198, %v1190, 0
    %v1203 = vsel %vm1198, %v1191, 0
    %v1206 = vsel %vm1198, %v1192, 0
    %v1209 = vsel %vm1198, %v1193, 0
    %1211 = vmatprep.subr.mxu0 0.0
    %1212 = vmatpush1.msra.mxu0 %v1049
    %1213 = vmatprep.subr.mxu0 0.0
    %1214 = vmatpush1.msra.mxu0 %v1050
    %1215 = vmatprep.subr.mxu0 0.0
    %1216 = vmatpush1.msra.mxu0 %v1051
    %1217 = vmatprep.subr.mxu0 0.0
    %1218 = vmatpush1.msra.mxu0 %v1052
    %1219 = vmatprep.subr.mxu0 0.0
    %1220 = vmatpush1.msra.mxu0 %v1053
    %1221 = vmatprep.subr.mxu0 0.0
    %1222 = vmatpush1.msra.mxu0 %v1054
    %1223 = vmatprep.subr.mxu0 0.0
    %1224 = vmatpush1.msra.mxu0 %v1055
    %1225 = vmatprep.subr.mxu0 0.0
    %1226 = vmatpush1.msra.mxu0 %v1056
    %1227 = vmatprep.subr.mxu0 0.0
    %1228 = vmatpush1.msra.mxu0 0.0
    %1229 = vmatprep.subr.mxu0 0.0
    %1230 = vmatpush1.msra.mxu0 0.0
    %1231 = vmatprep.subr.mxu0 0.0
    %1232 = vmatpush1.msra.mxu0 0.0
    %1233 = vmatprep.subr.mxu0 0.0
    %1234 = vmatpush1.msra.mxu0 0.0
    %1235 = vmatprep.subr.mxu0 0.0
    %1236 = vmatpush1.msra.mxu0 0.0
    %1237 = vmatprep.subr.mxu0 0.0
    %1238 = vmatpush1.msra.mxu0 0.0
    %1239 = vmatprep.subr.mxu0 0.0
    %1240 = vmatpush1.msra.mxu0 0.0
    %1241 = vmatprep.subr.mxu0 0.0
    %1242 = vmatpush1.msra.mxu0 0.0
    %1243 = vmatprep.subr.mxu0 0.0
    %1244 = vmatpush1.msra.mxu0 0.0
    %1245 = vmatprep.subr.mxu0 0.0
    %1246 = vmatpush1.msra.mxu0 0.0
    %1247 = vmatprep.subr.mxu0 0.0
    %1248 = vmatpush1.msra.mxu0 0.0
    %1249 = vmatprep.subr.mxu0 0.0
    %1250 = vmatpush1.msra.mxu0 0.0
    %1251 = vmatprep.subr.mxu0 0.0
    %1252 = vmatpush1.msra.mxu0 0.0
    %1253 = vmatprep.subr.mxu0 0.0
    %1254 = vmatpush1.msra.mxu0 0.0
    %1255 = vmatprep.subr.mxu0 0.0
    %1256 = vmatpush1.msra.mxu0 0.0
    %1257 = vmatprep.subr.mxu0 0.0
    %1258 = vmatpush1.msra.mxu0 0.0
    %1259 = vmatprep.subr.mxu0 0.0
    %1260 = vmatpush1.msra.mxu0 0.0
    %1261 = vmatprep.subr.mxu0 0.0
    %1262 = vmatpush1.msra.mxu0 0.0
    %1263 = vmatprep.subr.mxu0 0.0
    %1264 = vmatpush1.msra.mxu0 0.0
    %1265 = vmatprep.subr.mxu0 0.0
    %1266 = vmatpush1.msra.mxu0 0.0
    %1267 = vmatprep.subr.mxu0 0.0
    %1268 = vmatpush1.msra.mxu0 0.0
    %1269 = vmatprep.subr.mxu0 0.0
    %1270 = vmatpush1.msra.mxu0 0.0
    %1271 = vmatprep.subr.mxu0 0.0
    %1272 = vmatpush1.msra.mxu0 0.0
    %1273 = vmatprep.subr.mxu0 0.0
    %1274 = vmatpush1.msra.mxu0 0.0
    %1275 = vmatprep.mubr.f32.mxu0 0.0
    %1276 = vmatmul.mubr.f32.gmra.mrb[0].mxu0 %v1200
    %v1277 = vpop.f32.mrb[0].mxu0
    %v1278 = vadd.f32 %v1196, %v1277
    %v1279 = vpop.f32.mrb[0].mxu0
    %1280 = vmatprep.mubr.f32.mxu0 0.0
    %1281 = vmatmul.mubr.f32.gmra.mrb[0].mxu0 %v1203
    %v1282 = vpop.f32.mrb[0].mxu0
    %v1283 = vadd.f32 %v1196, %v1282
    %v1284 = vpop.f32.mrb[0].mxu0
    %1285 = vmatprep.mubr.f32.mxu0 0.0
    %1286 = vmatmul.mubr.f32.gmra.mrb[0].mxu0 %v1206
    %v1287 = vpop.f32.mrb[0].mxu0
    %v1288 = vadd.f32 %v1196, %v1287
    %v1289 = vpop.f32.mrb[0].mxu0
    %1290 = vmatprep.mubr.f32.mxu0 0.0
    %1291 = vmatmul.mubr.f32.gmra.mrb[0].mxu0 %v1209
    %v1292 = vpop.f32.mrb[0].mxu0
    %v1293 = vadd.f32 %v1196, %v1292
    %v1294 = vpop.f32.mrb[0].mxu0
    %1295 = vdwg.mxu0
    %v1296 = vadd.f32 %v1278, %v1041
    %v1297 = vadd.f32 %v1283, %v1042
    %v1298 = vadd.f32 %v1288, %v1043
    %v1299 = vadd.f32 %v1293, %v1044
    %v1300 = vsel %vm40, %v1296, 0.0
    %1301 = vadd.xlane.f32.xlu0 %v1300
    %v1302 = vpop.xlane.xlu0 %1301
    %v1303 = vsel %vm40, %v1297, 0.0
    %1304 = vadd.xlane.f32.xlu0 %v1303
    %v1305 = vpop.xlane.xlu0 %1304
    %v1306 = vsel %vm40, %v1298, 0.0
    %1307 = vadd.xlane.f32.xlu0 %v1306
    %v1308 = vpop.xlane.xlu0 %1307
    %v1309 = vsel %vm40, %v1299, 0.0
    %1310 = vadd.xlane.f32.xlu0 %v1309
    %v1311 = vpop.xlane.xlu0 %1310
    %v1312 = vmul.f32 %v1302, %v53
    %v1313 = vmul.f32 %v1305, %v53
    %v1314 = vmul.f32 %v1308, %v53
    %v1315 = vmul.f32 %v1311, %v53
    %v1316 = vsub.f32 %v1296, %v1312
    %v1317 = vsub.f32 %v1297, %v1313
    %v1318 = vsub.f32 %v1298, %v1314
    %v1319 = vsub.f32 %v1299, %v1315
    %v1320 = vmul.f32 %v1316, %v1316
    %v1321 = vmul.f32 %v1317, %v1317
    %v1322 = vmul.f32 %v1318, %v1318
    %v1323 = vmul.f32 %v1319, %v1319
    %v1324 = vsel %vm40, %v1320, 0.0
    %1325 = vadd.xlane.f32.xlu0 %v1324
    %v1326 = vpop.xlane.xlu0 %1325
    %v1327 = vsel %vm40, %v1321, 0.0
    %1328 = vadd.xlane.f32.xlu0 %v1327
    %v1329 = vpop.xlane.xlu0 %1328
    %v1330 = vsel %vm40, %v1322, 0.0
    %1331 = vadd.xlane.f32.xlu0 %v1330
    %v1332 = vpop.xlane.xlu0 %1331
    %v1333 = vsel %vm40, %v1323, 0.0
    %1334 = vadd.xlane.f32.xlu0 %v1333
    %v1335 = vpop.xlane.xlu0 %1334
    %v1336 = vmul.f32 %v1326, %v53
    %v1337 = vmul.f32 %v1329, %v53
    %v1338 = vmul.f32 %v1332, %v53
    %v1339 = vmul.f32 %v1335, %v53
    %v1340 = vadd.f32 %v1336, 1e-12
    %v1341 = vadd.f32 %v1337, 1e-12
    %v1342 = vadd.f32 %v1338, 1e-12
    %v1343 = vadd.f32 %v1339, 1e-12
    %v1344 = vrsqrt.pop %v1340
    %v1345 = vrsqrt.pop %v1341
    %v1346 = vrsqrt.pop %v1342
    %v1347 = vrsqrt.pop %v1343
    %v1348 = vmul.f32 %v1316, %v1344
    %v1349 = vmul.f32 %v1317, %v1345
    %v1350 = vmul.f32 %v1318, %v1346
    %v1351 = vmul.f32 %v1319, %v1347
    %1352 = vrot.lane.b32.xlu0 %v1032, 64
    %v1353 = vpop.permute.xlu0 %1352
    %v1355 = vmul.f32 %v1348, %v1353
    %v1356 = vmul.f32 %v1349, %v1353
    %v1357 = vmul.f32 %v1350, %v1353
    %v1358 = vmul.f32 %v1351, %v1353
    %1359 = vrot.lane.b32.xlu0 %v1032, 32
    %v1360 = vpop.permute.xlu0 %1359
    %v1362 = vadd.f32 %v1355, %v1360
    %v1363 = vadd.f32 %v1356, %v1360
    %v1364 = vadd.f32 %v1357, %v1360
    %v1365 = vadd.f32 %v1358, %v1360
    %s1366 = scalar_lea.vmem %s2, 32
    %v1367 = vld [vmem:[%s1366] sm:$0xff]
    %v1368 = vld [vmem:[%s1366 + $0x8] sm:$0xff]
    %v1369 = vld [vmem:[%s1366 + $0x10] sm:$0xff]
    %v1370 = vld [vmem:[%s1366 + $0x18] sm:$0xff]
    %s1371 = scalar_lea.vmem %s3, 1
    %v1372 = vld [vmem:[%s1371] sm:$0x1]
    %s1373 = scalar_lea.vmem %s5, 2
    %v1374 = vld [vmem:[%s1373] sm:$0x3]
    %v1376 = vlaneseq
    %v1377 = vshrl.u32 %v1376, 7
    %v1378 = vsub.s32 0, %v1377
    %v1379 = vrot.slane %v1372, %v1378
    %v1382 = vsel %vm40, %v1362, 0
    %v1385 = vsel %vm40, %v1363, 0
    %v1388 = vsel %vm40, %v1364, 0
    %v1391 = vsel %vm40, %v1365, 0
    %1393 = vmatprep.subr.mxu0 0.0
    %1394 = vmatpush1.msra.mxu0 %v1367
    %1395 = vmatprep.subr.mxu0 0.0
    %1396 = vmatpush1.msra.mxu0 %v1368
    %1397 = vmatprep.subr.mxu0 0.0
    %1398 = vmatpush1.msra.mxu0 %v1369
    %1399 = vmatprep.subr.mxu0 0.0
    %1400 = vmatpush1.msra.mxu0 %v1370
    %1401 = vmatprep.subr.mxu0 0.0
    %1402 = vmatpush1.msra.mxu0 0.0
    %1403 = vmatprep.subr.mxu0 0.0
    %1404 = vmatpush1.msra.mxu0 0.0
    %1405 = vmatprep.subr.mxu0 0.0
    %1406 = vmatpush1.msra.mxu0 0.0
    %1407 = vmatprep.subr.mxu0 0.0
    %1408 = vmatpush1.msra.mxu0 0.0
    %1409 = vmatprep.subr.mxu0 0.0
    %1410 = vmatpush1.msra.mxu0 0.0
    %1411 = vmatprep.subr.mxu0 0.0
    %1412 = vmatpush1.msra.mxu0 0.0
    %1413 = vmatprep.subr.mxu0 0.0
    %1414 = vmatpush1.msra.mxu0 0.0
    %1415 = vmatprep.subr.mxu0 0.0
    %1416 = vmatpush1.msra.mxu0 0.0
    %1417 = vmatprep.subr.mxu0 0.0
    %1418 = vmatpush1.msra.mxu0 0.0
    %1419 = vmatprep.subr.mxu0 0.0
    %1420 = vmatpush1.msra.mxu0 0.0
    %1421 = vmatprep.subr.mxu0 0.0
    %1422 = vmatpush1.msra.mxu0 0.0
    %1423 = vmatprep.subr.mxu0 0.0
    %1424 = vmatpush1.msra.mxu0 0.0
    %1425 = vmatprep.subr.mxu0 0.0
    %1426 = vmatpush1.msra.mxu0 0.0
    %1427 = vmatprep.subr.mxu0 0.0
    %1428 = vmatpush1.msra.mxu0 0.0
    %1429 = vmatprep.subr.mxu0 0.0
    %1430 = vmatpush1.msra.mxu0 0.0
    %1431 = vmatprep.subr.mxu0 0.0
    %1432 = vmatpush1.msra.mxu0 0.0
    %1433 = vmatprep.subr.mxu0 0.0
    %1434 = vmatpush1.msra.mxu0 0.0
    %1435 = vmatprep.subr.mxu0 0.0
    %1436 = vmatpush1.msra.mxu0 0.0
    %1437 = vmatprep.subr.mxu0 0.0
    %1438 = vmatpush1.msra.mxu0 0.0
    %1439 = vmatprep.subr.mxu0 0.0
    %1440 = vmatpush1.msra.mxu0 0.0
    %1441 = vmatprep.subr.mxu0 0.0
    %1442 = vmatpush1.msra.mxu0 0.0
    %1443 = vmatprep.subr.mxu0 0.0
    %1444 = vmatpush1.msra.mxu0 0.0
    %1445 = vmatprep.subr.mxu0 0.0
    %1446 = vmatpush1.msra.mxu0 0.0
    %1447 = vmatprep.subr.mxu0 0.0
    %1448 = vmatpush1.msra.mxu0 0.0
    %1449 = vmatprep.subr.mxu0 0.0
    %1450 = vmatpush1.msra.mxu0 0.0
    %1451 = vmatprep.subr.mxu0 0.0
    %1452 = vmatpush1.msra.mxu0 0.0
    %1453 = vmatprep.subr.mxu0 0.0
    %1454 = vmatpush1.msra.mxu0 0.0
    %1455 = vmatprep.subr.mxu0 0.0
    %1456 = vmatpush1.msra.mxu0 0.0
    %1457 = vmatprep.mubr.f32.mxu0 0.0
    %1458 = vmatmul.mubr.f32.gmra.mrb[0].mxu0 %v1382
    %v1459 = vpop.f32.mrb[0].mxu0
    %v1460 = vadd.f32 %v1379, %v1459
    %v1461 = vpop.f32.mrb[0].mxu0
    %1462 = vmatprep.mubr.f32.mxu0 0.0
    %1463 = vmatmul.mubr.f32.gmra.mrb[0].mxu0 %v1385
    %v1464 = vpop.f32.mrb[0].mxu0
    %v1465 = vadd.f32 %v1379, %v1464
    %v1466 = vpop.f32.mrb[0].mxu0
    %1467 = vmatprep.mubr.f32.mxu0 0.0
    %1468 = vmatmul.mubr.f32.gmra.mrb[0].mxu0 %v1388
    %v1469 = vpop.f32.mrb[0].mxu0
    %v1470 = vadd.f32 %v1379, %v1469
    %v1471 = vpop.f32.mrb[0].mxu0
    %1472 = vmatprep.mubr.f32.mxu0 0.0
    %1473 = vmatmul.mubr.f32.gmra.mrb[0].mxu0 %v1391
    %v1474 = vpop.f32.mrb[0].mxu0
    %v1475 = vadd.f32 %v1379, %v1474
    %v1476 = vpop.f32.mrb[0].mxu0
    %1477 = vdwg.mxu0
    %1482 = vrot.lane.b32.xlu0 %v1460, 96
    %v1483 = vpop.permute.xlu0 %1482
    %1484 = vrot.lane.b32.xlu0 %v1465, 96
    %v1485 = vpop.permute.xlu0 %1484
    %1486 = vrot.lane.b32.xlu0 %v1470, 96
    %v1487 = vpop.permute.xlu0 %1486
    %1488 = vrot.lane.b32.xlu0 %v1475, 96
    %v1489 = vpop.permute.xlu0 %1488
    %v1490 = vsel %vm231, %v1460, 0
    %v1492 = vsel %vm231, %v1465, 0
    %v1494 = vsel %vm231, %v1470, 0
    %v1496 = vsel %vm231, %v1475, 0
    %v1498 = vsel %vm231, %v1483, 0
    %v1500 = vsel %vm231, %v1485, 0
    %v1502 = vsel %vm231, %v1487, 0
    %v1504 = vsel %vm231, %v1489, 0
    %1506 = vmatprep.subr.mxu0 0.0
    %1507 = vmatpush1.xpose.msra.mxu0 %v1498
    %1508 = vmatprep.subr.mxu0 0.0
    %1509 = vmatpush1.xpose.msra.mxu0 %v1500
    %1510 = vmatprep.subr.mxu0 0.0
    %1511 = vmatpush1.xpose.msra.mxu0 %v1502
    %1512 = vmatprep.subr.mxu0 0.0
    %1513 = vmatpush1.xpose.msra.mxu0 %v1504
    %1514 = vmatprep.subr.mxu0 0.0
    %1515 = vmatpush1.xpose.msra.mxu0 0.0
    %1516 = vmatprep.subr.mxu0 0.0
    %1517 = vmatpush1.xpose.msra.mxu0 0.0
    %1518 = vmatprep.subr.mxu0 0.0
    %1519 = vmatpush1.xpose.msra.mxu0 0.0
    %1520 = vmatprep.subr.mxu0 0.0
    %1521 = vmatpush1.xpose.msra.mxu0 0.0
    %1522 = vmatprep.subr.mxu0 0.0
    %1523 = vmatpush1.xpose.msra.mxu0 0.0
    %1524 = vmatprep.subr.mxu0 0.0
    %1525 = vmatpush1.xpose.msra.mxu0 0.0
    %1526 = vmatprep.subr.mxu0 0.0
    %1527 = vmatpush1.xpose.msra.mxu0 0.0
    %1528 = vmatprep.subr.mxu0 0.0
    %1529 = vmatpush1.xpose.msra.mxu0 0.0
    %1530 = vmatprep.subr.mxu0 0.0
    %1531 = vmatpush1.xpose.msra.mxu0 0.0
    %1532 = vmatprep.subr.mxu0 0.0
    %1533 = vmatpush1.xpose.msra.mxu0 0.0
    %1534 = vmatprep.subr.mxu0 0.0
    %1535 = vmatpush1.xpose.msra.mxu0 0.0
    %1536 = vmatprep.subr.mxu0 0.0
    %1537 = vmatpush1.xpose.msra.mxu0 0.0
    %1538 = vmatprep.subr.mxu0 0.0
    %1539 = vmatpush1.xpose.msra.mxu0 0.0
    %1540 = vmatprep.subr.mxu0 0.0
    %1541 = vmatpush1.xpose.msra.mxu0 0.0
    %1542 = vmatprep.subr.mxu0 0.0
    %1543 = vmatpush1.xpose.msra.mxu0 0.0
    %1544 = vmatprep.subr.mxu0 0.0
    %1545 = vmatpush1.xpose.msra.mxu0 0.0
    %1546 = vmatprep.subr.mxu0 0.0
    %1547 = vmatpush1.xpose.msra.mxu0 0.0
    %1548 = vmatprep.subr.mxu0 0.0
    %1549 = vmatpush1.xpose.msra.mxu0 0.0
    %1550 = vmatprep.subr.mxu0 0.0
    %1551 = vmatpush1.xpose.msra.mxu0 0.0
    %1552 = vmatprep.subr.mxu0 0.0
    %1553 = vmatpush1.xpose.msra.mxu0 0.0
    %1554 = vmatprep.subr.mxu0 0.0
    %1555 = vmatpush1.xpose.msra.mxu0 0.0
    %1556 = vmatprep.subr.mxu0 0.0
    %1557 = vmatpush1.xpose.msra.mxu0 0.0
    %1558 = vmatprep.subr.mxu0 0.0
    %1559 = vmatpush1.xpose.msra.mxu0 0.0
    %1560 = vmatprep.subr.mxu0 0.0
    %1561 = vmatpush1.xpose.msra.mxu0 0.0
    %1562 = vmatprep.subr.mxu0 0.0
    %1563 = vmatpush1.xpose.msra.mxu0 0.0
    %1564 = vmatprep.subr.mxu0 0.0
    %1565 = vmatpush1.xpose.msra.mxu0 0.0
    %1566 = vmatprep.subr.mxu0 0.0
    %1567 = vmatpush1.xpose.msra.mxu0 0.0
    %1568 = vmatprep.subr.mxu0 0.0
    %1569 = vmatpush1.xpose.msra.mxu0 0.0
    %1570 = vmatprep.mubr.f32.mxu0 0.0
    %1571 = vmatmul.mubr.f32.gmra.mrb[0].mxu0 %v1490
    %v1572 = vpop.f32.mrb[0].mxu0
    %v1573 = vadd.f32 %v32, %v1572
    %v1574 = vpop.f32.mrb[0].mxu0
    %1575 = vmatprep.mubr.f32.mxu0 0.0
    %1576 = vmatmul.mubr.f32.gmra.mrb[0].mxu0 %v1492
    %v1577 = vpop.f32.mrb[0].mxu0
    %v1578 = vadd.f32 %v33, %v1577
    %v1579 = vpop.f32.mrb[0].mxu0
    %1580 = vmatprep.mubr.f32.mxu0 0.0
    %1581 = vmatmul.mubr.f32.gmra.mrb[0].mxu0 %v1494
    %v1582 = vpop.f32.mrb[0].mxu0
    %v1583 = vadd.f32 %v34, %v1582
    %v1584 = vpop.f32.mrb[0].mxu0
    %1585 = vmatprep.mubr.f32.mxu0 0.0
    %1586 = vmatmul.mubr.f32.gmra.mrb[0].mxu0 %v1496
    %v1587 = vpop.f32.mrb[0].mxu0
    %v1588 = vadd.f32 %v35, %v1587
    %v1589 = vpop.f32.mrb[0].mxu0
    %1590 = vdwg.mxu0
    %v1591 = vsel %vm40, %v1573, -inf
    %1592 = vmax.xlane.f32.xlu0 %v1591
    %v1593 = vpop.xlane.xlu0 %1592
    %v1594 = vsel %vm40, %v1578, -inf
    %1595 = vmax.xlane.f32.xlu0 %v1594
    %v1596 = vpop.xlane.xlu0 %1595
    %v1597 = vsel %vm40, %v1583, -inf
    %1598 = vmax.xlane.f32.xlu0 %v1597
    %v1599 = vpop.xlane.xlu0 %1598
    %v1600 = vsel %vm40, %v1588, -inf
    %1601 = vmax.xlane.f32.xlu0 %v1600
    %v1602 = vpop.xlane.xlu0 %1601
    %v1603 = vsub.f32 %v1573, %v1593
    %v1604 = vsub.f32 %v1578, %v1596
    %v1605 = vsub.f32 %v1583, %v1599
    %v1606 = vsub.f32 %v1588, %v1602
    %v1607 = vmul.f32 %v1603, 1.442695
    %v1608 = vpow.pop %v1607
    %v1609 = vmul.f32 %v1604, 1.442695
    %v1610 = vpow.pop %v1609
    %v1611 = vmul.f32 %v1605, 1.442695
    %v1612 = vpow.pop %v1611
    %v1613 = vmul.f32 %v1606, 1.442695
    %v1614 = vpow.pop %v1613
    %v1615 = vsel %vm40, %v1608, 0.0
    %1616 = vadd.xlane.f32.xlu0 %v1615
    %v1617 = vpop.xlane.xlu0 %1616
    %v1618 = vsel %vm40, %v1610, 0.0
    %1619 = vadd.xlane.f32.xlu0 %v1618
    %v1620 = vpop.xlane.xlu0 %1619
    %v1621 = vsel %vm40, %v1612, 0.0
    %1622 = vadd.xlane.f32.xlu0 %v1621
    %v1623 = vpop.xlane.xlu0 %1622
    %v1624 = vsel %vm40, %v1614, 0.0
    %1625 = vadd.xlane.f32.xlu0 %v1624
    %v1626 = vpop.xlane.xlu0 %1625
    %v1627 = vrcp.pop %v1617
    %v1628 = vmul.f32 %v1608, %v1627
    %v1629 = vrcp.pop %v1620
    %v1630 = vmul.f32 %v1610, %v1629
    %v1631 = vrcp.pop %v1623
    %v1632 = vmul.f32 %v1612, %v1631
    %v1633 = vrcp.pop %v1626
    %v1634 = vmul.f32 %v1614, %v1633
    %1635 = vrot.lane.b32.xlu0 %v1460, 64
    %v1636 = vpop.permute.xlu0 %1635
    %1637 = vrot.lane.b32.xlu0 %v1465, 64
    %v1638 = vpop.permute.xlu0 %1637
    %1639 = vrot.lane.b32.xlu0 %v1470, 64
    %v1640 = vpop.permute.xlu0 %1639
    %1641 = vrot.lane.b32.xlu0 %v1475, 64
    %v1642 = vpop.permute.xlu0 %1641
    %v1648 = vsel %vm40, %v1628, 0
    %v1651 = vsel %vm40, %v1630, 0
    %v1654 = vsel %vm40, %v1632, 0
    %v1657 = vsel %vm40, %v1634, 0
    %1659 = vmatprep.subr.mxu0 0.0
    %1660 = vmatpush1.msra.mxu0 %v1636
    %1661 = vmatprep.subr.mxu0 0.0
    %1662 = vmatpush1.msra.mxu0 %v1638
    %1663 = vmatprep.subr.mxu0 0.0
    %1664 = vmatpush1.msra.mxu0 %v1640
    %1665 = vmatprep.subr.mxu0 0.0
    %1666 = vmatpush1.msra.mxu0 %v1642
    %1667 = vmatprep.subr.mxu0 0.0
    %1668 = vmatpush1.msra.mxu0 0.0
    %1669 = vmatprep.subr.mxu0 0.0
    %1670 = vmatpush1.msra.mxu0 0.0
    %1671 = vmatprep.subr.mxu0 0.0
    %1672 = vmatpush1.msra.mxu0 0.0
    %1673 = vmatprep.subr.mxu0 0.0
    %1674 = vmatpush1.msra.mxu0 0.0
    %1675 = vmatprep.subr.mxu0 0.0
    %1676 = vmatpush1.msra.mxu0 0.0
    %1677 = vmatprep.subr.mxu0 0.0
    %1678 = vmatpush1.msra.mxu0 0.0
    %1679 = vmatprep.subr.mxu0 0.0
    %1680 = vmatpush1.msra.mxu0 0.0
    %1681 = vmatprep.subr.mxu0 0.0
    %1682 = vmatpush1.msra.mxu0 0.0
    %1683 = vmatprep.subr.mxu0 0.0
    %1684 = vmatpush1.msra.mxu0 0.0
    %1685 = vmatprep.subr.mxu0 0.0
    %1686 = vmatpush1.msra.mxu0 0.0
    %1687 = vmatprep.subr.mxu0 0.0
    %1688 = vmatpush1.msra.mxu0 0.0
    %1689 = vmatprep.subr.mxu0 0.0
    %1690 = vmatpush1.msra.mxu0 0.0
    %1691 = vmatprep.subr.mxu0 0.0
    %1692 = vmatpush1.msra.mxu0 0.0
    %1693 = vmatprep.subr.mxu0 0.0
    %1694 = vmatpush1.msra.mxu0 0.0
    %1695 = vmatprep.subr.mxu0 0.0
    %1696 = vmatpush1.msra.mxu0 0.0
    %1697 = vmatprep.subr.mxu0 0.0
    %1698 = vmatpush1.msra.mxu0 0.0
    %1699 = vmatprep.subr.mxu0 0.0
    %1700 = vmatpush1.msra.mxu0 0.0
    %1701 = vmatprep.subr.mxu0 0.0
    %1702 = vmatpush1.msra.mxu0 0.0
    %1703 = vmatprep.subr.mxu0 0.0
    %1704 = vmatpush1.msra.mxu0 0.0
    %1705 = vmatprep.subr.mxu0 0.0
    %1706 = vmatpush1.msra.mxu0 0.0
    %1707 = vmatprep.subr.mxu0 0.0
    %1708 = vmatpush1.msra.mxu0 0.0
    %1709 = vmatprep.subr.mxu0 0.0
    %1710 = vmatpush1.msra.mxu0 0.0
    %1711 = vmatprep.subr.mxu0 0.0
    %1712 = vmatpush1.msra.mxu0 0.0
    %1713 = vmatprep.subr.mxu0 0.0
    %1714 = vmatpush1.msra.mxu0 0.0
    %1715 = vmatprep.subr.mxu0 0.0
    %1716 = vmatpush1.msra.mxu0 0.0
    %1717 = vmatprep.subr.mxu0 0.0
    %1718 = vmatpush1.msra.mxu0 0.0
    %1719 = vmatprep.subr.mxu0 0.0
    %1720 = vmatpush1.msra.mxu0 0.0
    %1721 = vmatprep.subr.mxu0 0.0
    %1722 = vmatpush1.msra.mxu0 0.0
    %1723 = vmatprep.mubr.f32.mxu0 0.0
    %1724 = vmatmul.mubr.f32.gmra.mrb[0].mxu0 %v1648
    %v1725 = vpop.f32.mrb[0].mxu0
    %v1726 = vadd.f32 0.0, %v1725
    %v1727 = vpop.f32.mrb[0].mxu0
    %1728 = vmatprep.mubr.f32.mxu0 0.0
    %1729 = vmatmul.mubr.f32.gmra.mrb[0].mxu0 %v1651
    %v1730 = vpop.f32.mrb[0].mxu0
    %v1731 = vadd.f32 0.0, %v1730
    %v1732 = vpop.f32.mrb[0].mxu0
    %1733 = vmatprep.mubr.f32.mxu0 0.0
    %1734 = vmatmul.mubr.f32.gmra.mrb[0].mxu0 %v1654
    %v1735 = vpop.f32.mrb[0].mxu0
    %v1736 = vadd.f32 0.0, %v1735
    %v1737 = vpop.f32.mrb[0].mxu0
    %1738 = vmatprep.mubr.f32.mxu0 0.0
    %1739 = vmatmul.mubr.f32.gmra.mrb[0].mxu0 %v1657
    %v1740 = vpop.f32.mrb[0].mxu0
    %v1741 = vadd.f32 0.0, %v1740
    %v1742 = vpop.f32.mrb[0].mxu0
    %1743 = vdwg.mxu0
    %1744 = vrot.lane.b32.xlu0 %v1460, 112
    %v1745 = vpop.permute.xlu0 %1744
    %1746 = vrot.lane.b32.xlu0 %v1465, 112
    %v1747 = vpop.permute.xlu0 %1746
    %1748 = vrot.lane.b32.xlu0 %v1470, 112
    %v1749 = vpop.permute.xlu0 %1748
    %1750 = vrot.lane.b32.xlu0 %v1475, 112
    %v1751 = vpop.permute.xlu0 %1750
    %1752 = vrot.lane.b32.xlu0 %v1460, 80
    %v1753 = vpop.permute.xlu0 %1752
    %1754 = vrot.lane.b32.xlu0 %v1465, 80
    %v1755 = vpop.permute.xlu0 %1754
    %1756 = vrot.lane.b32.xlu0 %v1470, 80
    %v1757 = vpop.permute.xlu0 %1756
    %1758 = vrot.lane.b32.xlu0 %v1475, 80
    %v1759 = vpop.permute.xlu0 %1758
    %v1760 = vsel %vm231, %v1745, 0
    %v1762 = vsel %vm231, %v1747, 0
    %v1764 = vsel %vm231, %v1749, 0
    %v1766 = vsel %vm231, %v1751, 0
    %v1768 = vsel %vm231, %v1753, 0
    %v1770 = vsel %vm231, %v1755, 0
    %v1772 = vsel %vm231, %v1757, 0
    %v1774 = vsel %vm231, %v1759, 0
    %1776 = vmatprep.subr.mxu0 0.0
    %1777 = vmatpush1.xpose.msra.mxu0 %v1768
    %1778 = vmatprep.subr.mxu0 0.0
    %1779 = vmatpush1.xpose.msra.mxu0 %v1770
    %1780 = vmatprep.subr.mxu0 0.0
    %1781 = vmatpush1.xpose.msra.mxu0 %v1772
    %1782 = vmatprep.subr.mxu0 0.0
    %1783 = vmatpush1.xpose.msra.mxu0 %v1774
    %1784 = vmatprep.subr.mxu0 0.0
    %1785 = vmatpush1.xpose.msra.mxu0 0.0
    %1786 = vmatprep.subr.mxu0 0.0
    %1787 = vmatpush1.xpose.msra.mxu0 0.0
    %1788 = vmatprep.subr.mxu0 0.0
    %1789 = vmatpush1.xpose.msra.mxu0 0.0
    %1790 = vmatprep.subr.mxu0 0.0
    %1791 = vmatpush1.xpose.msra.mxu0 0.0
    %1792 = vmatprep.subr.mxu0 0.0
    %1793 = vmatpush1.xpose.msra.mxu0 0.0
    %1794 = vmatprep.subr.mxu0 0.0
    %1795 = vmatpush1.xpose.msra.mxu0 0.0
    %1796 = vmatprep.subr.mxu0 0.0
    %1797 = vmatpush1.xpose.msra.mxu0 0.0
    %1798 = vmatprep.subr.mxu0 0.0
    %1799 = vmatpush1.xpose.msra.mxu0 0.0
    %1800 = vmatprep.subr.mxu0 0.0
    %1801 = vmatpush1.xpose.msra.mxu0 0.0
    %1802 = vmatprep.subr.mxu0 0.0
    %1803 = vmatpush1.xpose.msra.mxu0 0.0
    %1804 = vmatprep.subr.mxu0 0.0
    %1805 = vmatpush1.xpose.msra.mxu0 0.0
    %1806 = vmatprep.subr.mxu0 0.0
    %1807 = vmatpush1.xpose.msra.mxu0 0.0
    %1808 = vmatprep.subr.mxu0 0.0
    %1809 = vmatpush1.xpose.msra.mxu0 0.0
    %1810 = vmatprep.subr.mxu0 0.0
    %1811 = vmatpush1.xpose.msra.mxu0 0.0
    %1812 = vmatprep.subr.mxu0 0.0
    %1813 = vmatpush1.xpose.msra.mxu0 0.0
    %1814 = vmatprep.subr.mxu0 0.0
    %1815 = vmatpush1.xpose.msra.mxu0 0.0
    %1816 = vmatprep.subr.mxu0 0.0
    %1817 = vmatpush1.xpose.msra.mxu0 0.0
    %1818 = vmatprep.subr.mxu0 0.0
    %1819 = vmatpush1.xpose.msra.mxu0 0.0
    %1820 = vmatprep.subr.mxu0 0.0
    %1821 = vmatpush1.xpose.msra.mxu0 0.0
    %1822 = vmatprep.subr.mxu0 0.0
    %1823 = vmatpush1.xpose.msra.mxu0 0.0
    %1824 = vmatprep.subr.mxu0 0.0
    %1825 = vmatpush1.xpose.msra.mxu0 0.0
    %1826 = vmatprep.subr.mxu0 0.0
    %1827 = vmatpush1.xpose.msra.mxu0 0.0
    %1828 = vmatprep.subr.mxu0 0.0
    %1829 = vmatpush1.xpose.msra.mxu0 0.0
    %1830 = vmatprep.subr.mxu0 0.0
    %1831 = vmatpush1.xpose.msra.mxu0 0.0
    %1832 = vmatprep.subr.mxu0 0.0
    %1833 = vmatpush1.xpose.msra.mxu0 0.0
    %1834 = vmatprep.subr.mxu0 0.0
    %1835 = vmatpush1.xpose.msra.mxu0 0.0
    %1836 = vmatprep.subr.mxu0 0.0
    %1837 = vmatpush1.xpose.msra.mxu0 0.0
    %1838 = vmatprep.subr.mxu0 0.0
    %1839 = vmatpush1.xpose.msra.mxu0 0.0
    %1840 = vmatprep.mubr.f32.mxu0 0.0
    %1841 = vmatmul.mubr.f32.gmra.mrb[0].mxu0 %v1760
    %v1842 = vpop.f32.mrb[0].mxu0
    %v1843 = vadd.f32 %v32, %v1842
    %v1844 = vpop.f32.mrb[0].mxu0
    %1845 = vmatprep.mubr.f32.mxu0 0.0
    %1846 = vmatmul.mubr.f32.gmra.mrb[0].mxu0 %v1762
    %v1847 = vpop.f32.mrb[0].mxu0
    %v1848 = vadd.f32 %v33, %v1847
    %v1849 = vpop.f32.mrb[0].mxu0
    %1850 = vmatprep.mubr.f32.mxu0 0.0
    %1851 = vmatmul.mubr.f32.gmra.mrb[0].mxu0 %v1764
    %v1852 = vpop.f32.mrb[0].mxu0
    %v1853 = vadd.f32 %v34, %v1852
    %v1854 = vpop.f32.mrb[0].mxu0
    %1855 = vmatprep.mubr.f32.mxu0 0.0
    %1856 = vmatmul.mubr.f32.gmra.mrb[0].mxu0 %v1766
    %v1857 = vpop.f32.mrb[0].mxu0
    %v1858 = vadd.f32 %v35, %v1857
    %v1859 = vpop.f32.mrb[0].mxu0
    %1860 = vdwg.mxu0
    %v1861 = vsel %vm40, %v1843, -inf
    %1862 = vmax.xlane.f32.xlu0 %v1861
    %v1863 = vpop.xlane.xlu0 %1862
    %v1864 = vsel %vm40, %v1848, -inf
    %1865 = vmax.xlane.f32.xlu0 %v1864
    %v1866 = vpop.xlane.xlu0 %1865
    %v1867 = vsel %vm40, %v1853, -inf
    %1868 = vmax.xlane.f32.xlu0 %v1867
    %v1869 = vpop.xlane.xlu0 %1868
    %v1870 = vsel %vm40, %v1858, -inf
    %1871 = vmax.xlane.f32.xlu0 %v1870
    %v1872 = vpop.xlane.xlu0 %1871
    %v1873 = vsub.f32 %v1843, %v1863
    %v1874 = vsub.f32 %v1848, %v1866
    %v1875 = vsub.f32 %v1853, %v1869
    %v1876 = vsub.f32 %v1858, %v1872
    %v1877 = vmul.f32 %v1873, 1.442695
    %v1878 = vpow.pop %v1877
    %v1879 = vmul.f32 %v1874, 1.442695
    %v1880 = vpow.pop %v1879
    %v1881 = vmul.f32 %v1875, 1.442695
    %v1882 = vpow.pop %v1881
    %v1883 = vmul.f32 %v1876, 1.442695
    %v1884 = vpow.pop %v1883
    %v1885 = vsel %vm40, %v1878, 0.0
    %1886 = vadd.xlane.f32.xlu0 %v1885
    %v1887 = vpop.xlane.xlu0 %1886
    %v1888 = vsel %vm40, %v1880, 0.0
    %1889 = vadd.xlane.f32.xlu0 %v1888
    %v1890 = vpop.xlane.xlu0 %1889
    %v1891 = vsel %vm40, %v1882, 0.0
    %1892 = vadd.xlane.f32.xlu0 %v1891
    %v1893 = vpop.xlane.xlu0 %1892
    %v1894 = vsel %vm40, %v1884, 0.0
    %1895 = vadd.xlane.f32.xlu0 %v1894
    %v1896 = vpop.xlane.xlu0 %1895
    %v1897 = vrcp.pop %v1887
    %v1898 = vmul.f32 %v1878, %v1897
    %v1899 = vrcp.pop %v1890
    %v1900 = vmul.f32 %v1880, %v1899
    %v1901 = vrcp.pop %v1893
    %v1902 = vmul.f32 %v1882, %v1901
    %v1903 = vrcp.pop %v1896
    %v1904 = vmul.f32 %v1884, %v1903
    %1905 = vrot.lane.b32.xlu0 %v1460, 48
    %v1906 = vpop.permute.xlu0 %1905
    %1907 = vrot.lane.b32.xlu0 %v1465, 48
    %v1908 = vpop.permute.xlu0 %1907
    %1909 = vrot.lane.b32.xlu0 %v1470, 48
    %v1910 = vpop.permute.xlu0 %1909
    %1911 = vrot.lane.b32.xlu0 %v1475, 48
    %v1912 = vpop.permute.xlu0 %1911
    %v1918 = vsel %vm40, %v1898, 0
    %v1921 = vsel %vm40, %v1900, 0
    %v1924 = vsel %vm40, %v1902, 0
    %v1927 = vsel %vm40, %v1904, 0
    %1929 = vmatprep.subr.mxu0 0.0
    %1930 = vmatpush1.msra.mxu0 %v1906
    %1931 = vmatprep.subr.mxu0 0.0
    %1932 = vmatpush1.msra.mxu0 %v1908
    %1933 = vmatprep.subr.mxu0 0.0
    %1934 = vmatpush1.msra.mxu0 %v1910
    %1935 = vmatprep.subr.mxu0 0.0
    %1936 = vmatpush1.msra.mxu0 %v1912
    %1937 = vmatprep.subr.mxu0 0.0
    %1938 = vmatpush1.msra.mxu0 0.0
    %1939 = vmatprep.subr.mxu0 0.0
    %1940 = vmatpush1.msra.mxu0 0.0
    %1941 = vmatprep.subr.mxu0 0.0
    %1942 = vmatpush1.msra.mxu0 0.0
    %1943 = vmatprep.subr.mxu0 0.0
    %1944 = vmatpush1.msra.mxu0 0.0
    %1945 = vmatprep.subr.mxu0 0.0
    %1946 = vmatpush1.msra.mxu0 0.0
    %1947 = vmatprep.subr.mxu0 0.0
    %1948 = vmatpush1.msra.mxu0 0.0
    %1949 = vmatprep.subr.mxu0 0.0
    %1950 = vmatpush1.msra.mxu0 0.0
    %1951 = vmatprep.subr.mxu0 0.0
    %1952 = vmatpush1.msra.mxu0 0.0
    %1953 = vmatprep.subr.mxu0 0.0
    %1954 = vmatpush1.msra.mxu0 0.0
    %1955 = vmatprep.subr.mxu0 0.0
    %1956 = vmatpush1.msra.mxu0 0.0
    %1957 = vmatprep.subr.mxu0 0.0
    %1958 = vmatpush1.msra.mxu0 0.0
    %1959 = vmatprep.subr.mxu0 0.0
    %1960 = vmatpush1.msra.mxu0 0.0
    %1961 = vmatprep.subr.mxu0 0.0
    %1962 = vmatpush1.msra.mxu0 0.0
    %1963 = vmatprep.subr.mxu0 0.0
    %1964 = vmatpush1.msra.mxu0 0.0
    %1965 = vmatprep.subr.mxu0 0.0
    %1966 = vmatpush1.msra.mxu0 0.0
    %1967 = vmatprep.subr.mxu0 0.0
    %1968 = vmatpush1.msra.mxu0 0.0
    %1969 = vmatprep.subr.mxu0 0.0
    %1970 = vmatpush1.msra.mxu0 0.0
    %1971 = vmatprep.subr.mxu0 0.0
    %1972 = vmatpush1.msra.mxu0 0.0
    %1973 = vmatprep.subr.mxu0 0.0
    %1974 = vmatpush1.msra.mxu0 0.0
    %1975 = vmatprep.subr.mxu0 0.0
    %1976 = vmatpush1.msra.mxu0 0.0
    %1977 = vmatprep.subr.mxu0 0.0
    %1978 = vmatpush1.msra.mxu0 0.0
    %1979 = vmatprep.subr.mxu0 0.0
    %1980 = vmatpush1.msra.mxu0 0.0
    %1981 = vmatprep.subr.mxu0 0.0
    %1982 = vmatpush1.msra.mxu0 0.0
    %1983 = vmatprep.subr.mxu0 0.0
    %1984 = vmatpush1.msra.mxu0 0.0
    %1985 = vmatprep.subr.mxu0 0.0
    %1986 = vmatpush1.msra.mxu0 0.0
    %1987 = vmatprep.subr.mxu0 0.0
    %1988 = vmatpush1.msra.mxu0 0.0
    %1989 = vmatprep.subr.mxu0 0.0
    %1990 = vmatpush1.msra.mxu0 0.0
    %1991 = vmatprep.subr.mxu0 0.0
    %1992 = vmatpush1.msra.mxu0 0.0
    %1993 = vmatprep.mubr.f32.mxu0 0.0
    %1994 = vmatmul.mubr.f32.gmra.mrb[0].mxu0 %v1918
    %v1995 = vpop.f32.mrb[0].mxu0
    %v1996 = vadd.f32 0.0, %v1995
    %v1997 = vpop.f32.mrb[0].mxu0
    %1998 = vmatprep.mubr.f32.mxu0 0.0
    %1999 = vmatmul.mubr.f32.gmra.mrb[0].mxu0 %v1921
    %v2000 = vpop.f32.mrb[0].mxu0
    %v2001 = vadd.f32 0.0, %v2000
    %v2002 = vpop.f32.mrb[0].mxu0
    %2003 = vmatprep.mubr.f32.mxu0 0.0
    %2004 = vmatmul.mubr.f32.gmra.mrb[0].mxu0 %v1924
    %v2005 = vpop.f32.mrb[0].mxu0
    %v2006 = vadd.f32 0.0, %v2005
    %v2007 = vpop.f32.mrb[0].mxu0
    %2008 = vmatprep.mubr.f32.mxu0 0.0
    %2009 = vmatmul.mubr.f32.gmra.mrb[0].mxu0 %v1927
    %v2010 = vpop.f32.mrb[0].mxu0
    %v2011 = vadd.f32 0.0, %v2010
    %v2012 = vpop.f32.mrb[0].mxu0
    %2013 = vdwg.mxu0
    %2016 = vrot.lane.b32.xlu0 %v1369, 32
    %v2017 = vpop.permute.xlu0 %2016
    %2018 = vrot.lane.b32.xlu0 %v1370, 32
    %v2019 = vpop.permute.xlu0 %2018
    %v2023 = vsel %vm231, %v1996, 0
    %v2026 = vsel %vm231, %v2001, 0
    %v2029 = vsel %vm231, %v2006, 0
    %v2032 = vsel %vm231, %v2011, 0
    %2034 = vmatprep.subr.mxu0 0.0
    %2035 = vmatpush1.msra.mxu0 %v2017
    %2036 = vmatprep.subr.mxu0 0.0
    %2037 = vmatpush1.msra.mxu0 %v2019
    %2038 = vmatprep.subr.mxu0 0.0
    %2039 = vmatpush1.msra.mxu0 0.0
    %2040 = vmatprep.subr.mxu0 0.0
    %2041 = vmatpush1.msra.mxu0 0.0
    %2042 = vmatprep.subr.mxu0 0.0
    %2043 = vmatpush1.msra.mxu0 0.0
    %2044 = vmatprep.subr.mxu0 0.0
    %2045 = vmatpush1.msra.mxu0 0.0
    %2046 = vmatprep.subr.mxu0 0.0
    %2047 = vmatpush1.msra.mxu0 0.0
    %2048 = vmatprep.subr.mxu0 0.0
    %2049 = vmatpush1.msra.mxu0 0.0
    %2050 = vmatprep.subr.mxu0 0.0
    %2051 = vmatpush1.msra.mxu0 0.0
    %2052 = vmatprep.subr.mxu0 0.0
    %2053 = vmatpush1.msra.mxu0 0.0
    %2054 = vmatprep.subr.mxu0 0.0
    %2055 = vmatpush1.msra.mxu0 0.0
    %2056 = vmatprep.subr.mxu0 0.0
    %2057 = vmatpush1.msra.mxu0 0.0
    %2058 = vmatprep.subr.mxu0 0.0
    %2059 = vmatpush1.msra.mxu0 0.0
    %2060 = vmatprep.subr.mxu0 0.0
    %2061 = vmatpush1.msra.mxu0 0.0
    %2062 = vmatprep.subr.mxu0 0.0
    %2063 = vmatpush1.msra.mxu0 0.0
    %2064 = vmatprep.subr.mxu0 0.0
    %2065 = vmatpush1.msra.mxu0 0.0
    %2066 = vmatprep.subr.mxu0 0.0
    %2067 = vmatpush1.msra.mxu0 0.0
    %2068 = vmatprep.subr.mxu0 0.0
    %2069 = vmatpush1.msra.mxu0 0.0
    %2070 = vmatprep.subr.mxu0 0.0
    %2071 = vmatpush1.msra.mxu0 0.0
    %2072 = vmatprep.subr.mxu0 0.0
    %2073 = vmatpush1.msra.mxu0 0.0
    %2074 = vmatprep.subr.mxu0 0.0
    %2075 = vmatpush1.msra.mxu0 0.0
    %2076 = vmatprep.subr.mxu0 0.0
    %2077 = vmatpush1.msra.mxu0 0.0
    %2078 = vmatprep.subr.mxu0 0.0
    %2079 = vmatpush1.msra.mxu0 0.0
    %2080 = vmatprep.subr.mxu0 0.0
    %2081 = vmatpush1.msra.mxu0 0.0
    %2082 = vmatprep.subr.mxu0 0.0
    %2083 = vmatpush1.msra.mxu0 0.0
    %2084 = vmatprep.subr.mxu0 0.0
    %2085 = vmatpush1.msra.mxu0 0.0
    %2086 = vmatprep.subr.mxu0 0.0
    %2087 = vmatpush1.msra.mxu0 0.0
    %2088 = vmatprep.subr.mxu0 0.0
    %2089 = vmatpush1.msra.mxu0 0.0
    %2090 = vmatprep.subr.mxu0 0.0
    %2091 = vmatpush1.msra.mxu0 0.0
    %2092 = vmatprep.subr.mxu0 0.0
    %2093 = vmatpush1.msra.mxu0 0.0
    %2094 = vmatprep.subr.mxu0 0.0
    %2095 = vmatpush1.msra.mxu0 0.0
    %2096 = vmatprep.subr.mxu0 0.0
    %2097 = vmatpush1.msra.mxu0 0.0
    %2098 = vmatprep.mubr.f32.mxu0 0.0
    %2099 = vmatmul.mubr.f32.gmra.mrb[0].mxu0 %v2023
    %v2100 = vpop.f32.mrb[0].mxu0
    %v2101 = vadd.f32 0.0, %v2100
    %v2102 = vpop.f32.mrb[0].mxu0
    %2103 = vmatprep.mubr.f32.mxu0 0.0
    %2104 = vmatmul.mubr.f32.gmra.mrb[0].mxu0 %v2026
    %v2105 = vpop.f32.mrb[0].mxu0
    %v2106 = vadd.f32 0.0, %v2105
    %v2107 = vpop.f32.mrb[0].mxu0
    %2108 = vmatprep.mubr.f32.mxu0 0.0
    %2109 = vmatmul.mubr.f32.gmra.mrb[0].mxu0 %v2029
    %v2110 = vpop.f32.mrb[0].mxu0
    %v2111 = vadd.f32 0.0, %v2110
    %v2112 = vpop.f32.mrb[0].mxu0
    %2113 = vmatprep.mubr.f32.mxu0 0.0
    %2114 = vmatmul.mubr.f32.gmra.mrb[0].mxu0 %v2032
    %v2115 = vpop.f32.mrb[0].mxu0
    %v2116 = vadd.f32 0.0, %v2115
    %v2117 = vpop.f32.mrb[0].mxu0
    %2118 = vdwg.mxu0
    %2121 = vrot.lane.b32.xlu0 %v1367, 32
    %v2122 = vpop.permute.xlu0 %2121
    %2123 = vrot.lane.b32.xlu0 %v1368, 32
    %v2124 = vpop.permute.xlu0 %2123
    %v2128 = vsel %vm231, %v1726, 0
    %v2131 = vsel %vm231, %v1731, 0
    %v2134 = vsel %vm231, %v1736, 0
    %v2137 = vsel %vm231, %v1741, 0
    %2139 = vmatprep.subr.mxu0 0.0
    %2140 = vmatpush1.msra.mxu0 %v2122
    %2141 = vmatprep.subr.mxu0 0.0
    %2142 = vmatpush1.msra.mxu0 %v2124
    %2143 = vmatprep.subr.mxu0 0.0
    %2144 = vmatpush1.msra.mxu0 0.0
    %2145 = vmatprep.subr.mxu0 0.0
    %2146 = vmatpush1.msra.mxu0 0.0
    %2147 = vmatprep.subr.mxu0 0.0
    %2148 = vmatpush1.msra.mxu0 0.0
    %2149 = vmatprep.subr.mxu0 0.0
    %2150 = vmatpush1.msra.mxu0 0.0
    %2151 = vmatprep.subr.mxu0 0.0
    %2152 = vmatpush1.msra.mxu0 0.0
    %2153 = vmatprep.subr.mxu0 0.0
    %2154 = vmatpush1.msra.mxu0 0.0
    %2155 = vmatprep.subr.mxu0 0.0
    %2156 = vmatpush1.msra.mxu0 0.0
    %2157 = vmatprep.subr.mxu0 0.0
    %2158 = vmatpush1.msra.mxu0 0.0
    %2159 = vmatprep.subr.mxu0 0.0
    %2160 = vmatpush1.msra.mxu0 0.0
    %2161 = vmatprep.subr.mxu0 0.0
    %2162 = vmatpush1.msra.mxu0 0.0
    %2163 = vmatprep.subr.mxu0 0.0
    %2164 = vmatpush1.msra.mxu0 0.0
    %2165 = vmatprep.subr.mxu0 0.0
    %2166 = vmatpush1.msra.mxu0 0.0
    %2167 = vmatprep.subr.mxu0 0.0
    %2168 = vmatpush1.msra.mxu0 0.0
    %2169 = vmatprep.subr.mxu0 0.0
    %2170 = vmatpush1.msra.mxu0 0.0
    %2171 = vmatprep.subr.mxu0 0.0
    %2172 = vmatpush1.msra.mxu0 0.0
    %2173 = vmatprep.subr.mxu0 0.0
    %2174 = vmatpush1.msra.mxu0 0.0
    %2175 = vmatprep.subr.mxu0 0.0
    %2176 = vmatpush1.msra.mxu0 0.0
    %2177 = vmatprep.subr.mxu0 0.0
    %2178 = vmatpush1.msra.mxu0 0.0
    %2179 = vmatprep.subr.mxu0 0.0
    %2180 = vmatpush1.msra.mxu0 0.0
    %2181 = vmatprep.subr.mxu0 0.0
    %2182 = vmatpush1.msra.mxu0 0.0
    %2183 = vmatprep.subr.mxu0 0.0
    %2184 = vmatpush1.msra.mxu0 0.0
    %2185 = vmatprep.subr.mxu0 0.0
    %2186 = vmatpush1.msra.mxu0 0.0
    %2187 = vmatprep.subr.mxu0 0.0
    %2188 = vmatpush1.msra.mxu0 0.0
    %2189 = vmatprep.subr.mxu0 0.0
    %2190 = vmatpush1.msra.mxu0 0.0
    %2191 = vmatprep.subr.mxu0 0.0
    %2192 = vmatpush1.msra.mxu0 0.0
    %2193 = vmatprep.subr.mxu0 0.0
    %2194 = vmatpush1.msra.mxu0 0.0
    %2195 = vmatprep.subr.mxu0 0.0
    %2196 = vmatpush1.msra.mxu0 0.0
    %2197 = vmatprep.subr.mxu0 0.0
    %2198 = vmatpush1.msra.mxu0 0.0
    %2199 = vmatprep.subr.mxu0 0.0
    %2200 = vmatpush1.msra.mxu0 0.0
    %2201 = vmatprep.subr.mxu0 0.0
    %2202 = vmatpush1.msra.mxu0 0.0
    %2203 = vmatprep.mubr.f32.mxu0 0.0
    %2204 = vmatmul.mubr.f32.gmra.mrb[0].mxu0 %v2128
    %v2205 = vpop.f32.mrb[0].mxu0
    %v2206 = vadd.f32 %v2101, %v2205
    %v2207 = vpop.f32.mrb[0].mxu0
    %2208 = vmatprep.mubr.f32.mxu0 0.0
    %2209 = vmatmul.mubr.f32.gmra.mrb[0].mxu0 %v2131
    %v2210 = vpop.f32.mrb[0].mxu0
    %v2211 = vadd.f32 %v2106, %v2210
    %v2212 = vpop.f32.mrb[0].mxu0
    %2213 = vmatprep.mubr.f32.mxu0 0.0
    %2214 = vmatmul.mubr.f32.gmra.mrb[0].mxu0 %v2134
    %v2215 = vpop.f32.mrb[0].mxu0
    %v2216 = vadd.f32 %v2111, %v2215
    %v2217 = vpop.f32.mrb[0].mxu0
    %2218 = vmatprep.mubr.f32.mxu0 0.0
    %2219 = vmatmul.mubr.f32.gmra.mrb[0].mxu0 %v2137
    %v2220 = vpop.f32.mrb[0].mxu0
    %v2221 = vadd.f32 %v2116, %v2220
    %v2222 = vpop.f32.mrb[0].mxu0
    %2223 = vdwg.mxu0
    %2224 = vrot.lane.b32.xlu0 %v1379, 32
    %v2225 = vpop.permute.xlu0 %2224
    %v2227 = vadd.f32 %v2206, %v2225
    %v2228 = vadd.f32 %v2211, %v2225
    %v2229 = vadd.f32 %v2216, %v2225
    %v2230 = vadd.f32 %v2221, %v2225
    %v2231 = vadd.f32 %v2227, %v1362
    %v2232 = vadd.f32 %v2228, %v1363
    %v2233 = vadd.f32 %v2229, %v1364
    %v2234 = vadd.f32 %v2230, %v1365
    %v2235 = vsel %vm40, %v2231, 0.0
    %2236 = vadd.xlane.f32.xlu0 %v2235
    %v2237 = vpop.xlane.xlu0 %2236
    %v2238 = vsel %vm40, %v2232, 0.0
    %2239 = vadd.xlane.f32.xlu0 %v2238
    %v2240 = vpop.xlane.xlu0 %2239
    %v2241 = vsel %vm40, %v2233, 0.0
    %2242 = vadd.xlane.f32.xlu0 %v2241
    %v2243 = vpop.xlane.xlu0 %2242
    %v2244 = vsel %vm40, %v2234, 0.0
    %2245 = vadd.xlane.f32.xlu0 %v2244
    %v2246 = vpop.xlane.xlu0 %2245
    %v2247 = vmul.f32 %v2237, %v53
    %v2248 = vmul.f32 %v2240, %v53
    %v2249 = vmul.f32 %v2243, %v53
    %v2250 = vmul.f32 %v2246, %v53
    %v2251 = vsub.f32 %v2231, %v2247
    %v2252 = vsub.f32 %v2232, %v2248
    %v2253 = vsub.f32 %v2233, %v2249
    %v2254 = vsub.f32 %v2234, %v2250
    %v2255 = vmul.f32 %v2251, %v2251
    %v2256 = vmul.f32 %v2252, %v2252
    %v2257 = vmul.f32 %v2253, %v2253
    %v2258 = vmul.f32 %v2254, %v2254
    %v2259 = vsel %vm40, %v2255, 0.0
    %2260 = vadd.xlane.f32.xlu0 %v2259
    %v2261 = vpop.xlane.xlu0 %2260
    %v2262 = vsel %vm40, %v2256, 0.0
    %2263 = vadd.xlane.f32.xlu0 %v2262
    %v2264 = vpop.xlane.xlu0 %2263
    %v2265 = vsel %vm40, %v2257, 0.0
    %2266 = vadd.xlane.f32.xlu0 %v2265
    %v2267 = vpop.xlane.xlu0 %2266
    %v2268 = vsel %vm40, %v2258, 0.0
    %2269 = vadd.xlane.f32.xlu0 %v2268
    %v2270 = vpop.xlane.xlu0 %2269
    %v2271 = vmul.f32 %v2261, %v53
    %v2272 = vmul.f32 %v2264, %v53
    %v2273 = vmul.f32 %v2267, %v53
    %v2274 = vmul.f32 %v2270, %v53
    %v2275 = vadd.f32 %v2271, 1e-12
    %v2276 = vadd.f32 %v2272, 1e-12
    %v2277 = vadd.f32 %v2273, 1e-12
    %v2278 = vadd.f32 %v2274, 1e-12
    %v2279 = vrsqrt.pop %v2275
    %v2280 = vrsqrt.pop %v2276
    %v2281 = vrsqrt.pop %v2277
    %v2282 = vrsqrt.pop %v2278
    %v2283 = vmul.f32 %v2251, %v2279
    %v2284 = vmul.f32 %v2252, %v2280
    %v2285 = vmul.f32 %v2253, %v2281
    %v2286 = vmul.f32 %v2254, %v2282
    %v2287 = vlaneseq
    %v2288 = vshrl.u32 %v2287, 7
    %v2289 = vsub.s32 0, %v2288
    %v2290 = vrot.slane %v1374, %v2289
    %v2291 = vmul.f32 %v2283, %v2290
    %v2292 = vmul.f32 %v2284, %v2290
    %v2293 = vmul.f32 %v2285, %v2290
    %v2294 = vmul.f32 %v2286, %v2290
    %2296 = vrot.lane.b32.xlu0 %v2290, 96
    %v2297 = vpop.permute.xlu0 %2296
    %v2299 = vadd.f32 %v2291, %v2297
    %v2300 = vadd.f32 %v2292, %v2297
    %v2301 = vadd.f32 %v2293, %v2297
    %v2302 = vadd.f32 %v2294, %v2297
    %s2303 = scalar_lea.vmem %s4, 96
    %v2304 = vld [vmem:[%s2303] sm:$0xff]
    %v2305 = vld [vmem:[%s2303 + $0x8] sm:$0xff]
    %v2306 = vld [vmem:[%s2303 + $0x10] sm:$0xff]
    %v2307 = vld [vmem:[%s2303 + $0x18] sm:$0xff]
    %v2308 = vld [vmem:[%s2303 + $0x20] sm:$0xff]
    %v2309 = vld [vmem:[%s2303 + $0x28] sm:$0xff]
    %v2310 = vld [vmem:[%s2303 + $0x30] sm:$0xff]
    %v2311 = vld [vmem:[%s2303 + $0x38] sm:$0xff]
    %v2312 = vld [vmem:[%s2303 + $0x40] sm:$0xff]
    %v2313 = vld [vmem:[%s2303 + $0x48] sm:$0xff]
    %v2314 = vld [vmem:[%s2303 + $0x50] sm:$0xff]
    %v2315 = vld [vmem:[%s2303 + $0x58] sm:$0xff]
    %v2316 = vlaneseq
    %v2317 = vshrl.u32 %v2316, 7
    %v2318 = vsub.s32 1, %v2317
    %v2319 = vrot.slane %v1374, %v2318
    %v2321 = vsel %vm40, %v2299, 0
    %v2324 = vsel %vm40, %v2300, 0
    %v2327 = vsel %vm40, %v2301, 0
    %v2330 = vsel %vm40, %v2302, 0
    %2332 = vmatprep.subr.mxu0 0.0
    %2333 = vmatpush1.msra.mxu0 %v2304
    %2334 = vmatprep.subr.mxu0 0.0
    %2335 = vmatpush1.msra.mxu0 %v2305
    %2336 = vmatprep.subr.mxu0 0.0
    %2337 = vmatpush1.msra.mxu0 %v2306
    %2338 = vmatprep.subr.mxu0 0.0
    %2339 = vmatpush1.msra.mxu0 %v2307
    %2340 = vmatprep.subr.mxu0 0.0
    %2341 = vmatpush1.msra.mxu0 0.0
    %2342 = vmatprep.subr.mxu0 0.0
    %2343 = vmatpush1.msra.mxu0 0.0
    %2344 = vmatprep.subr.mxu0 0.0
    %2345 = vmatpush1.msra.mxu0 0.0
    %2346 = vmatprep.subr.mxu0 0.0
    %2347 = vmatpush1.msra.mxu0 0.0
    %2348 = vmatprep.subr.mxu0 0.0
    %2349 = vmatpush1.msra.mxu0 0.0
    %2350 = vmatprep.subr.mxu0 0.0
    %2351 = vmatpush1.msra.mxu0 0.0
    %2352 = vmatprep.subr.mxu0 0.0
    %2353 = vmatpush1.msra.mxu0 0.0
    %2354 = vmatprep.subr.mxu0 0.0
    %2355 = vmatpush1.msra.mxu0 0.0
    %2356 = vmatprep.subr.mxu0 0.0
    %2357 = vmatpush1.msra.mxu0 0.0
    %2358 = vmatprep.subr.mxu0 0.0
    %2359 = vmatpush1.msra.mxu0 0.0
    %2360 = vmatprep.subr.mxu0 0.0
    %2361 = vmatpush1.msra.mxu0 0.0
    %2362 = vmatprep.subr.mxu0 0.0
    %2363 = vmatpush1.msra.mxu0 0.0
    %2364 = vmatprep.subr.mxu0 0.0
    %2365 = vmatpush1.msra.mxu0 0.0
    %2366 = vmatprep.subr.mxu0 0.0
    %2367 = vmatpush1.msra.mxu0 0.0
    %2368 = vmatprep.subr.mxu0 0.0
    %2369 = vmatpush1.msra.mxu0 0.0
    %2370 = vmatprep.subr.mxu0 0.0
    %2371 = vmatpush1.msra.mxu0 0.0
    %2372 = vmatprep.subr.mxu0 0.0
    %2373 = vmatpush1.msra.mxu0 0.0
    %2374 = vmatprep.subr.mxu0 0.0
    %2375 = vmatpush1.msra.mxu0 0.0
    %2376 = vmatprep.subr.mxu0 0.0
    %2377 = vmatpush1.msra.mxu0 0.0
    %2378 = vmatprep.subr.mxu0 0.0
    %2379 = vmatpush1.msra.mxu0 0.0
    %2380 = vmatprep.subr.mxu0 0.0
    %2381 = vmatpush1.msra.mxu0 0.0
    %2382 = vmatprep.subr.mxu0 0.0
    %2383 = vmatpush1.msra.mxu0 0.0
    %2384 = vmatprep.subr.mxu0 0.0
    %2385 = vmatpush1.msra.mxu0 0.0
    %2386 = vmatprep.subr.mxu0 0.0
    %2387 = vmatpush1.msra.mxu0 0.0
    %2388 = vmatprep.subr.mxu0 0.0
    %2389 = vmatpush1.msra.mxu0 0.0
    %2390 = vmatprep.subr.mxu0 0.0
    %2391 = vmatpush1.msra.mxu0 0.0
    %2392 = vmatprep.subr.mxu0 0.0
    %2393 = vmatpush1.msra.mxu0 0.0
    %2394 = vmatprep.subr.mxu0 0.0
    %2395 = vmatpush1.msra.mxu0 0.0
    %2396 = vmatprep.mubr.f32.mxu0 0.0
    %2397 = vmatmul.mubr.f32.gmra.mrb[0].mxu0 %v2321
    %v2398 = vpop.f32.mrb[0].mxu0
    %v2399 = vadd.f32 %v2319, %v2398
    %v2400 = vpop.f32.mrb[0].mxu0
    %2401 = vmatprep.mubr.f32.mxu0 0.0
    %2402 = vmatmul.mubr.f32.gmra.mrb[0].mxu0 %v2324
    %v2403 = vpop.f32.mrb[0].mxu0
    %v2404 = vadd.f32 %v2319, %v2403
    %v2405 = vpop.f32.mrb[0].mxu0
    %2406 = vmatprep.mubr.f32.mxu0 0.0
    %2407 = vmatmul.mubr.f32.gmra.mrb[0].mxu0 %v2327
    %v2408 = vpop.f32.mrb[0].mxu0
    %v2409 = vadd.f32 %v2319, %v2408
    %v2410 = vpop.f32.mrb[0].mxu0
    %2411 = vmatprep.mubr.f32.mxu0 0.0
    %2412 = vmatmul.mubr.f32.gmra.mrb[0].mxu0 %v2330
    %v2413 = vpop.f32.mrb[0].mxu0
    %v2414 = vadd.f32 %v2319, %v2413
    %v2415 = vpop.f32.mrb[0].mxu0
    %2416 = vdwg.mxu0
    %v2417 = vmul.f32 %v2399, %v2399
    %v2418 = vmul.f32 %v2404, %v2404
    %v2419 = vmul.f32 %v2409, %v2409
    %v2420 = vmul.f32 %v2414, %v2414
    %v2421 = vmul.f32 %v2399, %v2417
    %v2422 = vmul.f32 %v2404, %v2418
    %v2423 = vmul.f32 %v2409, %v2419
    %v2424 = vmul.f32 %v2414, %v2420
    %v2425 = vmul.f32 %v2421, 0.044715
    %v2426 = vmul.f32 %v2422, 0.044715
    %v2427 = vmul.f32 %v2423, 0.044715
    %v2428 = vmul.f32 %v2424, 0.044715
    %v2429 = vadd.f32 %v2399, %v2425
    %v2430 = vadd.f32 %v2404, %v2426
    %v2431 = vadd.f32 %v2409, %v2427
    %v2432 = vadd.f32 %v2414, %v2428
    %v2433 = vmul.f32 %v2429, 0.7978846
    %v2434 = vmul.f32 %v2430, 0.7978846
    %v2435 = vmul.f32 %v2431, 0.7978846
    %v2436 = vmul.f32 %v2432, 0.7978846
    %v2437 = vtanh.pop %v2433
    %v2438 = vtanh.pop %v2434
    %v2439 = vtanh.pop %v2435
    %v2440 = vtanh.pop %v2436
    %v2441 = vadd.f32 %v2437, 1.0
    %v2442 = vadd.f32 %v2438, 1.0
    %v2443 = vadd.f32 %v2439, 1.0
    %v2444 = vadd.f32 %v2440, 1.0
    %v2445 = vmul.f32 %v2441, 0.5
    %v2446 = vmul.f32 %v2442, 0.5
    %v2447 = vmul.f32 %v2443, 0.5
    %v2448 = vmul.f32 %v2444, 0.5
    %v2449 = vmul.f32 %v2399, %v2445
    %v2450 = vmul.f32 %v2404, %v2446
    %v2451 = vmul.f32 %v2409, %v2447
    %v2452 = vmul.f32 %v2414, %v2448
    %2454 = vrot.lane.b32.xlu0 %v2319, 64
    %v2455 = vpop.permute.xlu0 %2454
    %v2458 = vsel %vm1198, %v2449, 0
    %v2461 = vsel %vm1198, %v2450, 0
    %v2464 = vsel %vm1198, %v2451, 0
    %v2467 = vsel %vm1198, %v2452, 0
    %2469 = vmatprep.subr.mxu0 0.0
    %2470 = vmatpush1.msra.mxu0 %v2308
    %2471 = vmatprep.subr.mxu0 0.0
    %2472 = vmatpush1.msra.mxu0 %v2309
    %2473 = vmatprep.subr.mxu0 0.0
    %2474 = vmatpush1.msra.mxu0 %v2310
    %2475 = vmatprep.subr.mxu0 0.0
    %2476 = vmatpush1.msra.mxu0 %v2311
    %2477 = vmatprep.subr.mxu0 0.0
    %2478 = vmatpush1.msra.mxu0 %v2312
    %2479 = vmatprep.subr.mxu0 0.0
    %2480 = vmatpush1.msra.mxu0 %v2313
    %2481 = vmatprep.subr.mxu0 0.0
    %2482 = vmatpush1.msra.mxu0 %v2314
    %2483 = vmatprep.subr.mxu0 0.0
    %2484 = vmatpush1.msra.mxu0 %v2315
    %2485 = vmatprep.subr.mxu0 0.0
    %2486 = vmatpush1.msra.mxu0 0.0
    %2487 = vmatprep.subr.mxu0 0.0
    %2488 = vmatpush1.msra.mxu0 0.0
    %2489 = vmatprep.subr.mxu0 0.0
    %2490 = vmatpush1.msra.mxu0 0.0
    %2491 = vmatprep.subr.mxu0 0.0
    %2492 = vmatpush1.msra.mxu0 0.0
    %2493 = vmatprep.subr.mxu0 0.0
    %2494 = vmatpush1.msra.mxu0 0.0
    %2495 = vmatprep.subr.mxu0 0.0
    %2496 = vmatpush1.msra.mxu0 0.0
    %2497 = vmatprep.subr.mxu0 0.0
    %2498 = vmatpush1.msra.mxu0 0.0
    %2499 = vmatprep.subr.mxu0 0.0
    %2500 = vmatpush1.msra.mxu0 0.0
    %2501 = vmatprep.subr.mxu0 0.0
    %2502 = vmatpush1.msra.mxu0 0.0
    %2503 = vmatprep.subr.mxu0 0.0
    %2504 = vmatpush1.msra.mxu0 0.0
    %2505 = vmatprep.subr.mxu0 0.0
    %2506 = vmatpush1.msra.mxu0 0.0
    %2507 = vmatprep.subr.mxu0 0.0
    %2508 = vmatpush1.msra.mxu0 0.0
    %2509 = vmatprep.subr.mxu0 0.0
    %2510 = vmatpush1.msra.mxu0 0.0
    %2511 = vmatprep.subr.mxu0 0.0
    %2512 = vmatpush1.msra.mxu0 0.0
    %2513 = vmatprep.subr.mxu0 0.0
    %2514 = vmatpush1.msra.mxu0 0.0
    %2515 = vmatprep.subr.mxu0 0.0
    %2516 = vmatpush1.msra.mxu0 0.0
    %2517 = vmatprep.subr.mxu0 0.0
    %2518 = vmatpush1.msra.mxu0 0.0
    %2519 = vmatprep.subr.mxu0 0.0
    %2520 = vmatpush1.msra.mxu0 0.0
    %2521 = vmatprep.subr.mxu0 0.0
    %2522 = vmatpush1.msra.mxu0 0.0
    %2523 = vmatprep.subr.mxu0 0.0
    %2524 = vmatpush1.msra.mxu0 0.0
    %2525 = vmatprep.subr.mxu0 0.0
    %2526 = vmatpush1.msra.mxu0 0.0
    %2527 = vmatprep.subr.mxu0 0.0
    %2528 = vmatpush1.msra.mxu0 0.0
    %2529 = vmatprep.subr.mxu0 0.0
    %2530 = vmatpush1.msra.mxu0 0.0
    %2531 = vmatprep.subr.mxu0 0.0
    %2532 = vmatpush1.msra.mxu0 0.0
    %2533 = vmatprep.mubr.f32.mxu0 0.0
    %2534 = vmatmul.mubr.f32.gmra.mrb[0].mxu0 %v2458
    %v2535 = vpop.f32.mrb[0].mxu0
    %v2536 = vadd.f32 %v2455, %v2535
    %v2537 = vpop.f32.mrb[0].mxu0
    %2538 = vmatprep.mubr.f32.mxu0 0.0
    %2539 = vmatmul.mubr.f32.gmra.mrb[0].mxu0 %v2461
    %v2540 = vpop.f32.mrb[0].mxu0
    %v2541 = vadd.f32 %v2455, %v2540
    %v2542 = vpop.f32.mrb[0].mxu0
    %2543 = vmatprep.mubr.f32.mxu0 0.0
    %2544 = vmatmul.mubr.f32.gmra.mrb[0].mxu0 %v2464
    %v2545 = vpop.f32.mrb[0].mxu0
    %v2546 = vadd.f32 %v2455, %v2545
    %v2547 = vpop.f32.mrb[0].mxu0
    %2548 = vmatprep.mubr.f32.mxu0 0.0
    %2549 = vmatmul.mubr.f32.gmra.mrb[0].mxu0 %v2467
    %v2550 = vpop.f32.mrb[0].mxu0
    %v2551 = vadd.f32 %v2455, %v2550
    %v2552 = vpop.f32.mrb[0].mxu0
    %2553 = vdwg.mxu0
    %v2554 = vadd.f32 %v2536, %v2299
    %v2555 = vadd.f32 %v2541, %v2300
    %v2556 = vadd.f32 %v2546, %v2301
    %v2557 = vadd.f32 %v2551, %v2302
    %v2558 = vsel %vm40, %v2554, 0.0
    %2559 = vadd.xlane.f32.xlu0 %v2558
    %v2560 = vpop.xlane.xlu0 %2559
    %v2561 = vsel %vm40, %v2555, 0.0
    %2562 = vadd.xlane.f32.xlu0 %v2561
    %v2563 = vpop.xlane.xlu0 %2562
    %v2564 = vsel %vm40, %v2556, 0.0
    %2565 = vadd.xlane.f32.xlu0 %v2564
    %v2566 = vpop.xlane.xlu0 %2565
    %v2567 = vsel %vm40, %v2557, 0.0
    %2568 = vadd.xlane.f32.xlu0 %v2567
    %v2569 = vpop.xlane.xlu0 %2568
    %v2570 = vmul.f32 %v2560, %v53
    %v2571 = vmul.f32 %v2563, %v53
    %v2572 = vmul.f32 %v2566, %v53
    %v2573 = vmul.f32 %v2569, %v53
    %v2574 = vsub.f32 %v2554, %v2570
    %v2575 = vsub.f32 %v2555, %v2571
    %v2576 = vsub.f32 %v2556, %v2572
    %v2577 = vsub.f32 %v2557, %v2573
    %v2578 = vmul.f32 %v2574, %v2574
    %v2579 = vmul.f32 %v2575, %v2575
    %v2580 = vmul.f32 %v2576, %v2576
    %v2581 = vmul.f32 %v2577, %v2577
    %v2582 = vsel %vm40, %v2578, 0.0
    %2583 = vadd.xlane.f32.xlu0 %v2582
    %v2584 = vpop.xlane.xlu0 %2583
    %v2585 = vsel %vm40, %v2579, 0.0
    %2586 = vadd.xlane.f32.xlu0 %v2585
    %v2587 = vpop.xlane.xlu0 %2586
    %v2588 = vsel %vm40, %v2580, 0.0
    %2589 = vadd.xlane.f32.xlu0 %v2588
    %v2590 = vpop.xlane.xlu0 %2589
    %v2591 = vsel %vm40, %v2581, 0.0
    %2592 = vadd.xlane.f32.xlu0 %v2591
    %v2593 = vpop.xlane.xlu0 %2592
    %v2594 = vmul.f32 %v2584, %v53
    %v2595 = vmul.f32 %v2587, %v53
    %v2596 = vmul.f32 %v2590, %v53
    %v2597 = vmul.f32 %v2593, %v53
    %v2598 = vadd.f32 %v2594, 1e-12
    %v2599 = vadd.f32 %v2595, 1e-12
    %v2600 = vadd.f32 %v2596, 1e-12
    %v2601 = vadd.f32 %v2597, 1e-12
    %v2602 = vrsqrt.pop %v2598
    %v2603 = vrsqrt.pop %v2599
    %v2604 = vrsqrt.pop %v2600
    %v2605 = vrsqrt.pop %v2601
    %v2606 = vmul.f32 %v2574, %v2602
    %v2607 = vmul.f32 %v2575, %v2603
    %v2608 = vmul.f32 %v2576, %v2604
    %v2609 = vmul.f32 %v2577, %v2605
    %2610 = vrot.lane.b32.xlu0 %v2290, 64
    %v2611 = vpop.permute.xlu0 %2610
    %v2613 = vmul.f32 %v2606, %v2611
    %v2614 = vmul.f32 %v2607, %v2611
    %v2615 = vmul.f32 %v2608, %v2611
    %v2616 = vmul.f32 %v2609, %v2611
    %2617 = vrot.lane.b32.xlu0 %v2290, 32
    %v2618 = vpop.permute.xlu0 %2617
    %v2620 = vadd.f32 %v2613, %v2618
    %v2621 = vadd.f32 %v2614, %v2618
    %v2622 = vadd.f32 %v2615, %v2618
    %v2623 = vadd.f32 %v2616, %v2618
    %v2624 = vld [vmem:[%s6] sm:$0xff]
    %v2625 = vld [vmem:[%s6 + $0x8] sm:$0xff]
    %v2626 = vld [vmem:[%s6 + $0x10] sm:$0xff]
    %v2627 = vld [vmem:[%s6 + $0x18] sm:$0xff]
    %v2628 = vlaneseq
    %v2629 = vshrl.u32 %v2628, 7
    %v2630 = vsub.s32 0, %v2629
    %v2631 = vrot.slane %v31, %v2630
    %v2633 = vsel %vm40, %v2620, 0
    %v2636 = vsel %vm40, %v2621, 0
    %v2639 = vsel %vm40, %v2622, 0
    %v2642 = vsel %vm40, %v2623, 0
    %2644 = vmatprep.subr.mxu0 0.0
    %2645 = vmatpush1.msra.mxu0 %v2624
    %2646 = vmatprep.subr.mxu0 0.0
    %2647 = vmatpush1.msra.mxu0 %v2625
    %2648 = vmatprep.subr.mxu0 0.0
    %2649 = vmatpush1.msra.mxu0 %v2626
    %2650 = vmatprep.subr.mxu0 0.0
    %2651 = vmatpush1.msra.mxu0 %v2627
    %2652 = vmatprep.subr.mxu0 0.0
    %2653 = vmatpush1.msra.mxu0 0.0
    %2654 = vmatprep.subr.mxu0 0.0
    %2655 = vmatpush1.msra.mxu0 0.0
    %2656 = vmatprep.subr.mxu0 0.0
    %2657 = vmatpush1.msra.mxu0 0.0
    %2658 = vmatprep.subr.mxu0 0.0
    %2659 = vmatpush1.msra.mxu0 0.0
    %2660 = vmatprep.subr.mxu0 0.0
    %2661 = vmatpush1.msra.mxu0 0.0
    %2662 = vmatprep.subr.mxu0 0.0
    %2663 = vmatpush1.msra.mxu0 0.0
    %2664 = vmatprep.subr.mxu0 0.0
    %2665 = vmatpush1.msra.mxu0 0.0
    %2666 = vmatprep.subr.mxu0 0.0
    %2667 = vmatpush1.msra.mxu0 0.0
    %2668 = vmatprep.subr.mxu0 0.0
    %2669 = vmatpush1.msra.mxu0 0.0
    %2670 = vmatprep.subr.mxu0 0.0
    %2671 = vmatpush1.msra.mxu0 0.0
    %2672 = vmatprep.subr.mxu0 0.0
    %2673 = vmatpush1.msra.mxu0 0.0
    %2674 = vmatprep.subr.mxu0 0.0
    %2675 = vmatpush1.msra.mxu0 0.0
    %2676 = vmatprep.subr.mxu0 0.0
    %2677 = vmatpush1.msra.mxu0 0.0
    %2678 = vmatprep.subr.mxu0 0.0
    %2679 = vmatpush1.msra.mxu0 0.0
    %2680 = vmatprep.subr.mxu0 0.0
    %2681 = vmatpush1.msra.mxu0 0.0
    %2682 = vmatprep.subr.mxu0 0.0
    %2683 = vmatpush1.msra.mxu0 0.0
    %2684 = vmatprep.subr.mxu0 0.0
    %2685 = vmatpush1.msra.mxu0 0.0
    %2686 = vmatprep.subr.mxu0 0.0
    %2687 = vmatpush1.msra.mxu0 0.0
    %2688 = vmatprep.subr.mxu0 0.0
    %2689 = vmatpush1.msra.mxu0 0.0
    %2690 = vmatprep.subr.mxu0 0.0
    %2691 = vmatpush1.msra.mxu0 0.0
    %2692 = vmatprep.subr.mxu0 0.0
    %2693 = vmatpush1.msra.mxu0 0.0
    %2694 = vmatprep.subr.mxu0 0.0
    %2695 = vmatpush1.msra.mxu0 0.0
    %2696 = vmatprep.subr.mxu0 0.0
    %2697 = vmatpush1.msra.mxu0 0.0
    %2698 = vmatprep.subr.mxu0 0.0
    %2699 = vmatpush1.msra.mxu0 0.0
    %2700 = vmatprep.subr.mxu0 0.0
    %2701 = vmatpush1.msra.mxu0 0.0
    %2702 = vmatprep.subr.mxu0 0.0
    %2703 = vmatpush1.msra.mxu0 0.0
    %2704 = vmatprep.subr.mxu0 0.0
    %2705 = vmatpush1.msra.mxu0 0.0
    %2706 = vmatprep.subr.mxu0 0.0
    %2707 = vmatpush1.msra.mxu0 0.0
    %2708 = vmatprep.mubr.f32.mxu0 0.0
    %2709 = vmatmul.mubr.f32.gmra.mrb[0].mxu0 %v2633
    %v2710 = vpop.f32.mrb[0].mxu0
    %v2711 = vadd.f32 %v2631, %v2710
    %v2712 = vpop.f32.mrb[0].mxu0
    %2713 = vmatprep.mubr.f32.mxu0 0.0
    %2714 = vmatmul.mubr.f32.gmra.mrb[0].mxu0 %v2636
    %v2715 = vpop.f32.mrb[0].mxu0
    %v2716 = vadd.f32 %v2631, %v2715
    %v2717 = vpop.f32.mrb[0].mxu0
    %2718 = vmatprep.mubr.f32.mxu0 0.0
    %2719 = vmatmul.mubr.f32.gmra.mrb[0].mxu0 %v2639
    %v2720 = vpop.f32.mrb[0].mxu0
    %v2721 = vadd.f32 %v2631, %v2720
    %v2722 = vpop.f32.mrb[0].mxu0
    %2723 = vmatprep.mubr.f32.mxu0 0.0
    %2724 = vmatmul.mubr.f32.gmra.mrb[0].mxu0 %v2642
    %v2725 = vpop.f32.mrb[0].mxu0
    %v2726 = vadd.f32 %v2631, %v2725
    %v2727 = vpop.f32.mrb[0].mxu0
    %2728 = vdwg.mxu0
    %2729 = vst [vmem:[#allocation2] sm:$0xff] %v2711
    %2730 = vst [vmem:[#allocation2 + $0x8] sm:$0xff] %v2716
    %2731 = vst [vmem:[#allocation2 + $0x10] sm:$0xff] %v2721
    %2732 = vst [vmem:[#allocation2 + $0x18] sm:$0xff] %v2726
    // Predicated region
    $region34: #{fused_forward.1} parent=1 // pred_check
      _
    $region35: #{fused_forward.1} parent=1 // pred_check_branch
      %2734 = sbr.rel (0) target = $region37
    $region36: #{fused_forward.1} parent=1 // pred_region
      %s2736 = ssub.s32 512, 512
      %2737 = vsyncadd [#allocation3], %s2736
      %s2738 = sshll.u32 [#allocation2], 4
      %s2739 = int_to_ptr.vmem [resolvable:$true] %s2738
      %2744 = dma.vmem_to_hbm [thread:$0]  %s2739, 512, %s8, [#allocation3], 128, 128, 8
    $region37: #{fused_forward.1} parent=1 // pred_fallthru
      _
    // Predicated region
    $region38: #{fused_forward.1} parent=1 // pred_check
      _
    $region39: #{fused_forward.1} parent=1 // pred_check_branch
      %2746 = sbr.rel (0) target = $region41
    $region40: #{fused_forward.1} parent=1 // pred_region
      %2747 = dma.done [#allocation3], 512
    $region41: #{fused_forward.1} parent=1 // pred_fallthru
      _
    %2748 = vsyncpa [#allocation3], 1

</llo_original>
